<compile_context>
chip_gen: v5e
topology: v5e:2x2
jax: 0.10.0
libtpu: 0.0.40
codegen_flags: <defaults>
</compile_context>

<pallas_src>
import functools
import math

import jax
import jax.numpy as jnp
from jax.experimental import pallas as pl
from jax.experimental.pallas import tpu as pltpu

NEG_SLOPE = 0.01           # nn.LeakyReLU default
SCALE_BOUND = 0.11         # GaussianConditional default scale_bound
LIKELIHOOD_BOUND = 1e-9    # EntropyModel default likelihood_bound

# mask type 'A' of MaskedConv2d(kernel_size=5): rows 0,1 fully visible,
# row 2 only columns 0,1; everything else (incl. center) masked out.
ALLOWED_TAPS = tuple((ky, kx) for ky in range(5) for kx in range(5)
                     if ky < 2 or (ky == 2 and kx < 2))     # 12 taps, all ky <= 2


def _erfc(x):
    # Complementary error function via an exp-based rational approximation
    # (Numerical Recipes "erfcc", |error| < 1.2e-7 — f32 accurate).
    # TODO(synk): lax.erfc has no guaranteed Mosaic lowering, so torch.erfc is
    # reproduced with this approximation instead of a native primitive.
    z = jnp.abs(x)
    # exact EUP reciprocal (approx=True would slightly degrade the 1.2e-7 acc)
    t = pl.reciprocal(1.0 + 0.5 * z)
    poly = t * jnp.exp(
        -z * z - 1.26551223
        + t * (1.00002368
        + t * (0.37409196
        + t * (0.09678418
        + t * (-0.18628806
        + t * (0.27886807
        + t * (-1.13520398
        + t * (1.48851587
        + t * (-0.82215223
        + t * 0.17087277)))))))))
    return jnp.where(x >= 0.0, poly, 2.0 - poly)


def _std_cumulative(x):
    # GaussianConditional._standardized_cumulative: 0.5 * erfc(-x / sqrt(2))
    return 0.5 * _erfc(x * (-1.0 / math.sqrt(2.0)))


def _leaky_relu(x):
    return jnp.where(x >= 0.0, x, NEG_SLOPE * x)


def _entropy_kernel(x_ref, wctx_ref, bctx_ref, w1_ref, b1_ref, w2_ref, b2_ref,
                    w3_ref, b3_ref, lik_ref, halo_ref, *, th, W, C, gemm_dtype):
    """One (batch, row-block) step: masked conv + 1x1 chain + likelihood."""
    Wp = W + 4
    hi = pl.program_id(1)

    # 2-row top halo: zero padding for the first row-block of each image,
    # otherwise the last two rows of the previous block (carried in VMEM —
    # requires the row axis to be "arbitrary" / sequential).
    @pl.when(hi == 0)
    def _():
        halo_ref[0:2, :, :] = jnp.zeros((2, Wp, C), jnp.float32)

    @pl.when(hi > 0)
    def _():
        halo_ref[0:2, :, :] = halo_ref[th:th + 2, :, :]

    halo_ref[2:th + 2, :, :] = x_ref[...]           # pre-rounded rows of this block
    halo = halo_ref[...]                            # (th+2, W+4, C)

    M = th * W

    def mm(a, b):
        return jnp.dot(a.astype(gemm_dtype), b,
                       preferred_element_type=jnp.float32)

    # masked 5x5 context-prediction conv: accumulate the 12 unmasked taps as
    # GEMMs gathered from the halo tile (no im2col HBM traffic).
    acc = None
    for t, (ky, kx) in enumerate(ALLOWED_TAPS):
        tap = halo[ky:ky + th, kx:kx + W, :].reshape(M, C)
        part = mm(tap, wctx_ref[t])                 # (M, 2C)
        acc = part if acc is None else acc + part
    ctx = acc + bctx_ref[...]

    # entropy_parameters: 1x1 -> LeakyReLU -> 1x1 -> LeakyReLU -> 1x1 (fused)
    h = _leaky_relu(mm(ctx, w1_ref[...]) + b1_ref[...])
    h = _leaky_relu(mm(h, w2_ref[...]) + b2_ref[...])
    gp = mm(h, w3_ref[...]) + b3_ref[...]           # (M, 2C), single fused GEMM
    scales = gp[:, :C]                              # chunk(2, channels) in VMEM
    means = gp[:, C:]

    # GaussianConditionalQuantized._likelihood + likelihood_lower_bound
    xq = halo[2:2 + th, 2:2 + W, :].reshape(M, C)   # center pixels, already rounded
    values = jnp.abs(jnp.round(xq - means))
    inv_s = pl.reciprocal(jnp.maximum(scales, SCALE_BOUND), approx=True)
    upper = _std_cumulative((0.5 - values) * inv_s)
    lower = _std_cumulative((-0.5 - values) * inv_s)
    lik_ref[...] = jnp.maximum(upper - lower, LIKELIHOOD_BOUND)


def init_params(num_channels, key):
    """Deterministic synthetic parameters with the module's shapes."""
    C = num_channels
    c_in1, c_h1, c_h2, c_out = 2 * C, C * 10 // 3, C * 8 // 3, 2 * C
    ks = jax.random.split(key, 8)

    def init(k, shape, fan_in):
        bound = 1.0 / math.sqrt(fan_in)
        return jax.random.uniform(k, shape, jnp.float32, -bound, bound)

    return dict(
        # MaskedConv2d(C, 2C, 5, padding=2) weight stored HWIO (5,5,C,2C)
        w_ctx=init(ks[0], (5, 5, C, 2 * C), 25 * C),
        b_ctx=init(ks[1], (1, 2 * C), 25 * C),
        # 1x1 convs stored as (in, out) matrices
        w1=init(ks[2], (c_in1, c_h1), c_in1), b1=init(ks[3], (1, c_h1), c_in1),
        w2=init(ks[4], (c_h1, c_h2), c_h1),   b2=init(ks[5], (1, c_h2), c_h1),
        w3=init(ks[6], (c_h2, c_out), c_h2),  b3=init(ks[7], (1, c_out), c_h2),
    )


def _round_up(a, m):
    return (a + m - 1) // m * m


def gaussian_entropy_model(x_nchw, params, *, tile_rows=None,
                           gemm_dtype=jnp.float32,
                           vmem_limit_bytes=48 * 1024 * 1024):
    """Returns (inputs_quantized, likelihoods), both NCHW float32."""
    B, C, H, W = x_nchw.shape
    Wp = W + 4

    # quantize == round, hoisted out of the kernel; this is also the first
    # module output, produced with no kernel involvement / no output stream.
    xq_nchw = jnp.round(x_nchw.astype(jnp.float32))

    # image rows per block: multiple of 8, sized so a block holds >=~1024
    # flattened (row-major) pixels to amortize per-grid-step overhead.
    if tile_rows is None:
        tile_rows = max(8, _round_up(-(-1024 // W), 8))
    th = min(_round_up(tile_rows, 8), _round_up(H, 8))
    HB = -(-H // th)
    Hpad = HB * th

    # NHWC, rounded, horizontally zero-padded by the conv padding (2 each side),
    # bottom-padded to whole row blocks (pad-row outputs are discarded).
    xq_nhwc = jnp.transpose(xq_nchw, (0, 2, 3, 1))
    xq_pad = jnp.pad(xq_nhwc, ((0, 0), (0, Hpad - H), (2, 2), (0, 0)))

    # Weights: masked conv as a (12, C, 2C) stack of unmasked taps (mask 'A'
    # applied by construction), 1x1 convs as (in, out) matrices; last GEMM kept
    # fused (single (c_h2, 2C) matrix, split into scales/means inside the
    # kernel).  Optionally cast GEMM operands to bf16 (v6e/v7x).
    w_ctx = jnp.stack([params["w_ctx"][ky, kx] for ky, kx in ALLOWED_TAPS],
                      axis=0).astype(gemm_dtype)
    w1 = params["w1"].astype(gemm_dtype)
    w2 = params["w2"].astype(gemm_dtype)
    w3 = params["w3"].astype(gemm_dtype)
    b_ctx, b1, b2, b3 = params["b_ctx"], params["b1"], params["b2"], params["b3"]

    def const_spec(shape):
        """Constant-index weight/bias block; single-buffered when supported."""
        imap = lambda b, h: (0,) * len(shape)
        try:
            return pl.BlockSpec(shape, imap, pipeline_mode=pl.Buffered(1))
        except Exception:  # pipeline_mode/Buffered unavailable -> default spec
            return pl.BlockSpec(shape, imap)

    kernel = functools.partial(_entropy_kernel, th=th, W=W, C=C,
                               gemm_dtype=gemm_dtype)

    lik_flat = pl.pallas_call(
        kernel,
        out_shape=jax.ShapeDtypeStruct((B, Hpad * W, C), jnp.float32),
        grid_spec=pltpu.PrefetchScalarGridSpec(
            num_scalar_prefetch=0,
            grid=(B, HB),
            in_specs=[
                pl.BlockSpec((None, th, Wp, C), lambda b, h: (b, h, 0, 0)),
                const_spec(w_ctx.shape), const_spec(b_ctx.shape),
                const_spec(w1.shape), const_spec(b1.shape),
                const_spec(w2.shape), const_spec(b2.shape),
                const_spec(w3.shape), const_spec(b3.shape),
            ],
            out_specs=pl.BlockSpec((None, th * W, C), lambda b, h: (b, h, 0)),
            scratch_shapes=[pltpu.VMEM((th + 2, Wp, C), jnp.float32)],
        ),
        compiler_params=pltpu.CompilerParams(
            # batch axis parallel (megacore / v7x two cores), row axis must be
            # sequential because of the 2-row halo carry.
            dimension_semantics=("parallel", "arbitrary"),
            vmem_limit_bytes=vmem_limit_bytes,
        ),
    )(xq_pad, w_ctx, b_ctx, w1, b1, w2, b2, w3, b3)

    lik = lik_flat.reshape(B, Hpad, W, C)[:, :H].transpose(0, 3, 1, 2)
    return xq_nchw, lik


def _reference(x_nchw, params):
    """Pure-JAX re-implementation of the PyTorch forward, for validation."""
    B, C, H, W = x_nchw.shape
    x = jnp.transpose(x_nchw, (0, 2, 3, 1)).astype(jnp.float32)
    xq = jnp.round(x)
    xq_pad = jnp.pad(xq, ((0, 0), (2, 2), (2, 2), (0, 0)))
    ctx = jnp.zeros((B, H, W, 2 * C), jnp.float32) + params["b_ctx"][0]
    for ky, kx in ALLOWED_TAPS:
        ctx = ctx + jnp.einsum('bhwc,cd->bhwd',
                               xq_pad[:, ky:ky + H, kx:kx + W, :],
                               params["w_ctx"][ky, kx])
    h = jax.nn.leaky_relu(jnp.einsum('bhwc,cd->bhwd', ctx, params["w1"]) + params["b1"][0], NEG_SLOPE)
    h = jax.nn.leaky_relu(jnp.einsum('bhwc,cd->bhwd', h, params["w2"]) + params["b2"][0], NEG_SLOPE)
    gp = jnp.einsum('bhwc,cd->bhwd', h, params["w3"]) + params["b3"][0]
    scales, means = gp[..., :C], gp[..., C:]
    values = jnp.abs(jnp.round(xq - means))
    scales = jnp.maximum(scales, SCALE_BOUND)
    upper = 0.5 * jax.scipy.special.erfc(-(0.5 - values) / scales / jnp.sqrt(2.0))
    lower = 0.5 * jax.scipy.special.erfc(-(-0.5 - values) / scales / jnp.sqrt(2.0))
    lik = jnp.maximum(upper - lower, LIKELIHOOD_BOUND)
    return jnp.transpose(xq, (0, 3, 1, 2)), jnp.transpose(lik, (0, 3, 1, 2))


if __name__ == "__main__":
    num_channels = 12
    B, H, W = 2, 16, 16
    key = jax.random.PRNGKey(0)
    k_x, k_p = jax.random.split(key)
    x = jax.random.normal(k_x, (B, num_channels, H, W), jnp.float32) * 3.0
    params = init_params(num_channels, k_p)

    # tile_rows=8 forces two row-blocks per image so the halo-carry path is
    # exercised (grid = (2 batches, 2 row blocks)).
    fwd = jax.jit(lambda inp: gaussian_entropy_model(inp, params, tile_rows=8))
    xq, lik = fwd(x)
    jax.block_until_ready((xq, lik))

    # sanity check against the pure-JAX reference (soft check on likelihoods:
    # tolerant to rare matmul/reciprocal-precision rounding-boundary flips)
    xq_ref, lik_ref = _reference(x, params)
    assert xq.shape == (B, num_channels, H, W) and lik.shape == (B, num_channels, H, W)
    assert bool(jnp.all(xq == xq_ref))
    mismatch_frac = float(jnp.mean((jnp.abs(lik - lik_ref) > 1e-3).astype(jnp.float32)))
    assert mismatch_frac < 0.01, f"likelihood mismatch fraction {mismatch_frac}"

    print("KERNEL_OK")
</pallas_src>

<mosaic_0001>
module attributes {stable_mosaic.version = 11 : i64} {
  func.func @_entropy_kernel(%arg0: i32, %arg1: i32, %arg2: memref<1x8x20x12xf32, #tpu.memory_space<vmem>>, %arg3: memref<12x12x24xf32, #tpu.memory_space<vmem>>, %arg4: memref<1x24xf32, #tpu.memory_space<vmem>>, %arg5: memref<24x40xf32, #tpu.memory_space<vmem>>, %arg6: memref<1x40xf32, #tpu.memory_space<vmem>>, %arg7: memref<40x32xf32, #tpu.memory_space<vmem>>, %arg8: memref<1x32xf32, #tpu.memory_space<vmem>>, %arg9: memref<32x24xf32, #tpu.memory_space<vmem>>, %arg10: memref<1x24xf32, #tpu.memory_space<vmem>>, %arg11: memref<1x128x12xf32, #tpu.memory_space<vmem>>, %arg12: memref<10x20x12xf32, #tpu.memory_space<vmem>>) attributes {dimension_semantics = [#tpu.dimension_semantics<parallel>, #tpu.dimension_semantics<arbitrary>], iteration_bounds = array<i64: 2, 2>, scalar_prefetch = 0 : i64, scratch_operands = 1 : i64, tpu.core_type = #tpu.core_type<tc>, window_params = [{transform_indices = @transform_0, window_bounds = array<i64: 1, 8, 20, 12>}, {pipeline_mode = #tpu.pipeline_mode<synchronous>, transform_indices = @transform_1, window_bounds = array<i64: 12, 12, 24>}, {pipeline_mode = #tpu.pipeline_mode<synchronous>, transform_indices = @transform_2, window_bounds = array<i64: 1, 24>}, {pipeline_mode = #tpu.pipeline_mode<synchronous>, transform_indices = @transform_3, window_bounds = array<i64: 24, 40>}, {pipeline_mode = #tpu.pipeline_mode<synchronous>, transform_indices = @transform_4, window_bounds = array<i64: 1, 40>}, {pipeline_mode = #tpu.pipeline_mode<synchronous>, transform_indices = @transform_5, window_bounds = array<i64: 40, 32>}, {pipeline_mode = #tpu.pipeline_mode<synchronous>, transform_indices = @transform_6, window_bounds = array<i64: 1, 32>}, {pipeline_mode = #tpu.pipeline_mode<synchronous>, transform_indices = @transform_7, window_bounds = array<i64: 32, 24>}, {pipeline_mode = #tpu.pipeline_mode<synchronous>, transform_indices = @transform_8, window_bounds = array<i64: 1, 24>}, {transform_indices = @transform_9, window_bounds = array<i64: 1, 128, 12>}]} {
    %c0_i32 = arith.constant 0 : i32
    %0 = arith.cmpi eq, %arg1, %c0_i32 : i32
    %1 = arith.extui %0 : i1 to i32
    %c0_i32_0 = arith.constant 0 : i32
    %2 = arith.cmpi ne, %1, %c0_i32_0 : i32
    scf.if %2 {
      %cst_110 = arith.constant 0.000000e+00 : f32
      %229 = vector.broadcast %cst_110 : f32 to vector<2x20x12xf32>
      %c0_111 = arith.constant 0 : index
      %c0_112 = arith.constant 0 : index
      %c0_113 = arith.constant 0 : index
      %230 = vector.load %arg12[%c0_111, %c0_112, %c0_113] : memref<10x20x12xf32, #tpu.memory_space<vmem>>, vector<2x20x12xf32>
      tpu.vector_store %arg12[%c0_111, %c0_112, %c0_113], %229 {strides = array<i32>} : memref<10x20x12xf32, #tpu.memory_space<vmem>>, vector<2x20x12xf32>,
    } else {
    }
    %c0_i32_1 = arith.constant 0 : i32
    %3 = arith.cmpi sgt, %arg1, %c0_i32_1 : i32
    %4 = arith.extui %3 : i1 to i32
    %c0_i32_2 = arith.constant 0 : i32
    %5 = arith.cmpi ne, %4, %c0_i32_2 : i32
    scf.if %5 {
      %c8_110 = arith.constant 8 : index
      %c0_111 = arith.constant 0 : index
      %c0_112 = arith.constant 0 : index
      %229 = vector.load %arg12[%c8_110, %c0_111, %c0_112] : memref<10x20x12xf32, #tpu.memory_space<vmem>>, vector<2x20x12xf32>
      %c0_113 = arith.constant 0 : index
      %c0_114 = arith.constant 0 : index
      %c0_115 = arith.constant 0 : index
      %230 = vector.load %arg12[%c0_113, %c0_114, %c0_115] : memref<10x20x12xf32, #tpu.memory_space<vmem>>, vector<2x20x12xf32>
      tpu.vector_store %arg12[%c0_113, %c0_114, %c0_115], %229 {strides = array<i32>} : memref<10x20x12xf32, #tpu.memory_space<vmem>>, vector<2x20x12xf32>,
    } else {
    }
    %c0 = arith.constant 0 : index
    %c0_3 = arith.constant 0 : index
    %c0_4 = arith.constant 0 : index
    %c0_5 = arith.constant 0 : index
    %6 = vector.load %arg2[%c0, %c0_3, %c0_4, %c0_5] : memref<1x8x20x12xf32, #tpu.memory_space<vmem>>, vector<1x8x20x12xf32>
    %7 = vector.shape_cast %6 : vector<1x8x20x12xf32> to vector<8x20x12xf32>
    %c2 = arith.constant 2 : index
    %c0_6 = arith.constant 0 : index
    %c0_7 = arith.constant 0 : index
    %8 = vector.load %arg12[%c2, %c0_6, %c0_7] : memref<10x20x12xf32, #tpu.memory_space<vmem>>, vector<8x20x12xf32>
    tpu.vector_store %arg12[%c2, %c0_6, %c0_7], %7 {strides = array<i32>} : memref<10x20x12xf32, #tpu.memory_space<vmem>>, vector<8x20x12xf32>,
    %c0_8 = arith.constant 0 : index
    %c0_9 = arith.constant 0 : index
    %c0_10 = arith.constant 0 : index
    %9 = vector.load %arg12[%c0_8, %c0_9, %c0_10] : memref<10x20x12xf32, #tpu.memory_space<vmem>>, vector<10x20x12xf32>
    %10 = vector.extract_strided_slice %9 {offsets = [0, 0, 0], sizes = [8, 16, 12], strides = [1, 1, 1]} : vector<10x20x12xf32> to vector<8x16x12xf32>
    %11 = vector.shape_cast %10 : vector<8x16x12xf32> to vector<128x12xf32>
    %c0_11 = arith.constant 0 : index
    %c0_12 = arith.constant 0 : index
    %c0_13 = arith.constant 0 : index
    %12 = vector.load %arg3[%c0_11, %c0_12, %c0_13] : memref<12x12x24xf32, #tpu.memory_space<vmem>>, vector<1x12x24xf32>
    %13 = vector.shape_cast %12 : vector<1x12x24xf32> to vector<12x24xf32>
    %cst = arith.constant dense<0.000000e+00> : vector<128x24xf32>
    %14 = tpu.matmul %11, %13, %cst {dimension_numbers = #tpu.dot_dimension_numbers<[1], [0], [0], [1], [0, 0, 1, 1], [], []>} : vector<128x12xf32>, vector<12x24xf32>, vector<128x24xf32> -> vector<128x24xf32>
    %15 = vector.extract_strided_slice %9 {offsets = [0, 1, 0], sizes = [8, 16, 12], strides = [1, 1, 1]} : vector<10x20x12xf32> to vector<8x16x12xf32>
    %16 = vector.shape_cast %15 : vector<8x16x12xf32> to vector<128x12xf32>
    %c1 = arith.constant 1 : index
    %c0_14 = arith.constant 0 : index
    %c0_15 = arith.constant 0 : index
    %17 = vector.load %arg3[%c1, %c0_14, %c0_15] : memref<12x12x24xf32, #tpu.memory_space<vmem>>, vector<1x12x24xf32>
    %18 = vector.shape_cast %17 : vector<1x12x24xf32> to vector<12x24xf32>
    %cst_16 = arith.constant dense<0.000000e+00> : vector<128x24xf32>
    %19 = tpu.matmul %16, %18, %cst_16 {dimension_numbers = #tpu.dot_dimension_numbers<[1], [0], [0], [1], [0, 0, 1, 1], [], []>} : vector<128x12xf32>, vector<12x24xf32>, vector<128x24xf32> -> vector<128x24xf32>
    %20 = arith.addf %14, %19 : vector<128x24xf32>
    %21 = vector.extract_strided_slice %9 {offsets = [0, 2, 0], sizes = [8, 16, 12], strides = [1, 1, 1]} : vector<10x20x12xf32> to vector<8x16x12xf32>
    %22 = vector.shape_cast %21 : vector<8x16x12xf32> to vector<128x12xf32>
    %c2_17 = arith.constant 2 : index
    %c0_18 = arith.constant 0 : index
    %c0_19 = arith.constant 0 : index
    %23 = vector.load %arg3[%c2_17, %c0_18, %c0_19] : memref<12x12x24xf32, #tpu.memory_space<vmem>>, vector<1x12x24xf32>
    %24 = vector.shape_cast %23 : vector<1x12x24xf32> to vector<12x24xf32>
    %cst_20 = arith.constant dense<0.000000e+00> : vector<128x24xf32>
    %25 = tpu.matmul %22, %24, %cst_20 {dimension_numbers = #tpu.dot_dimension_numbers<[1], [0], [0], [1], [0, 0, 1, 1], [], []>} : vector<128x12xf32>, vector<12x24xf32>, vector<128x24xf32> -> vector<128x24xf32>
    %26 = arith.addf %20, %25 : vector<128x24xf32>
    %27 = vector.extract_strided_slice %9 {offsets = [0, 3, 0], sizes = [8, 16, 12], strides = [1, 1, 1]} : vector<10x20x12xf32> to vector<8x16x12xf32>
    %28 = vector.shape_cast %27 : vector<8x16x12xf32> to vector<128x12xf32>
    %c3 = arith.constant 3 : index
    %c0_21 = arith.constant 0 : index
    %c0_22 = arith.constant 0 : index
    %29 = vector.load %arg3[%c3, %c0_21, %c0_22] : memref<12x12x24xf32, #tpu.memory_space<vmem>>, vector<1x12x24xf32>
    %30 = vector.shape_cast %29 : vector<1x12x24xf32> to vector<12x24xf32>
    %cst_23 = arith.constant dense<0.000000e+00> : vector<128x24xf32>
    %31 = tpu.matmul %28, %30, %cst_23 {dimension_numbers = #tpu.dot_dimension_numbers<[1], [0], [0], [1], [0, 0, 1, 1], [], []>} : vector<128x12xf32>, vector<12x24xf32>, vector<128x24xf32> -> vector<128x24xf32>
    %32 = arith.addf %26, %31 : vector<128x24xf32>
    %33 = vector.extract_strided_slice %9 {offsets = [0, 4, 0], sizes = [8, 16, 12], strides = [1, 1, 1]} : vector<10x20x12xf32> to vector<8x16x12xf32>
    %34 = vector.shape_cast %33 : vector<8x16x12xf32> to vector<128x12xf32>
    %c4 = arith.constant 4 : index
    %c0_24 = arith.constant 0 : index
    %c0_25 = arith.constant 0 : index
    %35 = vector.load %arg3[%c4, %c0_24, %c0_25] : memref<12x12x24xf32, #tpu.memory_space<vmem>>, vector<1x12x24xf32>
    %36 = vector.shape_cast %35 : vector<1x12x24xf32> to vector<12x24xf32>
    %cst_26 = arith.constant dense<0.000000e+00> : vector<128x24xf32>
    %37 = tpu.matmul %34, %36, %cst_26 {dimension_numbers = #tpu.dot_dimension_numbers<[1], [0], [0], [1], [0, 0, 1, 1], [], []>} : vector<128x12xf32>, vector<12x24xf32>, vector<128x24xf32> -> vector<128x24xf32>
    %38 = arith.addf %32, %37 : vector<128x24xf32>
    %39 = vector.extract_strided_slice %9 {offsets = [1, 0, 0], sizes = [8, 16, 12], strides = [1, 1, 1]} : vector<10x20x12xf32> to vector<8x16x12xf32>
    %40 = vector.shape_cast %39 : vector<8x16x12xf32> to vector<128x12xf32>
    %c5 = arith.constant 5 : index
    %c0_27 = arith.constant 0 : index
    %c0_28 = arith.constant 0 : index
    %41 = vector.load %arg3[%c5, %c0_27, %c0_28] : memref<12x12x24xf32, #tpu.memory_space<vmem>>, vector<1x12x24xf32>
    %42 = vector.shape_cast %41 : vector<1x12x24xf32> to vector<12x24xf32>
    %cst_29 = arith.constant dense<0.000000e+00> : vector<128x24xf32>
    %43 = tpu.matmul %40, %42, %cst_29 {dimension_numbers = #tpu.dot_dimension_numbers<[1], [0], [0], [1], [0, 0, 1, 1], [], []>} : vector<128x12xf32>, vector<12x24xf32>, vector<128x24xf32> -> vector<128x24xf32>
    %44 = arith.addf %38, %43 : vector<128x24xf32>
    %45 = vector.extract_strided_slice %9 {offsets = [1, 1, 0], sizes = [8, 16, 12], strides = [1, 1, 1]} : vector<10x20x12xf32> to vector<8x16x12xf32>
    %46 = vector.shape_cast %45 : vector<8x16x12xf32> to vector<128x12xf32>
    %c6 = arith.constant 6 : index
    %c0_30 = arith.constant 0 : index
    %c0_31 = arith.constant 0 : index
    %47 = vector.load %arg3[%c6, %c0_30, %c0_31] : memref<12x12x24xf32, #tpu.memory_space<vmem>>, vector<1x12x24xf32>
    %48 = vector.shape_cast %47 : vector<1x12x24xf32> to vector<12x24xf32>
    %cst_32 = arith.constant dense<0.000000e+00> : vector<128x24xf32>
    %49 = tpu.matmul %46, %48, %cst_32 {dimension_numbers = #tpu.dot_dimension_numbers<[1], [0], [0], [1], [0, 0, 1, 1], [], []>} : vector<128x12xf32>, vector<12x24xf32>, vector<128x24xf32> -> vector<128x24xf32>
    %50 = arith.addf %44, %49 : vector<128x24xf32>
    %51 = vector.extract_strided_slice %9 {offsets = [1, 2, 0], sizes = [8, 16, 12], strides = [1, 1, 1]} : vector<10x20x12xf32> to vector<8x16x12xf32>
    %52 = vector.shape_cast %51 : vector<8x16x12xf32> to vector<128x12xf32>
    %c7 = arith.constant 7 : index
    %c0_33 = arith.constant 0 : index
    %c0_34 = arith.constant 0 : index
    %53 = vector.load %arg3[%c7, %c0_33, %c0_34] : memref<12x12x24xf32, #tpu.memory_space<vmem>>, vector<1x12x24xf32>
    %54 = vector.shape_cast %53 : vector<1x12x24xf32> to vector<12x24xf32>
    %cst_35 = arith.constant dense<0.000000e+00> : vector<128x24xf32>
    %55 = tpu.matmul %52, %54, %cst_35 {dimension_numbers = #tpu.dot_dimension_numbers<[1], [0], [0], [1], [0, 0, 1, 1], [], []>} : vector<128x12xf32>, vector<12x24xf32>, vector<128x24xf32> -> vector<128x24xf32>
    %56 = arith.addf %50, %55 : vector<128x24xf32>
    %57 = vector.extract_strided_slice %9 {offsets = [1, 3, 0], sizes = [8, 16, 12], strides = [1, 1, 1]} : vector<10x20x12xf32> to vector<8x16x12xf32>
    %58 = vector.shape_cast %57 : vector<8x16x12xf32> to vector<128x12xf32>
    %c8 = arith.constant 8 : index
    %c0_36 = arith.constant 0 : index
    %c0_37 = arith.constant 0 : index
    %59 = vector.load %arg3[%c8, %c0_36, %c0_37] : memref<12x12x24xf32, #tpu.memory_space<vmem>>, vector<1x12x24xf32>
    %60 = vector.shape_cast %59 : vector<1x12x24xf32> to vector<12x24xf32>
    %cst_38 = arith.constant dense<0.000000e+00> : vector<128x24xf32>
    %61 = tpu.matmul %58, %60, %cst_38 {dimension_numbers = #tpu.dot_dimension_numbers<[1], [0], [0], [1], [0, 0, 1, 1], [], []>} : vector<128x12xf32>, vector<12x24xf32>, vector<128x24xf32> -> vector<128x24xf32>
    %62 = arith.addf %56, %61 : vector<128x24xf32>
    %63 = vector.extract_strided_slice %9 {offsets = [1, 4, 0], sizes = [8, 16, 12], strides = [1, 1, 1]} : vector<10x20x12xf32> to vector<8x16x12xf32>
    %64 = vector.shape_cast %63 : vector<8x16x12xf32> to vector<128x12xf32>
    %c9 = arith.constant 9 : index
    %c0_39 = arith.constant 0 : index
    %c0_40 = arith.constant 0 : index
    %65 = vector.load %arg3[%c9, %c0_39, %c0_40] : memref<12x12x24xf32, #tpu.memory_space<vmem>>, vector<1x12x24xf32>
    %66 = vector.shape_cast %65 : vector<1x12x24xf32> to vector<12x24xf32>
    %cst_41 = arith.constant dense<0.000000e+00> : vector<128x24xf32>
    %67 = tpu.matmul %64, %66, %cst_41 {dimension_numbers = #tpu.dot_dimension_numbers<[1], [0], [0], [1], [0, 0, 1, 1], [], []>} : vector<128x12xf32>, vector<12x24xf32>, vector<128x24xf32> -> vector<128x24xf32>
    %68 = arith.addf %62, %67 : vector<128x24xf32>
    %69 = vector.extract_strided_slice %9 {offsets = [2, 0, 0], sizes = [8, 16, 12], strides = [1, 1, 1]} : vector<10x20x12xf32> to vector<8x16x12xf32>
    %70 = vector.shape_cast %69 : vector<8x16x12xf32> to vector<128x12xf32>
    %c10 = arith.constant 10 : index
    %c0_42 = arith.constant 0 : index
    %c0_43 = arith.constant 0 : index
    %71 = vector.load %arg3[%c10, %c0_42, %c0_43] : memref<12x12x24xf32, #tpu.memory_space<vmem>>, vector<1x12x24xf32>
    %72 = vector.shape_cast %71 : vector<1x12x24xf32> to vector<12x24xf32>
    %cst_44 = arith.constant dense<0.000000e+00> : vector<128x24xf32>
    %73 = tpu.matmul %70, %72, %cst_44 {dimension_numbers = #tpu.dot_dimension_numbers<[1], [0], [0], [1], [0, 0, 1, 1], [], []>} : vector<128x12xf32>, vector<12x24xf32>, vector<128x24xf32> -> vector<128x24xf32>
    %74 = arith.addf %68, %73 : vector<128x24xf32>
    %75 = vector.extract_strided_slice %9 {offsets = [2, 1, 0], sizes = [8, 16, 12], strides = [1, 1, 1]} : vector<10x20x12xf32> to vector<8x16x12xf32>
    %76 = vector.shape_cast %75 : vector<8x16x12xf32> to vector<128x12xf32>
    %c11 = arith.constant 11 : index
    %c0_45 = arith.constant 0 : index
    %c0_46 = arith.constant 0 : index
    %77 = vector.load %arg3[%c11, %c0_45, %c0_46] : memref<12x12x24xf32, #tpu.memory_space<vmem>>, vector<1x12x24xf32>
    %78 = vector.shape_cast %77 : vector<1x12x24xf32> to vector<12x24xf32>
    %cst_47 = arith.constant dense<0.000000e+00> : vector<128x24xf32>
    %79 = tpu.matmul %76, %78, %cst_47 {dimension_numbers = #tpu.dot_dimension_numbers<[1], [0], [0], [1], [0, 0, 1, 1], [], []>} : vector<128x12xf32>, vector<12x24xf32>, vector<128x24xf32> -> vector<128x24xf32>
    %80 = arith.addf %74, %79 : vector<128x24xf32>
    %c0_48 = arith.constant 0 : index
    %c0_49 = arith.constant 0 : index
    %81 = vector.load %arg4[%c0_48, %c0_49] : memref<1x24xf32, #tpu.memory_space<vmem>>, vector<1x24xf32>
    %82 = vector.broadcast %81 : vector<1x24xf32> to vector<128x24xf32>
    %83 = arith.addf %80, %82 : vector<128x24xf32>
    %c0_50 = arith.constant 0 : index
    %c0_51 = arith.constant 0 : index
    %84 = vector.load %arg5[%c0_50, %c0_51] : memref<24x40xf32, #tpu.memory_space<vmem>>, vector<24x40xf32>
    %cst_52 = arith.constant dense<0.000000e+00> : vector<128x40xf32>
    %85 = tpu.matmul %83, %84, %cst_52 {dimension_numbers = #tpu.dot_dimension_numbers<[1], [0], [0], [1], [0, 0, 1, 1], [], []>} : vector<128x24xf32>, vector<24x40xf32>, vector<128x40xf32> -> vector<128x40xf32>
    %c0_53 = arith.constant 0 : index
    %c0_54 = arith.constant 0 : index
    %86 = vector.load %arg6[%c0_53, %c0_54] : memref<1x40xf32, #tpu.memory_space<vmem>>, vector<1x40xf32>
    %87 = vector.broadcast %86 : vector<1x40xf32> to vector<128x40xf32>
    %88 = arith.addf %85, %87 : vector<128x40xf32>
    %cst_55 = arith.constant 0.000000e+00 : f32
    %89 = vector.broadcast %cst_55 : f32 to vector<128x40xf32>
    %90 = arith.cmpf oge, %88, %89 : vector<128x40xf32>
    %cst_56 = arith.constant 0.00999999977 : f32
    %91 = vector.broadcast %cst_56 : f32 to vector<128x40xf32>
    %92 = arith.mulf %91, %88 : vector<128x40xf32>
    %93 = arith.select %90, %88, %92 : vector<128x40xi1>, vector<128x40xf32>
    %c0_57 = arith.constant 0 : index
    %c0_58 = arith.constant 0 : index
    %94 = vector.load %arg7[%c0_57, %c0_58] : memref<40x32xf32, #tpu.memory_space<vmem>>, vector<40x32xf32>
    %cst_59 = arith.constant dense<0.000000e+00> : vector<128x32xf32>
    %95 = tpu.matmul %93, %94, %cst_59 {dimension_numbers = #tpu.dot_dimension_numbers<[1], [0], [0], [1], [0, 0, 1, 1], [], []>} : vector<128x40xf32>, vector<40x32xf32>, vector<128x32xf32> -> vector<128x32xf32>
    %c0_60 = arith.constant 0 : index
    %c0_61 = arith.constant 0 : index
    %96 = vector.load %arg8[%c0_60, %c0_61] : memref<1x32xf32, #tpu.memory_space<vmem>>, vector<1x32xf32>
    %97 = vector.broadcast %96 : vector<1x32xf32> to vector<128x32xf32>
    %98 = arith.addf %95, %97 : vector<128x32xf32>
    %cst_62 = arith.constant 0.000000e+00 : f32
    %99 = vector.broadcast %cst_62 : f32 to vector<128x32xf32>
    %100 = arith.cmpf oge, %98, %99 : vector<128x32xf32>
    %cst_63 = arith.constant 0.00999999977 : f32
    %101 = vector.broadcast %cst_63 : f32 to vector<128x32xf32>
    %102 = arith.mulf %101, %98 : vector<128x32xf32>
    %103 = arith.select %100, %98, %102 : vector<128x32xi1>, vector<128x32xf32>
    %c0_64 = arith.constant 0 : index
    %c0_65 = arith.constant 0 : index
    %104 = vector.load %arg9[%c0_64, %c0_65] : memref<32x24xf32, #tpu.memory_space<vmem>>, vector<32x24xf32>
    %cst_66 = arith.constant dense<0.000000e+00> : vector<128x24xf32>
    %105 = tpu.matmul %103, %104, %cst_66 {dimension_numbers = #tpu.dot_dimension_numbers<[1], [0], [0], [1], [0, 0, 1, 1], [], []>} : vector<128x32xf32>, vector<32x24xf32>, vector<128x24xf32> -> vector<128x24xf32>
    %c0_67 = arith.constant 0 : index
    %c0_68 = arith.constant 0 : index
    %106 = vector.load %arg10[%c0_67, %c0_68] : memref<1x24xf32, #tpu.memory_space<vmem>>, vector<1x24xf32>
    %107 = vector.broadcast %106 : vector<1x24xf32> to vector<128x24xf32>
    %108 = arith.addf %105, %107 : vector<128x24xf32>
    %109 = vector.extract_strided_slice %108 {offsets = [0, 0], sizes = [128, 12], strides = [1, 1]} : vector<128x24xf32> to vector<128x12xf32>
    %110 = vector.extract_strided_slice %108 {offsets = [0, 12], sizes = [128, 12], strides = [1, 1]} : vector<128x24xf32> to vector<128x12xf32>
    %111 = vector.extract_strided_slice %9 {offsets = [2, 2, 0], sizes = [8, 16, 12], strides = [1, 1, 1]} : vector<10x20x12xf32> to vector<8x16x12xf32>
    %112 = vector.shape_cast %111 : vector<8x16x12xf32> to vector<128x12xf32>
    %113 = arith.subf %112, %110 : vector<128x12xf32>
    %114 = math.roundeven %113 : vector<128x12xf32>
    %115 = math.absf %114 : vector<128x12xf32>
    %cst_69 = arith.constant 1.100000e-01 : f32
    %116 = vector.broadcast %cst_69 : f32 to vector<128x12xf32>
    %117 = arith.maximumf %109, %116 : vector<128x12xf32>
    %118 = tpu.reciprocal %117 {approx = true} : vector<128x12xf32> -> vector<128x12xf32>
    %cst_70 = arith.constant 5.000000e-01 : f32
    %119 = vector.broadcast %cst_70 : f32 to vector<128x12xf32>
    %120 = arith.subf %119, %115 : vector<128x12xf32>
    %121 = arith.mulf %120, %118 : vector<128x12xf32>
    %cst_71 = arith.constant -0.707106769 : f32
    %122 = vector.broadcast %cst_71 : f32 to vector<128x12xf32>
    %123 = arith.mulf %121, %122 : vector<128x12xf32>
    %124 = math.absf %123 : vector<128x12xf32>
    %cst_72 = arith.constant 5.000000e-01 : f32
    %125 = vector.broadcast %cst_72 : f32 to vector<128x12xf32>
    %126 = arith.mulf %125, %124 : vector<128x12xf32>
    %cst_73 = arith.constant 1.000000e+00 : f32
    %127 = vector.broadcast %cst_73 : f32 to vector<128x12xf32>
    %128 = arith.addf %127, %126 : vector<128x12xf32>
    %129 = tpu.reciprocal %128 : vector<128x12xf32> -> vector<128x12xf32>
    %cst_74 = arith.constant 0.000000e+00 : f32
    %130 = vector.broadcast %cst_74 : f32 to vector<128x12xf32>
    %131 = arith.subf %130, %124 : vector<128x12xf32>
    %132 = arith.mulf %131, %124 : vector<128x12xf32>
    %cst_75 = arith.constant 1.26551223 : f32
    %133 = vector.broadcast %cst_75 : f32 to vector<128x12xf32>
    %134 = arith.subf %132, %133 : vector<128x12xf32>
    %cst_76 = arith.constant 0.170872763 : f32
    %135 = vector.broadcast %cst_76 : f32 to vector<128x12xf32>
    %136 = arith.mulf %129, %135 : vector<128x12xf32>
    %cst_77 = arith.constant -0.822152256 : f32
    %137 = vector.broadcast %cst_77 : f32 to vector<128x12xf32>
    %138 = arith.addf %137, %136 : vector<128x12xf32>
    %139 = arith.mulf %129, %138 : vector<128x12xf32>
    %cst_78 = arith.constant 1.48851585 : f32
    %140 = vector.broadcast %cst_78 : f32 to vector<128x12xf32>
    %141 = arith.addf %140, %139 : vector<128x12xf32>
    %142 = arith.mulf %129, %141 : vector<128x12xf32>
    %cst_79 = arith.constant -1.13520396 : f32
    %143 = vector.broadcast %cst_79 : f32 to vector<128x12xf32>
    %144 = arith.addf %143, %142 : vector<128x12xf32>
    %145 = arith.mulf %129, %144 : vector<128x12xf32>
    %cst_80 = arith.constant 0.278868079 : f32
    %146 = vector.broadcast %cst_80 : f32 to vector<128x12xf32>
    %147 = arith.addf %146, %145 : vector<128x12xf32>
    %148 = arith.mulf %129, %147 : vector<128x12xf32>
    %cst_81 = arith.constant -0.186288059 : f32
    %149 = vector.broadcast %cst_81 : f32 to vector<128x12xf32>
    %150 = arith.addf %149, %148 : vector<128x12xf32>
    %151 = arith.mulf %129, %150 : vector<128x12xf32>
    %cst_82 = arith.constant 0.0967841818 : f32
    %152 = vector.broadcast %cst_82 : f32 to vector<128x12xf32>
    %153 = arith.addf %152, %151 : vector<128x12xf32>
    %154 = arith.mulf %129, %153 : vector<128x12xf32>
    %cst_83 = arith.constant 0.374091953 : f32
    %155 = vector.broadcast %cst_83 : f32 to vector<128x12xf32>
    %156 = arith.addf %155, %154 : vector<128x12xf32>
    %157 = arith.mulf %129, %156 : vector<128x12xf32>
    %cst_84 = arith.constant 1.00002372 : f32
    %158 = vector.broadcast %cst_84 : f32 to vector<128x12xf32>
    %159 = arith.addf %158, %157 : vector<128x12xf32>
    %160 = arith.mulf %129, %159 : vector<128x12xf32>
    %161 = arith.addf %134, %160 : vector<128x12xf32>
    %162 = math.exp %161 : vector<128x12xf32>
    %163 = arith.mulf %129, %162 : vector<128x12xf32>
    %cst_85 = arith.constant 0.000000e+00 : f32
    %164 = vector.broadcast %cst_85 : f32 to vector<128x12xf32>
    %165 = arith.cmpf oge, %123, %164 : vector<128x12xf32>
    %cst_86 = arith.constant 2.000000e+00 : f32
    %166 = vector.broadcast %cst_86 : f32 to vector<128x12xf32>
    %167 = arith.subf %166, %163 : vector<128x12xf32>
    %168 = arith.select %165, %163, %167 : vector<128x12xi1>, vector<128x12xf32>
    %cst_87 = arith.constant 5.000000e-01 : f32
    %169 = vector.broadcast %cst_87 : f32 to vector<128x12xf32>
    %170 = arith.mulf %169, %168 : vector<128x12xf32>
    %cst_88 = arith.constant -5.000000e-01 : f32
    %171 = vector.broadcast %cst_88 : f32 to vector<128x12xf32>
    %172 = arith.subf %171, %115 : vector<128x12xf32>
    %173 = arith.mulf %172, %118 : vector<128x12xf32>
    %cst_89 = arith.constant -0.707106769 : f32
    %174 = vector.broadcast %cst_89 : f32 to vector<128x12xf32>
    %175 = arith.mulf %173, %174 : vector<128x12xf32>
    %176 = math.absf %175 : vector<128x12xf32>
    %cst_90 = arith.constant 5.000000e-01 : f32
    %177 = vector.broadcast %cst_90 : f32 to vector<128x12xf32>
    %178 = arith.mulf %177, %176 : vector<128x12xf32>
    %cst_91 = arith.constant 1.000000e+00 : f32
    %179 = vector.broadcast %cst_91 : f32 to vector<128x12xf32>
    %180 = arith.addf %179, %178 : vector<128x12xf32>
    %181 = tpu.reciprocal %180 : vector<128x12xf32> -> vector<128x12xf32>
    %cst_92 = arith.constant 0.000000e+00 : f32
    %182 = vector.broadcast %cst_92 : f32 to vector<128x12xf32>
    %183 = arith.subf %182, %176 : vector<128x12xf32>
    %184 = arith.mulf %183, %176 : vector<128x12xf32>
    %cst_93 = arith.constant 1.26551223 : f32
    %185 = vector.broadcast %cst_93 : f32 to vector<128x12xf32>
    %186 = arith.subf %184, %185 : vector<128x12xf32>
    %cst_94 = arith.constant 0.170872763 : f32
    %187 = vector.broadcast %cst_94 : f32 to vector<128x12xf32>
    %188 = arith.mulf %181, %187 : vector<128x12xf32>
    %cst_95 = arith.constant -0.822152256 : f32
    %189 = vector.broadcast %cst_95 : f32 to vector<128x12xf32>
    %190 = arith.addf %189, %188 : vector<128x12xf32>
    %191 = arith.mulf %181, %190 : vector<128x12xf32>
    %cst_96 = arith.constant 1.48851585 : f32
    %192 = vector.broadcast %cst_96 : f32 to vector<128x12xf32>
    %193 = arith.addf %192, %191 : vector<128x12xf32>
    %194 = arith.mulf %181, %193 : vector<128x12xf32>
    %cst_97 = arith.constant -1.13520396 : f32
    %195 = vector.broadcast %cst_97 : f32 to vector<128x12xf32>
    %196 = arith.addf %195, %194 : vector<128x12xf32>
    %197 = arith.mulf %181, %196 : vector<128x12xf32>
    %cst_98 = arith.constant 0.278868079 : f32
    %198 = vector.broadcast %cst_98 : f32 to vector<128x12xf32>
    %199 = arith.addf %198, %197 : vector<128x12xf32>
    %200 = arith.mulf %181, %199 : vector<128x12xf32>
    %cst_99 = arith.constant -0.186288059 : f32
    %201 = vector.broadcast %cst_99 : f32 to vector<128x12xf32>
    %202 = arith.addf %201, %200 : vector<128x12xf32>
    %203 = arith.mulf %181, %202 : vector<128x12xf32>
    %cst_100 = arith.constant 0.0967841818 : f32
    %204 = vector.broadcast %cst_100 : f32 to vector<128x12xf32>
    %205 = arith.addf %204, %203 : vector<128x12xf32>
    %206 = arith.mulf %181, %205 : vector<128x12xf32>
    %cst_101 = arith.constant 0.374091953 : f32
    %207 = vector.broadcast %cst_101 : f32 to vector<128x12xf32>
    %208 = arith.addf %207, %206 : vector<128x12xf32>
    %209 = arith.mulf %181, %208 : vector<128x12xf32>
    %cst_102 = arith.constant 1.00002372 : f32
    %210 = vector.broadcast %cst_102 : f32 to vector<128x12xf32>
    %211 = arith.addf %210, %209 : vector<128x12xf32>
    %212 = arith.mulf %181, %211 : vector<128x12xf32>
    %213 = arith.addf %186, %212 : vector<128x12xf32>
    %214 = math.exp %213 : vector<128x12xf32>
    %215 = arith.mulf %181, %214 : vector<128x12xf32>
    %cst_103 = arith.constant 0.000000e+00 : f32
    %216 = vector.broadcast %cst_103 : f32 to vector<128x12xf32>
    %217 = arith.cmpf oge, %175, %216 : vector<128x12xf32>
    %cst_104 = arith.constant 2.000000e+00 : f32
    %218 = vector.broadcast %cst_104 : f32 to vector<128x12xf32>
    %219 = arith.subf %218, %215 : vector<128x12xf32>
    %220 = arith.select %217, %215, %219 : vector<128x12xi1>, vector<128x12xf32>
    %cst_105 = arith.constant 5.000000e-01 : f32
    %221 = vector.broadcast %cst_105 : f32 to vector<128x12xf32>
    %222 = arith.mulf %221, %220 : vector<128x12xf32>
    %223 = arith.subf %170, %222 : vector<128x12xf32>
    %cst_106 = arith.constant 9.99999971E-10 : f32
    %224 = vector.broadcast %cst_106 : f32 to vector<128x12xf32>
    %225 = arith.maximumf %223, %224 : vector<128x12xf32>
    %c0_107 = arith.constant 0 : index
    %c0_108 = arith.constant 0 : index
    %c0_109 = arith.constant 0 : index
    %226 = vector.load %arg11[%c0_107, %c0_108, %c0_109] : memref<1x128x12xf32, #tpu.memory_space<vmem>>, vector<1x128x12xf32>
    %227 = vector.shape_cast %226 : vector<1x128x12xf32> to vector<128x12xf32>
    %228 = vector.shape_cast %225 : vector<128x12xf32> to vector<1x128x12xf32>
    tpu.vector_store %arg11[%c0_107, %c0_108, %c0_109], %228 {strides = array<i32>} : memref<1x128x12xf32, #tpu.memory_space<vmem>>, vector<1x128x12xf32>,
    return
  }
  func.func @transform_0(%arg0: i32, %arg1: i32) -> (i32, i32, i32, i32) {
    %c0_i32 = arith.constant 0 : i32
    %c0_i32_0 = arith.constant 0 : i32
    %c0_i32_1 = arith.constant 0 : i32
    return %arg0, %arg1, %c0_i32, %c0_i32_0 : i32, i32, i32, i32
  }
  func.func @transform_1(%arg0: i32, %arg1: i32) -> (i32, i32, i32) {
    %c0_i32 = arith.constant 0 : i32
    %c0_i32_0 = arith.constant 0 : i32
    %c0_i32_1 = arith.constant 0 : i32
    %c0_i32_2 = arith.constant 0 : i32
    return %c0_i32, %c0_i32_0, %c0_i32_1 : i32, i32, i32
  }
  func.func @transform_2(%arg0: i32, %arg1: i32) -> (i32, i32) {
    %c0_i32 = arith.constant 0 : i32
    %c0_i32_0 = arith.constant 0 : i32
    %c0_i32_1 = arith.constant 0 : i32
    return %c0_i32, %c0_i32_0 : i32, i32
  }
  func.func @transform_3(%arg0: i32, %arg1: i32) -> (i32, i32) {
    %c0_i32 = arith.constant 0 : i32
    %c0_i32_0 = arith.constant 0 : i32
    %c0_i32_1 = arith.constant 0 : i32
    return %c0_i32, %c0_i32_0 : i32, i32
  }
  func.func @transform_4(%arg0: i32, %arg1: i32) -> (i32, i32) {
    %c0_i32 = arith.constant 0 : i32
    %c0_i32_0 = arith.constant 0 : i32
    %c0_i32_1 = arith.constant 0 : i32
    return %c0_i32, %c0_i32_0 : i32, i32
  }
  func.func @transform_5(%arg0: i32, %arg1: i32) -> (i32, i32) {
    %c0_i32 = arith.constant 0 : i32
    %c0_i32_0 = arith.constant 0 : i32
    %c0_i32_1 = arith.constant 0 : i32
    return %c0_i32, %c0_i32_0 : i32, i32
  }
  func.func @transform_6(%arg0: i32, %arg1: i32) -> (i32, i32) {
    %c0_i32 = arith.constant 0 : i32
    %c0_i32_0 = arith.constant 0 : i32
    %c0_i32_1 = arith.constant 0 : i32
    return %c0_i32, %c0_i32_0 : i32, i32
  }
  func.func @transform_7(%arg0: i32, %arg1: i32) -> (i32, i32) {
    %c0_i32 = arith.constant 0 : i32
    %c0_i32_0 = arith.constant 0 : i32
    %c0_i32_1 = arith.constant 0 : i32
    return %c0_i32, %c0_i32_0 : i32, i32
  }
  func.func @transform_8(%arg0: i32, %arg1: i32) -> (i32, i32) {
    %c0_i32 = arith.constant 0 : i32
    %c0_i32_0 = arith.constant 0 : i32
    %c0_i32_1 = arith.constant 0 : i32
    return %c0_i32, %c0_i32_0 : i32, i32
  }
  func.func @transform_9(%arg0: i32, %arg1: i32) -> (i32, i32, i32) {
    %c0_i32 = arith.constant 0 : i32
    %c0_i32_0 = arith.constant 0 : i32
    return %arg0, %arg1, %c0_i32 : i32, i32, i32
  }
}

</mosaic_0001>

<llo_original>
// kernel: _lambda_.1
$region0: #{_lambda_.1}
  #allocation0 [shape = 'u32[]', space=smem, size = 0x4, offset = 0x4, fixed_abs, tag = 'smem constant byte address 0x4 - core index']
  #allocation1 [shape = 'u32[72,128]{1,0:T(1,128)}', space=vmem, size = 0x9000, scoped, tag = 'internal scratch']
  #allocation2 [shape = 'f32[10,20,12]{2,1,0:T(8,128)}', space=vmem, size = 0x1e000, scoped, tag = 'scratch operand']
  %s0 = inlined_call_operand.vmem [shape: f32[2,16,20,12], index: 0, kind: input, shape index: {}]
  %s1 = inlined_call_operand.vmem [shape: f32[12,12,24], index: 1, kind: input, shape index: {}]
  %s2 = inlined_call_operand.vmem [shape: f32[1,24], index: 2, kind: input, shape index: {}]
  %s3 = inlined_call_operand.vmem [shape: f32[24,40], index: 3, kind: input, shape index: {}]
  %s4 = inlined_call_operand.vmem [shape: f32[1,40], index: 4, kind: input, shape index: {}]
  %s5 = inlined_call_operand.vmem [shape: f32[40,32], index: 5, kind: input, shape index: {}]
  %s6 = inlined_call_operand.vmem [shape: f32[1,32], index: 6, kind: input, shape index: {}]
  %s7 = inlined_call_operand.vmem [shape: f32[32,24], index: 7, kind: input, shape index: {}]
  %s8 = inlined_call_operand.vmem [shape: f32[1,24], index: 8, kind: input, shape index: {}]
  %s9 = inlined_call_operand.vmem [shape: f32[2,256,12], index: 9, kind: output, shape index: {}]
  %s10 = sld [smem:[#allocation0]]
  $region77: #{_lambda_.1} parent=0
    _
  %s12 = ssub.s32 1, %s10
  %s13 = scalar_select 0, %s12, %s10
  loop: start=0, step=1, limit=6
  $region2: #{_lambda_.1} parent=0 // loop_pre_header
    _
  $region3: #{_lambda_.1} parent=0 // loop_header
    %s15 = sphi 0, %s19
    %p16 = scmp.ge.s32.totalorder %s15, 6
    %s22 = sphi 0, %s34
    %s23 = sphi 0, %s30
    %s24 = sphi 0, %s22
    %s25 = sphi 0, %s23
    %s26 = sphi 0, %s24
    %s27 = sphi 0, %s25
    %s39 = sphi 0, %s41
    %s42 = sphi 0, %s39
    %s43 = sphi 0, %s42
    %s59 = sphi 0, %s43
    %s63 = sphi 0, %s63
    %s65 = sphi 0, %s63
    %s66 = sphi 0, %s65
    %s80 = sphi 0, %s66
    %s84 = sphi 0, %s84
    %s86 = sphi 0, %s84
    %s87 = sphi 0, %s86
    %s101 = sphi 0, %s87
    %s105 = sphi 0, %s105
    %s107 = sphi 0, %s105
    %s108 = sphi 0, %s107
    %s122 = sphi 0, %s108
    %s126 = sphi 0, %s126
    %s128 = sphi 0, %s126
    %s129 = sphi 0, %s128
    %s143 = sphi 0, %s129
    %s147 = sphi 0, %s147
    %s149 = sphi 0, %s147
    %s150 = sphi 0, %s149
    %s164 = sphi 0, %s150
    %s168 = sphi 0, %s168
    %s170 = sphi 0, %s168
    %s171 = sphi 0, %s170
    %s185 = sphi 0, %s171
    %s189 = sphi 0, %s189
    %s191 = sphi 0, %s189
    %s192 = sphi 0, %s191
    %s206 = sphi 0, %s192
    %s210 = sphi 0, %s210
    %s212 = sphi 0, %s210
    %s213 = sphi 0, %s212
    %s227 = sphi 0, %s213
    %s235 = sphi 0, %s237
    %s238 = sphi 0, %s235
    %s239 = sphi 0, %s238
    %s255 = sphi 0, %s239
  $region4: #{_lambda_.1} parent=0 // loop_header_branch
    %18 = sbr.rel (%p16) target = $region8
  $region5: #{_lambda_.1} parent=0 // loop_body
    %s20 = ssub.s32 %s15, 1
    %s21 = ssub.s32 %s15, 2
    %s28 = sadd.s32 1, %s23
    %p29 = scmp.ge.s32.totalorder %s28, 2
    %s30 = scalar_select %p29, 0, %s28
    %s31 = sadd.s32 1, %s22
    %s32 = scalar_select %p29, %s31, %s22
    %p33 = scmp.ge.s32.totalorder %s32, 2
    %s34 = scalar_select %p33, 0, %s32
    %s35 = ssub.s32 %s22, %s34
    %s36 = ssub.s32 %s23, %s30
    %s37 = sor.u32 %s35, %s36
    %p38 = scmp.eq.s32.totalorder %s37, 0
    %s40 = sadd.s32 %s39, 1
    %s41 = scalar_select %p38, %s39, %s40
    %p44 = pneg %p38
    %p45 = scmp.eq.s32.totalorder %s15, 3
    %p46 = por %p44, %p45
    %p47 = scmp.ne.s32.totalorder %s39, %s42
    %p48 = scmp.eq.s32.totalorder %s15, 0
    %p49 = por %p47, %p48
    %p50 = scmp.ne.s32.totalorder %s39, %s42
    %p51 = scmp.eq.s32.totalorder %s20, 3
    %p52 = por %p50, %p51
    %p53 = scmp.ne.s32.totalorder %s42, %s43
    %p54 = scmp.eq.s32.totalorder %s20, 0
    %p55 = por %p53, %p54
    %p56 = scmp.ne.s32.totalorder %s42, %s43
    %p57 = scmp.eq.s32.totalorder %s21, 3
    %p58 = por %p56, %p57
    %p60 = scmp.ne.s32.totalorder %s43, %s59
    %p61 = scmp.eq.s32.totalorder %s21, 0
    %p62 = por %p60, %p61
    %s64 = sadd.s32 %s63, 1
    %p67 = scmp.eq.s32.totalorder %s15, 3
    %p68 = scmp.ne.s32.totalorder %s63, %s65
    %p69 = scmp.eq.s32.totalorder %s15, 0
    %p70 = por %p68, %p69
    %p71 = scmp.ne.s32.totalorder %s63, %s65
    %p72 = scmp.eq.s32.totalorder %s20, 3
    %p73 = por %p71, %p72
    %p74 = scmp.ne.s32.totalorder %s65, %s66
    %p75 = scmp.eq.s32.totalorder %s20, 0
    %p76 = por %p74, %p75
    %p77 = scmp.ne.s32.totalorder %s65, %s66
    %p78 = scmp.eq.s32.totalorder %s21, 3
    %p79 = por %p77, %p78
    %p81 = scmp.ne.s32.totalorder %s66, %s80
    %p82 = scmp.eq.s32.totalorder %s21, 0
    %p83 = por %p81, %p82
    %s85 = sadd.s32 %s84, 1
    %p88 = scmp.eq.s32.totalorder %s15, 3
    %p89 = scmp.ne.s32.totalorder %s84, %s86
    %p90 = scmp.eq.s32.totalorder %s15, 0
    %p91 = por %p89, %p90
    %p92 = scmp.ne.s32.totalorder %s84, %s86
    %p93 = scmp.eq.s32.totalorder %s20, 3
    %p94 = por %p92, %p93
    %p95 = scmp.ne.s32.totalorder %s86, %s87
    %p96 = scmp.eq.s32.totalorder %s20, 0
    %p97 = por %p95, %p96
    %p98 = scmp.ne.s32.totalorder %s86, %s87
    %p99 = scmp.eq.s32.totalorder %s21, 3
    %p100 = por %p98, %p99
    %p102 = scmp.ne.s32.totalorder %s87, %s101
    %p103 = scmp.eq.s32.totalorder %s21, 0
    %p104 = por %p102, %p103
    %s106 = sadd.s32 %s105, 1
    %p109 = scmp.eq.s32.totalorder %s15, 3
    %p110 = scmp.ne.s32.totalorder %s105, %s107
    %p111 = scmp.eq.s32.totalorder %s15, 0
    %p112 = por %p110, %p111
    %p113 = scmp.ne.s32.totalorder %s105, %s107
    %p114 = scmp.eq.s32.totalorder %s20, 3
    %p115 = por %p113, %p114
    %p116 = scmp.ne.s32.totalorder %s107, %s108
    %p117 = scmp.eq.s32.totalorder %s20, 0
    %p118 = por %p116, %p117
    %p119 = scmp.ne.s32.totalorder %s107, %s108
    %p120 = scmp.eq.s32.totalorder %s21, 3
    %p121 = por %p119, %p120
    %p123 = scmp.ne.s32.totalorder %s108, %s122
    %p124 = scmp.eq.s32.totalorder %s21, 0
    %p125 = por %p123, %p124
    %s127 = sadd.s32 %s126, 1
    %p130 = scmp.eq.s32.totalorder %s15, 3
    %p131 = scmp.ne.s32.totalorder %s126, %s128
    %p132 = scmp.eq.s32.totalorder %s15, 0
    %p133 = por %p131, %p132
    %p134 = scmp.ne.s32.totalorder %s126, %s128
    %p135 = scmp.eq.s32.totalorder %s20, 3
    %p136 = por %p134, %p135
    %p137 = scmp.ne.s32.totalorder %s128, %s129
    %p138 = scmp.eq.s32.totalorder %s20, 0
    %p139 = por %p137, %p138
    %p140 = scmp.ne.s32.totalorder %s128, %s129
    %p141 = scmp.eq.s32.totalorder %s21, 3
    %p142 = por %p140, %p141
    %p144 = scmp.ne.s32.totalorder %s129, %s143
    %p145 = scmp.eq.s32.totalorder %s21, 0
    %p146 = por %p144, %p145
    %s148 = sadd.s32 %s147, 1
    %p151 = scmp.eq.s32.totalorder %s15, 3
    %p152 = scmp.ne.s32.totalorder %s147, %s149
    %p153 = scmp.eq.s32.totalorder %s15, 0
    %p154 = por %p152, %p153
    %p155 = scmp.ne.s32.totalorder %s147, %s149
    %p156 = scmp.eq.s32.totalorder %s20, 3
    %p157 = por %p155, %p156
    %p158 = scmp.ne.s32.totalorder %s149, %s150
    %p159 = scmp.eq.s32.totalorder %s20, 0
    %p160 = por %p158, %p159
    %p161 = scmp.ne.s32.totalorder %s149, %s150
    %p162 = scmp.eq.s32.totalorder %s21, 3
    %p163 = por %p161, %p162
    %p165 = scmp.ne.s32.totalorder %s150, %s164
    %p166 = scmp.eq.s32.totalorder %s21, 0
    %p167 = por %p165, %p166
    %s169 = sadd.s32 %s168, 1
    %p172 = scmp.eq.s32.totalorder %s15, 3
    %p173 = scmp.ne.s32.totalorder %s168, %s170
    %p174 = scmp.eq.s32.totalorder %s15, 0
    %p175 = por %p173, %p174
    %p176 = scmp.ne.s32.totalorder %s168, %s170
    %p177 = scmp.eq.s32.totalorder %s20, 3
    %p178 = por %p176, %p177
    %p179 = scmp.ne.s32.totalorder %s170, %s171
    %p180 = scmp.eq.s32.totalorder %s20, 0
    %p181 = por %p179, %p180
    %p182 = scmp.ne.s32.totalorder %s170, %s171
    %p183 = scmp.eq.s32.totalorder %s21, 3
    %p184 = por %p182, %p183
    %p186 = scmp.ne.s32.totalorder %s171, %s185
    %p187 = scmp.eq.s32.totalorder %s21, 0
    %p188 = por %p186, %p187
    %s190 = sadd.s32 %s189, 1
    %p193 = scmp.eq.s32.totalorder %s15, 3
    %p194 = scmp.ne.s32.totalorder %s189, %s191
    %p195 = scmp.eq.s32.totalorder %s15, 0
    %p196 = por %p194, %p195
    %p197 = scmp.ne.s32.totalorder %s189, %s191
    %p198 = scmp.eq.s32.totalorder %s20, 3
    %p199 = por %p197, %p198
    %p200 = scmp.ne.s32.totalorder %s191, %s192
    %p201 = scmp.eq.s32.totalorder %s20, 0
    %p202 = por %p200, %p201
    %p203 = scmp.ne.s32.totalorder %s191, %s192
    %p204 = scmp.eq.s32.totalorder %s21, 3
    %p205 = por %p203, %p204
    %p207 = scmp.ne.s32.totalorder %s192, %s206
    %p208 = scmp.eq.s32.totalorder %s21, 0
    %p209 = por %p207, %p208
    %s211 = sadd.s32 %s210, 1
    %p214 = scmp.eq.s32.totalorder %s15, 3
    %p215 = scmp.ne.s32.totalorder %s210, %s212
    %p216 = scmp.eq.s32.totalorder %s15, 0
    %p217 = por %p215, %p216
    %p218 = scmp.ne.s32.totalorder %s210, %s212
    %p219 = scmp.eq.s32.totalorder %s20, 3
    %p220 = por %p218, %p219
    %p221 = scmp.ne.s32.totalorder %s212, %s213
    %p222 = scmp.eq.s32.totalorder %s20, 0
    %p223 = por %p221, %p222
    %p224 = scmp.ne.s32.totalorder %s212, %s213
    %p225 = scmp.eq.s32.totalorder %s21, 3
    %p226 = por %p224, %p225
    %p228 = scmp.ne.s32.totalorder %s213, %s227
    %p229 = scmp.eq.s32.totalorder %s21, 0
    %p230 = por %p228, %p229
    %s231 = ssub.s32 %s22, %s34
    %s232 = ssub.s32 %s23, %s30
    %s233 = sor.u32 %s231, %s232
    %p234 = scmp.eq.s32.totalorder %s233, 0
    %s236 = sadd.s32 %s235, 1
    %s237 = scalar_select %p234, %s235, %s236
    %p240 = pneg %p234
    %p241 = scmp.eq.s32.totalorder %s15, 3
    %p242 = por %p240, %p241
    %p243 = scmp.ne.s32.totalorder %s235, %s238
    %p244 = scmp.eq.s32.totalorder %s15, 0
    %p245 = por %p243, %p244
    %p246 = scmp.ne.s32.totalorder %s235, %s238
    %p247 = scmp.eq.s32.totalorder %s20, 3
    %p248 = por %p246, %p247
    %p249 = scmp.ne.s32.totalorder %s238, %s239
    %p250 = scmp.eq.s32.totalorder %s20, 0
    %p251 = por %p249, %p250
    %p252 = scmp.ne.s32.totalorder %s238, %s239
    %p253 = scmp.eq.s32.totalorder %s21, 3
    %p254 = por %p252, %p253
    %p256 = scmp.ne.s32.totalorder %s239, %s255
    %p257 = scmp.eq.s32.totalorder %s21, 0
    %p258 = por %p256, %p257
    %p259 = scmp.le.s32.totalorder 1, %s15
    %p260 = scmp.lt.s32.totalorder %s15, 5
    %p261 = pnand %p259, %p260
    %p262 = pneg %p261
    // Predicated region
    $region9: #{_lambda_.1} parent=5 // pred_check
      _
    $region10: #{_lambda_.1} parent=5 // pred_check_branch
      %264 = sbr.rel (%p261) target = $region12
    $region11: #{_lambda_.1} parent=5 // pred_region
      %s265 = ssub.s32 %s15, 1
      // Predicated region
      $region13: #{_lambda_.1} parent=11 // pred_check
        %p266 = pneg %p76
      $region14: #{_lambda_.1} parent=11 // pred_check_branch
        %268 = sbr.rel (%p266) target = $region16
      $region15: #{_lambda_.1} parent=11 // pred_region
        _
      $region16: #{_lambda_.1} parent=11 // pred_fallthru
        _
      // Predicated region
      $region17: #{_lambda_.1} parent=11 // pred_check
        %p269 = pneg %p97
      $region18: #{_lambda_.1} parent=11 // pred_check_branch
        %271 = sbr.rel (%p269) target = $region20
      $region19: #{_lambda_.1} parent=11 // pred_region
        _
      $region20: #{_lambda_.1} parent=11 // pred_fallthru
        _
      // Predicated region
      $region21: #{_lambda_.1} parent=11 // pred_check
        %p272 = pneg %p118
      $region22: #{_lambda_.1} parent=11 // pred_check_branch
        %274 = sbr.rel (%p272) target = $region24
      $region23: #{_lambda_.1} parent=11 // pred_region
        _
      $region24: #{_lambda_.1} parent=11 // pred_fallthru
        _
      // Predicated region
      $region25: #{_lambda_.1} parent=11 // pred_check
        %p275 = pneg %p139
      $region26: #{_lambda_.1} parent=11 // pred_check_branch
        %277 = sbr.rel (%p275) target = $region28
      $region27: #{_lambda_.1} parent=11 // pred_region
        _
      $region28: #{_lambda_.1} parent=11 // pred_fallthru
        _
      // Predicated region
      $region29: #{_lambda_.1} parent=11 // pred_check
        %p278 = pneg %p160
      $region30: #{_lambda_.1} parent=11 // pred_check_branch
        %280 = sbr.rel (%p278) target = $region32
      $region31: #{_lambda_.1} parent=11 // pred_region
        _
      $region32: #{_lambda_.1} parent=11 // pred_fallthru
        _
      // Predicated region
      $region33: #{_lambda_.1} parent=11 // pred_check
        %p281 = pneg %p181
      $region34: #{_lambda_.1} parent=11 // pred_check_branch
        %283 = sbr.rel (%p281) target = $region36
      $region35: #{_lambda_.1} parent=11 // pred_region
        _
      $region36: #{_lambda_.1} parent=11 // pred_fallthru
        _
      // Predicated region
      $region37: #{_lambda_.1} parent=11 // pred_check
        %p284 = pneg %p202
      $region38: #{_lambda_.1} parent=11 // pred_check_branch
        %286 = sbr.rel (%p284) target = $region40
      $region39: #{_lambda_.1} parent=11 // pred_region
        _
      $region40: #{_lambda_.1} parent=11 // pred_fallthru
        _
      // Predicated region
      $region41: #{_lambda_.1} parent=11 // pred_check
        %p287 = pneg %p223
      $region42: #{_lambda_.1} parent=11 // pred_check_branch
        %289 = sbr.rel (%p287) target = $region44
      $region43: #{_lambda_.1} parent=11 // pred_region
        _
      $region44: #{_lambda_.1} parent=11 // pred_fallthru
        _
    $region12: #{_lambda_.1} parent=5 // pred_fallthru
      _
    %p290 = scmp.lt.s32.totalorder %s15, 4
    // Predicated region
    $region45: #{_lambda_.1} parent=5 // pred_check
      %p291 = pneg %p290
    $region46: #{_lambda_.1} parent=5 // pred_check_branch
      %293 = sbr.rel (%p291) target = $region48
    $region47: #{_lambda_.1} parent=5 // pred_region
      // Predicated region
      $region49: #{_lambda_.1} parent=47 // pred_check
        %p294 = pneg %p49
      $region50: #{_lambda_.1} parent=47 // pred_check_branch
        %296 = sbr.rel (%p294) target = $region52
      $region51: #{_lambda_.1} parent=47 // pred_region
        %s297 = smul.u32 8, %s23
        %p298 = scmp.lt.s32.totalorder %s22, 1
        %s299 = scalar_select %p298, %s22, 1
        %p300 = scmp.lt.s32.totalorder %s297, 15
        %s301 = scalar_select %p300, %s297, 15
        %s302 = smul.addr %s301, 3
        %s303 = smul.addr %s299, 48
        %s304 = sadd.s32 %s302, %s303
        %s305 = smul.addr %s304, 8
        %s306 = scalar_lea.vmem %s0, %s305
        %s307 = smul.u32 8, %s23
      $region52: #{_lambda_.1} parent=47 // pred_fallthru
        _
    $region48: #{_lambda_.1} parent=5 // pred_fallthru
      _
    %p308 = scmp.le.s32.totalorder 1, %s15
    %p309 = scmp.lt.s32.totalorder %s15, 5
    %p310 = pnand %p308, %p309
    %p311 = pneg %p310
    // Predicated region
    $region53: #{_lambda_.1} parent=5 // pred_check
      _
    $region54: #{_lambda_.1} parent=5 // pred_check_branch
      %313 = sbr.rel (%p310) target = $region56
    $region55: #{_lambda_.1} parent=5 // pred_region
      %s314 = ssub.s32 %s15, 1
      %s315 = smul.u32 8, %s25
      %p316 = scmp.lt.s32.totalorder %s24, 1
      %s317 = scalar_select %p316, %s24, 1
      %p318 = scmp.lt.s32.totalorder %s315, 15
      %s319 = scalar_select %p318, %s315, 15
      %s320 = smul.addr %s319, 3
      %s321 = smul.addr %s317, 48
      %s322 = sadd.s32 %s320, %s321
      %s323 = smul.addr %s322, 8
      %s324 = scalar_lea.vmem %s0, %s323
      %p325 = pneg %p55
      %p326 = pneg %p52
      %p327 = pneg %p76
      %p328 = pneg %p73
      %p329 = pneg %p97
      %p330 = pneg %p94
      %p331 = pneg %p118
      %p332 = pneg %p115
      %p333 = pneg %p139
      %p334 = pneg %p136
      %p335 = pneg %p160
      %p336 = pneg %p157
      %p337 = pneg %p181
      %p338 = pneg %p178
      %p339 = pneg %p202
      %p340 = pneg %p199
      %p341 = pneg %p223
      %p342 = pneg %p220
      %p343 = pneg %p251
      %p344 = pneg %p248
      %s345 = smul.u32 16, %s25
      %p346 = scmp.lt.s32.totalorder %s24, 1
      %s347 = scalar_select %p346, %s24, 1
      %p348 = scmp.lt.s32.totalorder %s345, 31
      %s349 = scalar_select %p348, %s345, 31
      %s350 = smul.addr %s347, 32
      %s351 = sadd.s32 %s349, %s350
      %s352 = smul.addr %s351, 8
      %s353 = scalar_lea.vmem %s9, %s352
      %s354 = smul.u32 8, %s25
      %p355 = scmp.lt.s32.totalorder %s24, 1
      %s356 = scalar_select %p355, %s24, 1
      %p357 = scmp.lt.s32.totalorder %s354, 15
      %s358 = scalar_select %p357, %s354, 15
      %s359 = smul.addr %s358, 3
      %s360 = smul.addr %s356, 48
      %s361 = sadd.s32 %s359, %s360
      %s362 = smul.addr %s361, 8
      %s363 = scalar_lea.vmem %s0, %s362
      %s364 = smul.u32 8, %s25
      %s365 = smul.u32 16, %s25
      %p366 = scmp.lt.s32.totalorder %s24, 1
      %s367 = scalar_select %p366, %s24, 1
      %p368 = scmp.lt.s32.totalorder %s365, 31
      %s369 = scalar_select %p368, %s365, 31
      %s370 = smul.addr %s367, 32
      %s371 = sadd.s32 %s369, %s370
      %s372 = smul.addr %s371, 8
      %s373 = scalar_lea.vmem %s9, %s372
      %s374 = smul.u32 16, %s25
      %p375 = scmp.eq.s32.totalorder %s25, 0
      // Predicated region
      $region57: #{_lambda_.1} parent=55 // pred_check
        %p376 = pneg %p375
      $region58: #{_lambda_.1} parent=55 // pred_check_branch
        %378 = sbr.rel (%p376) target = $region60
      $region59: #{_lambda_.1} parent=55 // pred_region
        %vm379 = vcmask 97280
        %380 = vst.msk [vmem:[#allocation2] sm:$0xff] %vm379, 0.0
        %381 = vst.msk [vmem:[#allocation2 + $0x8] sm:$0xff] %vm379, 0.0
        %vm382 = vcmask 93184
        %383 = vst.msk [vmem:[#allocation2 + $0x10] sm:$0xf] %vm382, 0.0
        %384 = vst.msk [vmem:[#allocation2 + $0x18] sm:$0xff] %vm379, 0.0
        %385 = vst.msk [vmem:[#allocation2 + $0x20] sm:$0xff] %vm379, 0.0
        %386 = vst.msk [vmem:[#allocation2 + $0x28] sm:$0xf] %vm382, 0.0
      $region60: #{_lambda_.1} parent=55 // pred_fallthru
        _
      %p387 = scmp.gt.s32.totalorder %s25, 0
      // Predicated region
      $region61: #{_lambda_.1} parent=55 // pred_check
        %p388 = pneg %p387
      $region62: #{_lambda_.1} parent=55 // pred_check_branch
        %390 = sbr.rel (%p388) target = $region64
      $region63: #{_lambda_.1} parent=55 // pred_region
        %s391 = scalar_lea.vmem [#allocation2], 192
        %v392 = vld [vmem:[%s391] sm:$0xff]
        %v393 = vld [vmem:[%s391 + $0x8] sm:$0xff]
        %v394 = vld [vmem:[%s391 + $0x10] sm:$0xf]
        %v395 = vld [vmem:[%s391 + $0x18] sm:$0xff]
        %v396 = vld [vmem:[%s391 + $0x20] sm:$0xff]
        %v397 = vld [vmem:[%s391 + $0x28] sm:$0xf]
        %vm398 = vcmask 97280
        %399 = vst.msk [vmem:[#allocation2] sm:$0xff] %vm398, %v392
        %400 = vst.msk [vmem:[#allocation2 + $0x8] sm:$0xff] %vm398, %v393
        %vm401 = vcmask 93184
        %402 = vst.msk [vmem:[#allocation2 + $0x10] sm:$0xf] %vm401, %v394
        %403 = vst.msk [vmem:[#allocation2 + $0x18] sm:$0xff] %vm398, %v395
        %404 = vst.msk [vmem:[#allocation2 + $0x20] sm:$0xff] %vm398, %v396
        %405 = vst.msk [vmem:[#allocation2 + $0x28] sm:$0xf] %vm401, %v397
      $region64: #{_lambda_.1} parent=55 // pred_fallthru
        _
      %v406 = vld [vmem:[%s363] sm:$0xff]
      %v407 = vld [vmem:[%s363 + $0x8] sm:$0xff]
      %v408 = vld [vmem:[%s363 + $0x10] sm:$0xf]
      %v409 = vld [vmem:[%s363 + $0x18] sm:$0xff]
      %v410 = vld [vmem:[%s363 + $0x20] sm:$0xff]
      %v411 = vld [vmem:[%s363 + $0x28] sm:$0xf]
      %v412 = vld [vmem:[%s363 + $0x30] sm:$0xff]
      %v413 = vld [vmem:[%s363 + $0x38] sm:$0xff]
      %v414 = vld [vmem:[%s363 + $0x40] sm:$0xf]
      %v415 = vld [vmem:[%s363 + $0x48] sm:$0xff]
      %v416 = vld [vmem:[%s363 + $0x50] sm:$0xff]
      %v417 = vld [vmem:[%s363 + $0x58] sm:$0xf]
      %v418 = vld [vmem:[%s363 + $0x60] sm:$0xff]
      %v419 = vld [vmem:[%s363 + $0x68] sm:$0xff]
      %v420 = vld [vmem:[%s363 + $0x70] sm:$0xf]
      %v421 = vld [vmem:[%s363 + $0x78] sm:$0xff]
      %v422 = vld [vmem:[%s363 + $0x80] sm:$0xff]
      %v423 = vld [vmem:[%s363 + $0x88] sm:$0xf]
      %v424 = vld [vmem:[%s363 + $0x90] sm:$0xff]
      %v425 = vld [vmem:[%s363 + $0x98] sm:$0xff]
      %v426 = vld [vmem:[%s363 + $0xa0] sm:$0xf]
      %v427 = vld [vmem:[%s363 + $0xa8] sm:$0xff]
      %v428 = vld [vmem:[%s363 + $0xb0] sm:$0xff]
      %v429 = vld [vmem:[%s363 + $0xb8] sm:$0xf]
      %s430 = scalar_lea.vmem [#allocation2], 48
      %vm431 = vcmask 97280
      %432 = vst.msk [vmem:[%s430] sm:$0xff] %vm431, %v406
      %433 = vst.msk [vmem:[%s430 + $0x8] sm:$0xff] %vm431, %v407
      %vm434 = vcmask 93184
      %435 = vst.msk [vmem:[%s430 + $0x10] sm:$0xf] %vm434, %v408
      %436 = vst.msk [vmem:[%s430 + $0x18] sm:$0xff] %vm431, %v409
      %437 = vst.msk [vmem:[%s430 + $0x20] sm:$0xff] %vm431, %v410
      %438 = vst.msk [vmem:[%s430 + $0x28] sm:$0xf] %vm434, %v411
      %439 = vst.msk [vmem:[%s430 + $0x30] sm:$0xff] %vm431, %v412
      %440 = vst.msk [vmem:[%s430 + $0x38] sm:$0xff] %vm431, %v413
      %441 = vst.msk [vmem:[%s430 + $0x40] sm:$0xf] %vm434, %v414
      %442 = vst.msk [vmem:[%s430 + $0x48] sm:$0xff] %vm431, %v415
      %443 = vst.msk [vmem:[%s430 + $0x50] sm:$0xff] %vm431, %v416
      %444 = vst.msk [vmem:[%s430 + $0x58] sm:$0xf] %vm434, %v417
      %445 = vst.msk [vmem:[%s430 + $0x60] sm:$0xff] %vm431, %v418
      %446 = vst.msk [vmem:[%s430 + $0x68] sm:$0xff] %vm431, %v419
      %447 = vst.msk [vmem:[%s430 + $0x70] sm:$0xf] %vm434, %v420
      %448 = vst.msk [vmem:[%s430 + $0x78] sm:$0xff] %vm431, %v421
      %449 = vst.msk [vmem:[%s430 + $0x80] sm:$0xff] %vm431, %v422
      %450 = vst.msk [vmem:[%s430 + $0x88] sm:$0xf] %vm434, %v423
      %451 = vst.msk [vmem:[%s430 + $0x90] sm:$0xff] %vm431, %v424
      %452 = vst.msk [vmem:[%s430 + $0x98] sm:$0xff] %vm431, %v425
      %453 = vst.msk [vmem:[%s430 + $0xa0] sm:$0xf] %vm434, %v426
      %454 = vst.msk [vmem:[%s430 + $0xa8] sm:$0xff] %vm431, %v427
      %455 = vst.msk [vmem:[%s430 + $0xb0] sm:$0xff] %vm431, %v428
      %456 = vst.msk [vmem:[%s430 + $0xb8] sm:$0xf] %vm434, %v429
      %v457 = vld [vmem:[#allocation2] sm:$0xff]
      %v458 = vld [vmem:[#allocation2 + $0x8] sm:$0xff]
      %v459 = vld [vmem:[#allocation2 + $0x10] sm:$0xf]
      %v460 = vld [vmem:[#allocation2 + $0x18] sm:$0xff]
      %v461 = vld [vmem:[#allocation2 + $0x20] sm:$0xff]
      %v462 = vld [vmem:[#allocation2 + $0x28] sm:$0xf]
      %v463 = vld [vmem:[#allocation2 + $0x30] sm:$0xff]
      %v464 = vld [vmem:[#allocation2 + $0x38] sm:$0xff]
      %v465 = vld [vmem:[#allocation2 + $0x40] sm:$0xf]
      %v466 = vld [vmem:[#allocation2 + $0x48] sm:$0xff]
      %v467 = vld [vmem:[#allocation2 + $0x50] sm:$0xff]
      %v468 = vld [vmem:[#allocation2 + $0x58] sm:$0xf]
      %v469 = vld [vmem:[#allocation2 + $0x60] sm:$0xff]
      %v470 = vld [vmem:[#allocation2 + $0x68] sm:$0xff]
      %v471 = vld [vmem:[#allocation2 + $0x70] sm:$0xf]
      %v472 = vld [vmem:[#allocation2 + $0x78] sm:$0xff]
      %v473 = vld [vmem:[#allocation2 + $0x80] sm:$0xff]
      %v474 = vld [vmem:[#allocation2 + $0x88] sm:$0xf]
      %v475 = vld [vmem:[#allocation2 + $0x90] sm:$0xff]
      %v476 = vld [vmem:[#allocation2 + $0x98] sm:$0xff]
      %v477 = vld [vmem:[#allocation2 + $0xa0] sm:$0xf]
      %v478 = vld [vmem:[#allocation2 + $0xa8] sm:$0xff]
      %v479 = vld [vmem:[#allocation2 + $0xb0] sm:$0xff]
      %v480 = vld [vmem:[#allocation2 + $0xb8] sm:$0xf]
      %v481 = vld [vmem:[#allocation2 + $0xc0] sm:$0xff]
      %v482 = vld [vmem:[#allocation2 + $0xc8] sm:$0xff]
      %v483 = vld [vmem:[#allocation2 + $0xd0] sm:$0xf]
      %v484 = vld [vmem:[#allocation2 + $0xd8] sm:$0xff]
      %v485 = vld [vmem:[#allocation2 + $0xe0] sm:$0xff]
      %v486 = vld [vmem:[#allocation2 + $0xe8] sm:$0xf]
      %v487 = vld [vmem:[%s1] sm:$0xff]
      %v488 = vld [vmem:[%s1 + $0x8] sm:$0xf]
      %vm513 = vcmask 1046528
      %v514 = vrot.slane %v457, 1
      %v515 = vrot.slane %v458, 1
      %v516 = vsel %vm513, %v514, %v515
      %v517 = vrot.slane %v459, 1
      %v518 = vsel %vm513, %v515, %v517
      %v519 = vrot.slane %v460, 1
      %v520 = vrot.slane %v461, 1
      %v521 = vsel %vm513, %v519, %v520
      %v522 = vrot.slane %v462, 1
      %v523 = vsel %vm513, %v520, %v522
      %v524 = vrot.slane %v463, 1
      %v525 = vrot.slane %v464, 1
      %v526 = vsel %vm513, %v524, %v525
      %v527 = vrot.slane %v465, 1
      %v528 = vsel %vm513, %v525, %v527
      %v529 = vrot.slane %v466, 1
      %v530 = vrot.slane %v467, 1
      %v531 = vsel %vm513, %v529, %v530
      %v532 = vrot.slane %v468, 1
      %v533 = vsel %vm513, %v530, %v532
      %v534 = vrot.slane %v469, 1
      %v535 = vrot.slane %v470, 1
      %v536 = vsel %vm513, %v534, %v535
      %v537 = vrot.slane %v471, 1
      %v538 = vsel %vm513, %v535, %v537
      %v539 = vrot.slane %v472, 1
      %v540 = vrot.slane %v473, 1
      %v541 = vsel %vm513, %v539, %v540
      %v542 = vrot.slane %v474, 1
      %v543 = vsel %vm513, %v540, %v542
      %v544 = vrot.slane %v475, 1
      %v545 = vrot.slane %v476, 1
      %v546 = vsel %vm513, %v544, %v545
      %v547 = vrot.slane %v477, 1
      %v548 = vsel %vm513, %v545, %v547
      %v549 = vrot.slane %v478, 1
      %v550 = vrot.slane %v479, 1
      %v551 = vsel %vm513, %v549, %v550
      %v552 = vrot.slane %v480, 1
      %v553 = vsel %vm513, %v550, %v552
      %s554 = scalar_lea.vmem %s1, 16
      %v555 = vld [vmem:[%s554] sm:$0xff]
      %v556 = vld [vmem:[%s554 + $0x8] sm:$0xf]
      %v557 = vsel %vm431, %v516, 0
      %v559 = vsel %vm431, %v518, 0
      %v561 = vsel %vm431, %v521, 0
      %v563 = vsel %vm431, %v523, 0
      %v565 = vsel %vm431, %v526, 0
      %v567 = vsel %vm431, %v528, 0
      %v569 = vsel %vm431, %v531, 0
      %v571 = vsel %vm431, %v533, 0
      %v573 = vsel %vm431, %v536, 0
      %v575 = vsel %vm431, %v538, 0
      %v577 = vsel %vm431, %v541, 0
      %v579 = vsel %vm431, %v543, 0
      %v581 = vsel %vm431, %v546, 0
      %v583 = vsel %vm431, %v548, 0
      %v585 = vsel %vm431, %v551, 0
      %v587 = vsel %vm431, %v553, 0
      %vm589 = vcmask 1043456
      %v591 = vsel %vm589, %v556, 0
      %593 = vmatpush.msra.mxu0 0.0
      %594 = vmatpush.msra.mxu0 0.0
      %595 = vmatpush.msra.mxu0 0.0
      %596 = vmatpush.msra.mxu0 0.0
      %597 = vmatpush.msra.mxu0 0.0
      %598 = vmatpush.msra.mxu0 0.0
      %599 = vmatpush.msra.mxu0 0.0
      %600 = vmatpush.msra.mxu0 0.0
      %601 = vmatpush.msra.mxu0 0.0
      %602 = vmatpush.msra.mxu0 0.0
      %603 = vmatpush.msra.mxu0 0.0
      %604 = vmatpush.msra.mxu0 0.0
      %605 = vmatpush.msra.mxu0 0.0
      %606 = vmatpush.msra.mxu0 0.0
      %607 = vmatpush.msra.mxu0 %v591
      %608 = vmatpush.msra.mxu0 %v555
      %609 = vmatmul.f32.gmra.mxu0 %v557
      %v610 = vpop.f32.mrf.mxu0
      %v611 = vadd.f32 0.0, %v610
      %612 = vmatmul.f32.gmra.mxu0 %v559
      %v613 = vpop.f32.mrf.mxu0
      %v614 = vadd.f32 0.0, %v613
      %615 = vmatmul.f32.gmra.mxu0 %v561
      %v616 = vpop.f32.mrf.mxu0
      %v617 = vadd.f32 0.0, %v616
      %618 = vmatmul.f32.gmra.mxu0 %v563
      %v619 = vpop.f32.mrf.mxu0
      %v620 = vadd.f32 0.0, %v619
      %621 = vmatmul.f32.gmra.mxu0 %v565
      %v622 = vpop.f32.mrf.mxu0
      %v623 = vadd.f32 0.0, %v622
      %624 = vmatmul.f32.gmra.mxu0 %v567
      %v625 = vpop.f32.mrf.mxu0
      %v626 = vadd.f32 0.0, %v625
      %627 = vmatmul.f32.gmra.mxu0 %v569
      %v628 = vpop.f32.mrf.mxu0
      %v629 = vadd.f32 0.0, %v628
      %630 = vmatmul.f32.gmra.mxu0 %v571
      %v631 = vpop.f32.mrf.mxu0
      %v632 = vadd.f32 0.0, %v631
      %633 = vmatmul.f32.gmra.mxu0 %v573
      %v634 = vpop.f32.mrf.mxu0
      %v635 = vadd.f32 0.0, %v634
      %636 = vmatmul.f32.gmra.mxu0 %v575
      %v637 = vpop.f32.mrf.mxu0
      %v638 = vadd.f32 0.0, %v637
      %639 = vmatmul.f32.gmra.mxu0 %v577
      %v640 = vpop.f32.mrf.mxu0
      %v641 = vadd.f32 0.0, %v640
      %642 = vmatmul.f32.gmra.mxu0 %v579
      %v643 = vpop.f32.mrf.mxu0
      %v644 = vadd.f32 0.0, %v643
      %645 = vmatmul.f32.gmra.mxu0 %v581
      %v646 = vpop.f32.mrf.mxu0
      %v647 = vadd.f32 0.0, %v646
      %648 = vmatmul.f32.gmra.mxu0 %v583
      %v649 = vpop.f32.mrf.mxu0
      %v650 = vadd.f32 0.0, %v649
      %651 = vmatmul.f32.gmra.mxu0 %v585
      %v652 = vpop.f32.mrf.mxu0
      %v653 = vadd.f32 0.0, %v652
      %654 = vmatmul.f32.gmra.mxu0 %v587
      %v655 = vpop.f32.mrf.mxu0
      %v656 = vadd.f32 0.0, %v655
      %657 = vdwg.mxu0
      %v658 = vsel %vm431, %v457, 0
      %v660 = vsel %vm431, %v458, 0
      %v662 = vsel %vm431, %v460, 0
      %v664 = vsel %vm431, %v461, 0
      %v666 = vsel %vm431, %v463, 0
      %v668 = vsel %vm431, %v464, 0
      %v670 = vsel %vm431, %v466, 0
      %v672 = vsel %vm431, %v467, 0
      %v674 = vsel %vm431, %v469, 0
      %v676 = vsel %vm431, %v470, 0
      %v678 = vsel %vm431, %v472, 0
      %v680 = vsel %vm431, %v473, 0
      %v682 = vsel %vm431, %v475, 0
      %v684 = vsel %vm431, %v476, 0
      %v686 = vsel %vm431, %v478, 0
      %v688 = vsel %vm431, %v479, 0
      %v691 = vsel %vm589, %v488, 0
      %693 = vmatpush.msra.mxu0 0.0
      %694 = vmatpush.msra.mxu0 0.0
      %695 = vmatpush.msra.mxu0 0.0
      %696 = vmatpush.msra.mxu0 0.0
      %697 = vmatpush.msra.mxu0 0.0
      %698 = vmatpush.msra.mxu0 0.0
      %699 = vmatpush.msra.mxu0 0.0
      %700 = vmatpush.msra.mxu0 0.0
      %701 = vmatpush.msra.mxu0 0.0
      %702 = vmatpush.msra.mxu0 0.0
      %703 = vmatpush.msra.mxu0 0.0
      %704 = vmatpush.msra.mxu0 0.0
      %705 = vmatpush.msra.mxu0 0.0
      %706 = vmatpush.msra.mxu0 0.0
      %707 = vmatpush.msra.mxu0 %v691
      %708 = vmatpush.msra.mxu0 %v487
      %709 = vmatmul.f32.gmra.mxu0 %v658
      %v710 = vpop.f32.mrf.mxu0
      %v711 = vadd.f32 %v611, %v710
      %712 = vmatmul.f32.gmra.mxu0 %v660
      %v713 = vpop.f32.mrf.mxu0
      %v714 = vadd.f32 %v614, %v713
      %715 = vmatmul.f32.gmra.mxu0 %v662
      %v716 = vpop.f32.mrf.mxu0
      %v717 = vadd.f32 %v617, %v716
      %718 = vmatmul.f32.gmra.mxu0 %v664
      %v719 = vpop.f32.mrf.mxu0
      %v720 = vadd.f32 %v620, %v719
      %721 = vmatmul.f32.gmra.mxu0 %v666
      %v722 = vpop.f32.mrf.mxu0
      %v723 = vadd.f32 %v623, %v722
      %724 = vmatmul.f32.gmra.mxu0 %v668
      %v725 = vpop.f32.mrf.mxu0
      %v726 = vadd.f32 %v626, %v725
      %727 = vmatmul.f32.gmra.mxu0 %v670
      %v728 = vpop.f32.mrf.mxu0
      %v729 = vadd.f32 %v629, %v728
      %730 = vmatmul.f32.gmra.mxu0 %v672
      %v731 = vpop.f32.mrf.mxu0
      %v732 = vadd.f32 %v632, %v731
      %733 = vmatmul.f32.gmra.mxu0 %v674
      %v734 = vpop.f32.mrf.mxu0
      %v735 = vadd.f32 %v635, %v734
      %736 = vmatmul.f32.gmra.mxu0 %v676
      %v737 = vpop.f32.mrf.mxu0
      %v738 = vadd.f32 %v638, %v737
      %739 = vmatmul.f32.gmra.mxu0 %v678
      %v740 = vpop.f32.mrf.mxu0
      %v741 = vadd.f32 %v641, %v740
      %742 = vmatmul.f32.gmra.mxu0 %v680
      %v743 = vpop.f32.mrf.mxu0
      %v744 = vadd.f32 %v644, %v743
      %745 = vmatmul.f32.gmra.mxu0 %v682
      %v746 = vpop.f32.mrf.mxu0
      %v747 = vadd.f32 %v647, %v746
      %748 = vmatmul.f32.gmra.mxu0 %v684
      %v749 = vpop.f32.mrf.mxu0
      %v750 = vadd.f32 %v650, %v749
      %751 = vmatmul.f32.gmra.mxu0 %v686
      %v752 = vpop.f32.mrf.mxu0
      %v753 = vadd.f32 %v653, %v752
      %754 = vmatmul.f32.gmra.mxu0 %v688
      %v755 = vpop.f32.mrf.mxu0
      %v756 = vadd.f32 %v656, %v755
      %757 = vdwg.mxu0
      %vm758 = vcmask 1045504
      %v759 = vrot.slane %v457, 2
      %v760 = vrot.slane %v458, 2
      %v761 = vsel %vm758, %v759, %v760
      %v762 = vrot.slane %v459, 2
      %v763 = vsel %vm758, %v760, %v762
      %v764 = vrot.slane %v460, 2
      %v765 = vrot.slane %v461, 2
      %v766 = vsel %vm758, %v764, %v765
      %v767 = vrot.slane %v462, 2
      %v768 = vsel %vm758, %v765, %v767
      %v769 = vrot.slane %v463, 2
      %v770 = vrot.slane %v464, 2
      %v771 = vsel %vm758, %v769, %v770
      %v772 = vrot.slane %v465, 2
      %v773 = vsel %vm758, %v770, %v772
      %v774 = vrot.slane %v466, 2
      %v775 = vrot.slane %v467, 2
      %v776 = vsel %vm758, %v774, %v775
      %v777 = vrot.slane %v468, 2
      %v778 = vsel %vm758, %v775, %v777
      %v779 = vrot.slane %v469, 2
      %v780 = vrot.slane %v470, 2
      %v781 = vsel %vm758, %v779, %v780
      %v782 = vrot.slane %v471, 2
      %v783 = vsel %vm758, %v780, %v782
      %v784 = vrot.slane %v472, 2
      %v785 = vrot.slane %v473, 2
      %v786 = vsel %vm758, %v784, %v785
      %v787 = vrot.slane %v474, 2
      %v788 = vsel %vm758, %v785, %v787
      %v789 = vrot.slane %v475, 2
      %v790 = vrot.slane %v476, 2
      %v791 = vsel %vm758, %v789, %v790
      %v792 = vrot.slane %v477, 2
      %v793 = vsel %vm758, %v790, %v792
      %v794 = vrot.slane %v478, 2
      %v795 = vrot.slane %v479, 2
      %v796 = vsel %vm758, %v794, %v795
      %v797 = vrot.slane %v480, 2
      %v798 = vsel %vm758, %v795, %v797
      %s799 = scalar_lea.vmem %s1, 32
      %v800 = vld [vmem:[%s799] sm:$0xff]
      %v801 = vld [vmem:[%s799 + $0x8] sm:$0xf]
      %v802 = vsel %vm431, %v761, 0
      %v804 = vsel %vm431, %v763, 0
      %v806 = vsel %vm431, %v766, 0
      %v808 = vsel %vm431, %v768, 0
      %v810 = vsel %vm431, %v771, 0
      %v812 = vsel %vm431, %v773, 0
      %v814 = vsel %vm431, %v776, 0
      %v816 = vsel %vm431, %v778, 0
      %v818 = vsel %vm431, %v781, 0
      %v820 = vsel %vm431, %v783, 0
      %v822 = vsel %vm431, %v786, 0
      %v824 = vsel %vm431, %v788, 0
      %v826 = vsel %vm431, %v791, 0
      %v828 = vsel %vm431, %v793, 0
      %v830 = vsel %vm431, %v796, 0
      %v832 = vsel %vm431, %v798, 0
      %v835 = vsel %vm589, %v801, 0
      %837 = vmatpush.msra.mxu0 0.0
      %838 = vmatpush.msra.mxu0 0.0
      %839 = vmatpush.msra.mxu0 0.0
      %840 = vmatpush.msra.mxu0 0.0
      %841 = vmatpush.msra.mxu0 0.0
      %842 = vmatpush.msra.mxu0 0.0
      %843 = vmatpush.msra.mxu0 0.0
      %844 = vmatpush.msra.mxu0 0.0
      %845 = vmatpush.msra.mxu0 0.0
      %846 = vmatpush.msra.mxu0 0.0
      %847 = vmatpush.msra.mxu0 0.0
      %848 = vmatpush.msra.mxu0 0.0
      %849 = vmatpush.msra.mxu0 0.0
      %850 = vmatpush.msra.mxu0 0.0
      %851 = vmatpush.msra.mxu0 %v835
      %852 = vmatpush.msra.mxu0 %v800
      %853 = vmatmul.f32.gmra.mxu0 %v802
      %v854 = vpop.f32.mrf.mxu0
      %v855 = vadd.f32 0.0, %v854
      %856 = vmatmul.f32.gmra.mxu0 %v804
      %v857 = vpop.f32.mrf.mxu0
      %v858 = vadd.f32 0.0, %v857
      %859 = vmatmul.f32.gmra.mxu0 %v806
      %v860 = vpop.f32.mrf.mxu0
      %v861 = vadd.f32 0.0, %v860
      %862 = vmatmul.f32.gmra.mxu0 %v808
      %v863 = vpop.f32.mrf.mxu0
      %v864 = vadd.f32 0.0, %v863
      %865 = vmatmul.f32.gmra.mxu0 %v810
      %v866 = vpop.f32.mrf.mxu0
      %v867 = vadd.f32 0.0, %v866
      %868 = vmatmul.f32.gmra.mxu0 %v812
      %v869 = vpop.f32.mrf.mxu0
      %v870 = vadd.f32 0.0, %v869
      %871 = vmatmul.f32.gmra.mxu0 %v814
      %v872 = vpop.f32.mrf.mxu0
      %v873 = vadd.f32 0.0, %v872
      %874 = vmatmul.f32.gmra.mxu0 %v816
      %v875 = vpop.f32.mrf.mxu0
      %v876 = vadd.f32 0.0, %v875
      %877 = vmatmul.f32.gmra.mxu0 %v818
      %v878 = vpop.f32.mrf.mxu0
      %v879 = vadd.f32 0.0, %v878
      %880 = vmatmul.f32.gmra.mxu0 %v820
      %v881 = vpop.f32.mrf.mxu0
      %v882 = vadd.f32 0.0, %v881
      %883 = vmatmul.f32.gmra.mxu0 %v822
      %v884 = vpop.f32.mrf.mxu0
      %v885 = vadd.f32 0.0, %v884
      %886 = vmatmul.f32.gmra.mxu0 %v824
      %v887 = vpop.f32.mrf.mxu0
      %v888 = vadd.f32 0.0, %v887
      %889 = vmatmul.f32.gmra.mxu0 %v826
      %v890 = vpop.f32.mrf.mxu0
      %v891 = vadd.f32 0.0, %v890
      %892 = vmatmul.f32.gmra.mxu0 %v828
      %v893 = vpop.f32.mrf.mxu0
      %v894 = vadd.f32 0.0, %v893
      %895 = vmatmul.f32.gmra.mxu0 %v830
      %v896 = vpop.f32.mrf.mxu0
      %v897 = vadd.f32 0.0, %v896
      %898 = vmatmul.f32.gmra.mxu0 %v832
      %v899 = vpop.f32.mrf.mxu0
      %v900 = vadd.f32 0.0, %v899
      %901 = vdwg.mxu0
      %v902 = vadd.f32 %v711, %v855
      %v903 = vadd.f32 %v714, %v858
      %v904 = vadd.f32 %v717, %v861
      %v905 = vadd.f32 %v720, %v864
      %v906 = vadd.f32 %v723, %v867
      %v907 = vadd.f32 %v726, %v870
      %v908 = vadd.f32 %v729, %v873
      %v909 = vadd.f32 %v732, %v876
      %v910 = vadd.f32 %v735, %v879
      %v911 = vadd.f32 %v738, %v882
      %v912 = vadd.f32 %v741, %v885
      %v913 = vadd.f32 %v744, %v888
      %v914 = vadd.f32 %v747, %v891
      %v915 = vadd.f32 %v750, %v894
      %v916 = vadd.f32 %v753, %v897
      %v917 = vadd.f32 %v756, %v900
      %vm918 = vcmask 1044480
      %v919 = vrot.slane %v457, 3
      %v920 = vrot.slane %v458, 3
      %v921 = vsel %vm918, %v919, %v920
      %v922 = vrot.slane %v459, 3
      %v923 = vsel %vm918, %v920, %v922
      %v924 = vrot.slane %v460, 3
      %v925 = vrot.slane %v461, 3
      %v926 = vsel %vm918, %v924, %v925
      %v927 = vrot.slane %v462, 3
      %v928 = vsel %vm918, %v925, %v927
      %v929 = vrot.slane %v463, 3
      %v930 = vrot.slane %v464, 3
      %v931 = vsel %vm918, %v929, %v930
      %v932 = vrot.slane %v465, 3
      %v933 = vsel %vm918, %v930, %v932
      %v934 = vrot.slane %v466, 3
      %v935 = vrot.slane %v467, 3
      %v936 = vsel %vm918, %v934, %v935
      %v937 = vrot.slane %v468, 3
      %v938 = vsel %vm918, %v935, %v937
      %v939 = vrot.slane %v469, 3
      %v940 = vrot.slane %v470, 3
      %v941 = vsel %vm918, %v939, %v940
      %v942 = vrot.slane %v471, 3
      %v943 = vsel %vm918, %v940, %v942
      %v944 = vrot.slane %v472, 3
      %v945 = vrot.slane %v473, 3
      %v946 = vsel %vm918, %v944, %v945
      %v947 = vrot.slane %v474, 3
      %v948 = vsel %vm918, %v945, %v947
      %v949 = vrot.slane %v475, 3
      %v950 = vrot.slane %v476, 3
      %v951 = vsel %vm918, %v949, %v950
      %v952 = vrot.slane %v477, 3
      %v953 = vsel %vm918, %v950, %v952
      %v954 = vrot.slane %v478, 3
      %v955 = vrot.slane %v479, 3
      %v956 = vsel %vm918, %v954, %v955
      %v957 = vrot.slane %v480, 3
      %v958 = vsel %vm918, %v955, %v957
      %s959 = scalar_lea.vmem %s1, 48
      %v960 = vld [vmem:[%s959] sm:$0xff]
      %v961 = vld [vmem:[%s959 + $0x8] sm:$0xf]
      %v962 = vsel %vm431, %v921, 0
      %v964 = vsel %vm431, %v923, 0
      %v966 = vsel %vm431, %v926, 0
      %v968 = vsel %vm431, %v928, 0
      %v970 = vsel %vm431, %v931, 0
      %v972 = vsel %vm431, %v933, 0
      %v974 = vsel %vm431, %v936, 0
      %v976 = vsel %vm431, %v938, 0
      %v978 = vsel %vm431, %v941, 0
      %v980 = vsel %vm431, %v943, 0
      %v982 = vsel %vm431, %v946, 0
      %v984 = vsel %vm431, %v948, 0
      %v986 = vsel %vm431, %v951, 0
      %v988 = vsel %vm431, %v953, 0
      %v990 = vsel %vm431, %v956, 0
      %v992 = vsel %vm431, %v958, 0
      %v995 = vsel %vm589, %v961, 0
      %997 = vmatpush.msra.mxu0 0.0
      %998 = vmatpush.msra.mxu0 0.0
      %999 = vmatpush.msra.mxu0 0.0
      %1000 = vmatpush.msra.mxu0 0.0
      %1001 = vmatpush.msra.mxu0 0.0
      %1002 = vmatpush.msra.mxu0 0.0
      %1003 = vmatpush.msra.mxu0 0.0
      %1004 = vmatpush.msra.mxu0 0.0
      %1005 = vmatpush.msra.mxu0 0.0
      %1006 = vmatpush.msra.mxu0 0.0
      %1007 = vmatpush.msra.mxu0 0.0
      %1008 = vmatpush.msra.mxu0 0.0
      %1009 = vmatpush.msra.mxu0 0.0
      %1010 = vmatpush.msra.mxu0 0.0
      %1011 = vmatpush.msra.mxu0 %v995
      %1012 = vmatpush.msra.mxu0 %v960
      %1013 = vmatmul.f32.gmra.mxu0 %v962
      %v1014 = vpop.f32.mrf.mxu0
      %v1015 = vadd.f32 0.0, %v1014
      %1016 = vmatmul.f32.gmra.mxu0 %v964
      %v1017 = vpop.f32.mrf.mxu0
      %v1018 = vadd.f32 0.0, %v1017
      %1019 = vmatmul.f32.gmra.mxu0 %v966
      %v1020 = vpop.f32.mrf.mxu0
      %v1021 = vadd.f32 0.0, %v1020
      %1022 = vmatmul.f32.gmra.mxu0 %v968
      %v1023 = vpop.f32.mrf.mxu0
      %v1024 = vadd.f32 0.0, %v1023
      %1025 = vmatmul.f32.gmra.mxu0 %v970
      %v1026 = vpop.f32.mrf.mxu0
      %v1027 = vadd.f32 0.0, %v1026
      %1028 = vmatmul.f32.gmra.mxu0 %v972
      %v1029 = vpop.f32.mrf.mxu0
      %v1030 = vadd.f32 0.0, %v1029
      %1031 = vmatmul.f32.gmra.mxu0 %v974
      %v1032 = vpop.f32.mrf.mxu0
      %v1033 = vadd.f32 0.0, %v1032
      %1034 = vmatmul.f32.gmra.mxu0 %v976
      %v1035 = vpop.f32.mrf.mxu0
      %v1036 = vadd.f32 0.0, %v1035
      %1037 = vmatmul.f32.gmra.mxu0 %v978
      %v1038 = vpop.f32.mrf.mxu0
      %v1039 = vadd.f32 0.0, %v1038
      %1040 = vmatmul.f32.gmra.mxu0 %v980
      %v1041 = vpop.f32.mrf.mxu0
      %v1042 = vadd.f32 0.0, %v1041
      %1043 = vmatmul.f32.gmra.mxu0 %v982
      %v1044 = vpop.f32.mrf.mxu0
      %v1045 = vadd.f32 0.0, %v1044
      %1046 = vmatmul.f32.gmra.mxu0 %v984
      %v1047 = vpop.f32.mrf.mxu0
      %v1048 = vadd.f32 0.0, %v1047
      %1049 = vmatmul.f32.gmra.mxu0 %v986
      %v1050 = vpop.f32.mrf.mxu0
      %v1051 = vadd.f32 0.0, %v1050
      %1052 = vmatmul.f32.gmra.mxu0 %v988
      %v1053 = vpop.f32.mrf.mxu0
      %v1054 = vadd.f32 0.0, %v1053
      %1055 = vmatmul.f32.gmra.mxu0 %v990
      %v1056 = vpop.f32.mrf.mxu0
      %v1057 = vadd.f32 0.0, %v1056
      %1058 = vmatmul.f32.gmra.mxu0 %v992
      %v1059 = vpop.f32.mrf.mxu0
      %v1060 = vadd.f32 0.0, %v1059
      %1061 = vdwg.mxu0
      %v1062 = vadd.f32 %v902, %v1015
      %v1063 = vadd.f32 %v903, %v1018
      %v1064 = vadd.f32 %v904, %v1021
      %v1065 = vadd.f32 %v905, %v1024
      %v1066 = vadd.f32 %v906, %v1027
      %v1067 = vadd.f32 %v907, %v1030
      %v1068 = vadd.f32 %v908, %v1033
      %v1069 = vadd.f32 %v909, %v1036
      %v1070 = vadd.f32 %v910, %v1039
      %v1071 = vadd.f32 %v911, %v1042
      %v1072 = vadd.f32 %v912, %v1045
      %v1073 = vadd.f32 %v913, %v1048
      %v1074 = vadd.f32 %v914, %v1051
      %v1075 = vadd.f32 %v915, %v1054
      %v1076 = vadd.f32 %v916, %v1057
      %v1077 = vadd.f32 %v917, %v1060
      %v1078 = vrot.slane %v457, 4
      %v1079 = vrot.slane %v458, 4
      %v1080 = vsel %vm589, %v1078, %v1079
      %v1081 = vrot.slane %v459, 4
      %v1082 = vsel %vm589, %v1079, %v1081
      %v1083 = vrot.slane %v460, 4
      %v1084 = vrot.slane %v461, 4
      %v1085 = vsel %vm589, %v1083, %v1084
      %v1086 = vrot.slane %v462, 4
      %v1087 = vsel %vm589, %v1084, %v1086
      %v1088 = vrot.slane %v463, 4
      %v1089 = vrot.slane %v464, 4
      %v1090 = vsel %vm589, %v1088, %v1089
      %v1091 = vrot.slane %v465, 4
      %v1092 = vsel %vm589, %v1089, %v1091
      %v1093 = vrot.slane %v466, 4
      %v1094 = vrot.slane %v467, 4
      %v1095 = vsel %vm589, %v1093, %v1094
      %v1096 = vrot.slane %v468, 4
      %v1097 = vsel %vm589, %v1094, %v1096
      %v1098 = vrot.slane %v469, 4
      %v1099 = vrot.slane %v470, 4
      %v1100 = vsel %vm589, %v1098, %v1099
      %v1101 = vrot.slane %v471, 4
      %v1102 = vsel %vm589, %v1099, %v1101
      %v1103 = vrot.slane %v472, 4
      %v1104 = vrot.slane %v473, 4
      %v1105 = vsel %vm589, %v1103, %v1104
      %v1106 = vrot.slane %v474, 4
      %v1107 = vsel %vm589, %v1104, %v1106
      %v1108 = vrot.slane %v475, 4
      %v1109 = vrot.slane %v476, 4
      %v1110 = vsel %vm589, %v1108, %v1109
      %v1111 = vrot.slane %v477, 4
      %v1112 = vsel %vm589, %v1109, %v1111
      %v1113 = vrot.slane %v478, 4
      %v1114 = vrot.slane %v479, 4
      %v1115 = vsel %vm589, %v1113, %v1114
      %v1116 = vrot.slane %v480, 4
      %v1117 = vsel %vm589, %v1114, %v1116
      %s1118 = scalar_lea.vmem %s1, 64
      %v1119 = vld [vmem:[%s1118] sm:$0xff]
      %v1120 = vld [vmem:[%s1118 + $0x8] sm:$0xf]
      %v1121 = vsel %vm431, %v1080, 0
      %v1123 = vsel %vm431, %v1082, 0
      %v1125 = vsel %vm431, %v1085, 0
      %v1127 = vsel %vm431, %v1087, 0
      %v1129 = vsel %vm431, %v1090, 0
      %v1131 = vsel %vm431, %v1092, 0
      %v1133 = vsel %vm431, %v1095, 0
      %v1135 = vsel %vm431, %v1097, 0
      %v1137 = vsel %vm431, %v1100, 0
      %v1139 = vsel %vm431, %v1102, 0
      %v1141 = vsel %vm431, %v1105, 0
      %v1143 = vsel %vm431, %v1107, 0
      %v1145 = vsel %vm431, %v1110, 0
      %v1147 = vsel %vm431, %v1112, 0
      %v1149 = vsel %vm431, %v1115, 0
      %v1151 = vsel %vm431, %v1117, 0
      %v1154 = vsel %vm589, %v1120, 0
      %1156 = vmatpush.msra.mxu0 0.0
      %1157 = vmatpush.msra.mxu0 0.0
      %1158 = vmatpush.msra.mxu0 0.0
      %1159 = vmatpush.msra.mxu0 0.0
      %1160 = vmatpush.msra.mxu0 0.0
      %1161 = vmatpush.msra.mxu0 0.0
      %1162 = vmatpush.msra.mxu0 0.0
      %1163 = vmatpush.msra.mxu0 0.0
      %1164 = vmatpush.msra.mxu0 0.0
      %1165 = vmatpush.msra.mxu0 0.0
      %1166 = vmatpush.msra.mxu0 0.0
      %1167 = vmatpush.msra.mxu0 0.0
      %1168 = vmatpush.msra.mxu0 0.0
      %1169 = vmatpush.msra.mxu0 0.0
      %1170 = vmatpush.msra.mxu0 %v1154
      %1171 = vmatpush.msra.mxu0 %v1119
      %1172 = vmatmul.f32.gmra.mxu0 %v1121
      %v1173 = vpop.f32.mrf.mxu0
      %v1174 = vadd.f32 0.0, %v1173
      %1175 = vmatmul.f32.gmra.mxu0 %v1123
      %v1176 = vpop.f32.mrf.mxu0
      %v1177 = vadd.f32 0.0, %v1176
      %1178 = vmatmul.f32.gmra.mxu0 %v1125
      %v1179 = vpop.f32.mrf.mxu0
      %v1180 = vadd.f32 0.0, %v1179
      %1181 = vmatmul.f32.gmra.mxu0 %v1127
      %v1182 = vpop.f32.mrf.mxu0
      %v1183 = vadd.f32 0.0, %v1182
      %1184 = vmatmul.f32.gmra.mxu0 %v1129
      %v1185 = vpop.f32.mrf.mxu0
      %v1186 = vadd.f32 0.0, %v1185
      %1187 = vmatmul.f32.gmra.mxu0 %v1131
      %v1188 = vpop.f32.mrf.mxu0
      %v1189 = vadd.f32 0.0, %v1188
      %1190 = vmatmul.f32.gmra.mxu0 %v1133
      %v1191 = vpop.f32.mrf.mxu0
      %v1192 = vadd.f32 0.0, %v1191
      %1193 = vmatmul.f32.gmra.mxu0 %v1135
      %v1194 = vpop.f32.mrf.mxu0
      %v1195 = vadd.f32 0.0, %v1194
      %1196 = vmatmul.f32.gmra.mxu0 %v1137
      %v1197 = vpop.f32.mrf.mxu0
      %v1198 = vadd.f32 0.0, %v1197
      %1199 = vmatmul.f32.gmra.mxu0 %v1139
      %v1200 = vpop.f32.mrf.mxu0
      %v1201 = vadd.f32 0.0, %v1200
      %1202 = vmatmul.f32.gmra.mxu0 %v1141
      %v1203 = vpop.f32.mrf.mxu0
      %v1204 = vadd.f32 0.0, %v1203
      %1205 = vmatmul.f32.gmra.mxu0 %v1143
      %v1206 = vpop.f32.mrf.mxu0
      %v1207 = vadd.f32 0.0, %v1206
      %1208 = vmatmul.f32.gmra.mxu0 %v1145
      %v1209 = vpop.f32.mrf.mxu0
      %v1210 = vadd.f32 0.0, %v1209
      %1211 = vmatmul.f32.gmra.mxu0 %v1147
      %v1212 = vpop.f32.mrf.mxu0
      %v1213 = vadd.f32 0.0, %v1212
      %1214 = vmatmul.f32.gmra.mxu0 %v1149
      %v1215 = vpop.f32.mrf.mxu0
      %v1216 = vadd.f32 0.0, %v1215
      %1217 = vmatmul.f32.gmra.mxu0 %v1151
      %v1218 = vpop.f32.mrf.mxu0
      %v1219 = vadd.f32 0.0, %v1218
      %1220 = vdwg.mxu0
      %v1221 = vadd.f32 %v1062, %v1174
      %v1222 = vadd.f32 %v1063, %v1177
      %v1223 = vadd.f32 %v1064, %v1180
      %v1224 = vadd.f32 %v1065, %v1183
      %v1225 = vadd.f32 %v1066, %v1186
      %v1226 = vadd.f32 %v1067, %v1189
      %v1227 = vadd.f32 %v1068, %v1192
      %v1228 = vadd.f32 %v1069, %v1195
      %v1229 = vadd.f32 %v1070, %v1198
      %v1230 = vadd.f32 %v1071, %v1201
      %v1231 = vadd.f32 %v1072, %v1204
      %v1232 = vadd.f32 %v1073, %v1207
      %v1233 = vadd.f32 %v1074, %v1210
      %v1234 = vadd.f32 %v1075, %v1213
      %v1235 = vadd.f32 %v1076, %v1216
      %v1236 = vadd.f32 %v1077, %v1219
      %s1237 = scalar_lea.vmem %s1, 80
      %v1238 = vld [vmem:[%s1237] sm:$0xff]
      %v1239 = vld [vmem:[%s1237 + $0x8] sm:$0xf]
      %v1241 = vsel %vm431, %v481, 0
      %v1244 = vsel %vm431, %v482, 0
      %v1247 = vsel %vm589, %v1239, 0
      %1249 = vmatpush.msra.mxu0 0.0
      %1250 = vmatpush.msra.mxu0 0.0
      %1251 = vmatpush.msra.mxu0 0.0
      %1252 = vmatpush.msra.mxu0 0.0
      %1253 = vmatpush.msra.mxu0 0.0
      %1254 = vmatpush.msra.mxu0 0.0
      %1255 = vmatpush.msra.mxu0 0.0
      %1256 = vmatpush.msra.mxu0 0.0
      %1257 = vmatpush.msra.mxu0 0.0
      %1258 = vmatpush.msra.mxu0 0.0
      %1259 = vmatpush.msra.mxu0 0.0
      %1260 = vmatpush.msra.mxu0 0.0
      %1261 = vmatpush.msra.mxu0 0.0
      %1262 = vmatpush.msra.mxu0 0.0
      %1263 = vmatpush.msra.mxu0 %v1247
      %1264 = vmatpush.msra.mxu0 %v1238
      %1265 = vmatmul.f32.gmra.mxu0 %v662
      %v1266 = vpop.f32.mrf.mxu0
      %v1267 = vadd.f32 0.0, %v1266
      %1268 = vmatmul.f32.gmra.mxu0 %v664
      %v1269 = vpop.f32.mrf.mxu0
      %v1270 = vadd.f32 0.0, %v1269
      %1271 = vmatmul.f32.gmra.mxu0 %v666
      %v1272 = vpop.f32.mrf.mxu0
      %v1273 = vadd.f32 0.0, %v1272
      %1274 = vmatmul.f32.gmra.mxu0 %v668
      %v1275 = vpop.f32.mrf.mxu0
      %v1276 = vadd.f32 0.0, %v1275
      %1277 = vmatmul.f32.gmra.mxu0 %v670
      %v1278 = vpop.f32.mrf.mxu0
      %v1279 = vadd.f32 0.0, %v1278
      %1280 = vmatmul.f32.gmra.mxu0 %v672
      %v1281 = vpop.f32.mrf.mxu0
      %v1282 = vadd.f32 0.0, %v1281
      %1283 = vmatmul.f32.gmra.mxu0 %v674
      %v1284 = vpop.f32.mrf.mxu0
      %v1285 = vadd.f32 0.0, %v1284
      %1286 = vmatmul.f32.gmra.mxu0 %v676
      %v1287 = vpop.f32.mrf.mxu0
      %v1288 = vadd.f32 0.0, %v1287
      %1289 = vmatmul.f32.gmra.mxu0 %v678
      %v1290 = vpop.f32.mrf.mxu0
      %v1291 = vadd.f32 0.0, %v1290
      %1292 = vmatmul.f32.gmra.mxu0 %v680
      %v1293 = vpop.f32.mrf.mxu0
      %v1294 = vadd.f32 0.0, %v1293
      %1295 = vmatmul.f32.gmra.mxu0 %v682
      %v1296 = vpop.f32.mrf.mxu0
      %v1297 = vadd.f32 0.0, %v1296
      %1298 = vmatmul.f32.gmra.mxu0 %v684
      %v1299 = vpop.f32.mrf.mxu0
      %v1300 = vadd.f32 0.0, %v1299
      %1301 = vmatmul.f32.gmra.mxu0 %v686
      %v1302 = vpop.f32.mrf.mxu0
      %v1303 = vadd.f32 0.0, %v1302
      %1304 = vmatmul.f32.gmra.mxu0 %v688
      %v1305 = vpop.f32.mrf.mxu0
      %v1306 = vadd.f32 0.0, %v1305
      %1307 = vmatmul.f32.gmra.mxu0 %v1241
      %v1308 = vpop.f32.mrf.mxu0
      %v1309 = vadd.f32 0.0, %v1308
      %1310 = vmatmul.f32.gmra.mxu0 %v1244
      %v1311 = vpop.f32.mrf.mxu0
      %v1312 = vadd.f32 0.0, %v1311
      %1313 = vdwg.mxu0
      %v1314 = vadd.f32 %v1221, %v1267
      %v1315 = vadd.f32 %v1222, %v1270
      %v1316 = vadd.f32 %v1223, %v1273
      %v1317 = vadd.f32 %v1224, %v1276
      %v1318 = vadd.f32 %v1225, %v1279
      %v1319 = vadd.f32 %v1226, %v1282
      %v1320 = vadd.f32 %v1227, %v1285
      %v1321 = vadd.f32 %v1228, %v1288
      %v1322 = vadd.f32 %v1229, %v1291
      %v1323 = vadd.f32 %v1230, %v1294
      %v1324 = vadd.f32 %v1231, %v1297
      %v1325 = vadd.f32 %v1232, %v1300
      %v1326 = vadd.f32 %v1233, %v1303
      %v1327 = vadd.f32 %v1234, %v1306
      %v1328 = vadd.f32 %v1235, %v1309
      %v1329 = vadd.f32 %v1236, %v1312
      %v1331 = vrot.slane %v481, 1
      %v1332 = vrot.slane %v482, 1
      %v1333 = vsel %vm513, %v1331, %v1332
      %v1334 = vrot.slane %v483, 1
      %v1335 = vsel %vm513, %v1332, %v1334
      %s1336 = scalar_lea.vmem %s1, 96
      %v1337 = vld [vmem:[%s1336] sm:$0xff]
      %v1338 = vld [vmem:[%s1336 + $0x8] sm:$0xf]
      %v1339 = vsel %vm431, %v1333, 0
      %v1341 = vsel %vm431, %v1335, 0
      %v1344 = vsel %vm589, %v1338, 0
      %1346 = vmatpush.msra.mxu0 0.0
      %1347 = vmatpush.msra.mxu0 0.0
      %1348 = vmatpush.msra.mxu0 0.0
      %1349 = vmatpush.msra.mxu0 0.0
      %1350 = vmatpush.msra.mxu0 0.0
      %1351 = vmatpush.msra.mxu0 0.0
      %1352 = vmatpush.msra.mxu0 0.0
      %1353 = vmatpush.msra.mxu0 0.0
      %1354 = vmatpush.msra.mxu0 0.0
      %1355 = vmatpush.msra.mxu0 0.0
      %1356 = vmatpush.msra.mxu0 0.0
      %1357 = vmatpush.msra.mxu0 0.0
      %1358 = vmatpush.msra.mxu0 0.0
      %1359 = vmatpush.msra.mxu0 0.0
      %1360 = vmatpush.msra.mxu0 %v1344
      %1361 = vmatpush.msra.mxu0 %v1337
      %1362 = vmatmul.f32.gmra.mxu0 %v561
      %v1363 = vpop.f32.mrf.mxu0
      %v1364 = vadd.f32 0.0, %v1363
      %1365 = vmatmul.f32.gmra.mxu0 %v563
      %v1366 = vpop.f32.mrf.mxu0
      %v1367 = vadd.f32 0.0, %v1366
      %1368 = vmatmul.f32.gmra.mxu0 %v565
      %v1369 = vpop.f32.mrf.mxu0
      %v1370 = vadd.f32 0.0, %v1369
      %1371 = vmatmul.f32.gmra.mxu0 %v567
      %v1372 = vpop.f32.mrf.mxu0
      %v1373 = vadd.f32 0.0, %v1372
      %1374 = vmatmul.f32.gmra.mxu0 %v569
      %v1375 = vpop.f32.mrf.mxu0
      %v1376 = vadd.f32 0.0, %v1375
      %1377 = vmatmul.f32.gmra.mxu0 %v571
      %v1378 = vpop.f32.mrf.mxu0
      %v1379 = vadd.f32 0.0, %v1378
      %1380 = vmatmul.f32.gmra.mxu0 %v573
      %v1381 = vpop.f32.mrf.mxu0
      %v1382 = vadd.f32 0.0, %v1381
      %1383 = vmatmul.f32.gmra.mxu0 %v575
      %v1384 = vpop.f32.mrf.mxu0
      %v1385 = vadd.f32 0.0, %v1384
      %1386 = vmatmul.f32.gmra.mxu0 %v577
      %v1387 = vpop.f32.mrf.mxu0
      %v1388 = vadd.f32 0.0, %v1387
      %1389 = vmatmul.f32.gmra.mxu0 %v579
      %v1390 = vpop.f32.mrf.mxu0
      %v1391 = vadd.f32 0.0, %v1390
      %1392 = vmatmul.f32.gmra.mxu0 %v581
      %v1393 = vpop.f32.mrf.mxu0
      %v1394 = vadd.f32 0.0, %v1393
      %1395 = vmatmul.f32.gmra.mxu0 %v583
      %v1396 = vpop.f32.mrf.mxu0
      %v1397 = vadd.f32 0.0, %v1396
      %1398 = vmatmul.f32.gmra.mxu0 %v585
      %v1399 = vpop.f32.mrf.mxu0
      %v1400 = vadd.f32 0.0, %v1399
      %1401 = vmatmul.f32.gmra.mxu0 %v587
      %v1402 = vpop.f32.mrf.mxu0
      %v1403 = vadd.f32 0.0, %v1402
      %1404 = vmatmul.f32.gmra.mxu0 %v1339
      %v1405 = vpop.f32.mrf.mxu0
      %v1406 = vadd.f32 0.0, %v1405
      %1407 = vmatmul.f32.gmra.mxu0 %v1341
      %v1408 = vpop.f32.mrf.mxu0
      %v1409 = vadd.f32 0.0, %v1408
      %1410 = vdwg.mxu0
      %v1411 = vadd.f32 %v1314, %v1364
      %v1412 = vadd.f32 %v1315, %v1367
      %v1413 = vadd.f32 %v1316, %v1370
      %v1414 = vadd.f32 %v1317, %v1373
      %v1415 = vadd.f32 %v1318, %v1376
      %v1416 = vadd.f32 %v1319, %v1379
      %v1417 = vadd.f32 %v1320, %v1382
      %v1418 = vadd.f32 %v1321, %v1385
      %v1419 = vadd.f32 %v1322, %v1388
      %v1420 = vadd.f32 %v1323, %v1391
      %v1421 = vadd.f32 %v1324, %v1394
      %v1422 = vadd.f32 %v1325, %v1397
      %v1423 = vadd.f32 %v1326, %v1400
      %v1424 = vadd.f32 %v1327, %v1403
      %v1425 = vadd.f32 %v1328, %v1406
      %v1426 = vadd.f32 %v1329, %v1409
      %v1427 = vrot.slane %v481, 2
      %v1428 = vrot.slane %v482, 2
      %v1429 = vsel %vm758, %v1427, %v1428
      %v1430 = vrot.slane %v483, 2
      %v1431 = vsel %vm758, %v1428, %v1430
      %s1432 = scalar_lea.vmem %s1, 112
      %v1433 = vld [vmem:[%s1432] sm:$0xff]
      %v1434 = vld [vmem:[%s1432 + $0x8] sm:$0xf]
      %v1435 = vsel %vm431, %v1429, 0
      %v1437 = vsel %vm431, %v1431, 0
      %v1440 = vsel %vm589, %v1434, 0
      %1442 = vmatpush.msra.mxu0 0.0
      %1443 = vmatpush.msra.mxu0 0.0
      %1444 = vmatpush.msra.mxu0 0.0
      %1445 = vmatpush.msra.mxu0 0.0
      %1446 = vmatpush.msra.mxu0 0.0
      %1447 = vmatpush.msra.mxu0 0.0
      %1448 = vmatpush.msra.mxu0 0.0
      %1449 = vmatpush.msra.mxu0 0.0
      %1450 = vmatpush.msra.mxu0 0.0
      %1451 = vmatpush.msra.mxu0 0.0
      %1452 = vmatpush.msra.mxu0 0.0
      %1453 = vmatpush.msra.mxu0 0.0
      %1454 = vmatpush.msra.mxu0 0.0
      %1455 = vmatpush.msra.mxu0 0.0
      %1456 = vmatpush.msra.mxu0 %v1440
      %1457 = vmatpush.msra.mxu0 %v1433
      %1458 = vmatmul.f32.gmra.mxu0 %v806
      %v1459 = vpop.f32.mrf.mxu0
      %v1460 = vadd.f32 0.0, %v1459
      %1461 = vmatmul.f32.gmra.mxu0 %v808
      %v1462 = vpop.f32.mrf.mxu0
      %v1463 = vadd.f32 0.0, %v1462
      %1464 = vmatmul.f32.gmra.mxu0 %v810
      %v1465 = vpop.f32.mrf.mxu0
      %v1466 = vadd.f32 0.0, %v1465
      %1467 = vmatmul.f32.gmra.mxu0 %v812
      %v1468 = vpop.f32.mrf.mxu0
      %v1469 = vadd.f32 0.0, %v1468
      %1470 = vmatmul.f32.gmra.mxu0 %v814
      %v1471 = vpop.f32.mrf.mxu0
      %v1472 = vadd.f32 0.0, %v1471
      %1473 = vmatmul.f32.gmra.mxu0 %v816
      %v1474 = vpop.f32.mrf.mxu0
      %v1475 = vadd.f32 0.0, %v1474
      %1476 = vmatmul.f32.gmra.mxu0 %v818
      %v1477 = vpop.f32.mrf.mxu0
      %v1478 = vadd.f32 0.0, %v1477
      %1479 = vmatmul.f32.gmra.mxu0 %v820
      %v1480 = vpop.f32.mrf.mxu0
      %v1481 = vadd.f32 0.0, %v1480
      %1482 = vmatmul.f32.gmra.mxu0 %v822
      %v1483 = vpop.f32.mrf.mxu0
      %v1484 = vadd.f32 0.0, %v1483
      %1485 = vmatmul.f32.gmra.mxu0 %v824
      %v1486 = vpop.f32.mrf.mxu0
      %v1487 = vadd.f32 0.0, %v1486
      %1488 = vmatmul.f32.gmra.mxu0 %v826
      %v1489 = vpop.f32.mrf.mxu0
      %v1490 = vadd.f32 0.0, %v1489
      %1491 = vmatmul.f32.gmra.mxu0 %v828
      %v1492 = vpop.f32.mrf.mxu0
      %v1493 = vadd.f32 0.0, %v1492
      %1494 = vmatmul.f32.gmra.mxu0 %v830
      %v1495 = vpop.f32.mrf.mxu0
      %v1496 = vadd.f32 0.0, %v1495
      %1497 = vmatmul.f32.gmra.mxu0 %v832
      %v1498 = vpop.f32.mrf.mxu0
      %v1499 = vadd.f32 0.0, %v1498
      %1500 = vmatmul.f32.gmra.mxu0 %v1435
      %v1501 = vpop.f32.mrf.mxu0
      %v1502 = vadd.f32 0.0, %v1501
      %1503 = vmatmul.f32.gmra.mxu0 %v1437
      %v1504 = vpop.f32.mrf.mxu0
      %v1505 = vadd.f32 0.0, %v1504
      %1506 = vdwg.mxu0
      %v1507 = vadd.f32 %v1411, %v1460
      %v1508 = vadd.f32 %v1412, %v1463
      %v1509 = vadd.f32 %v1413, %v1466
      %v1510 = vadd.f32 %v1414, %v1469
      %v1511 = vadd.f32 %v1415, %v1472
      %v1512 = vadd.f32 %v1416, %v1475
      %v1513 = vadd.f32 %v1417, %v1478
      %v1514 = vadd.f32 %v1418, %v1481
      %v1515 = vadd.f32 %v1419, %v1484
      %v1516 = vadd.f32 %v1420, %v1487
      %v1517 = vadd.f32 %v1421, %v1490
      %v1518 = vadd.f32 %v1422, %v1493
      %v1519 = vadd.f32 %v1423, %v1496
      %v1520 = vadd.f32 %v1424, %v1499
      %v1521 = vadd.f32 %v1425, %v1502
      %v1522 = vadd.f32 %v1426, %v1505
      %v1523 = vrot.slane %v481, 3
      %v1524 = vrot.slane %v482, 3
      %v1525 = vsel %vm918, %v1523, %v1524
      %v1526 = vrot.slane %v483, 3
      %v1527 = vsel %vm918, %v1524, %v1526
      %s1528 = scalar_lea.vmem %s1, 128
      %v1529 = vld [vmem:[%s1528] sm:$0xff]
      %v1530 = vld [vmem:[%s1528 + $0x8] sm:$0xf]
      %v1531 = vsel %vm431, %v1525, 0
      %v1533 = vsel %vm431, %v1527, 0
      %v1536 = vsel %vm589, %v1530, 0
      %1538 = vmatpush.msra.mxu0 0.0
      %1539 = vmatpush.msra.mxu0 0.0
      %1540 = vmatpush.msra.mxu0 0.0
      %1541 = vmatpush.msra.mxu0 0.0
      %1542 = vmatpush.msra.mxu0 0.0
      %1543 = vmatpush.msra.mxu0 0.0
      %1544 = vmatpush.msra.mxu0 0.0
      %1545 = vmatpush.msra.mxu0 0.0
      %1546 = vmatpush.msra.mxu0 0.0
      %1547 = vmatpush.msra.mxu0 0.0
      %1548 = vmatpush.msra.mxu0 0.0
      %1549 = vmatpush.msra.mxu0 0.0
      %1550 = vmatpush.msra.mxu0 0.0
      %1551 = vmatpush.msra.mxu0 0.0
      %1552 = vmatpush.msra.mxu0 %v1536
      %1553 = vmatpush.msra.mxu0 %v1529
      %1554 = vmatmul.f32.gmra.mxu0 %v966
      %v1555 = vpop.f32.mrf.mxu0
      %v1556 = vadd.f32 0.0, %v1555
      %1557 = vmatmul.f32.gmra.mxu0 %v968
      %v1558 = vpop.f32.mrf.mxu0
      %v1559 = vadd.f32 0.0, %v1558
      %1560 = vmatmul.f32.gmra.mxu0 %v970
      %v1561 = vpop.f32.mrf.mxu0
      %v1562 = vadd.f32 0.0, %v1561
      %1563 = vmatmul.f32.gmra.mxu0 %v972
      %v1564 = vpop.f32.mrf.mxu0
      %v1565 = vadd.f32 0.0, %v1564
      %1566 = vmatmul.f32.gmra.mxu0 %v974
      %v1567 = vpop.f32.mrf.mxu0
      %v1568 = vadd.f32 0.0, %v1567
      %1569 = vmatmul.f32.gmra.mxu0 %v976
      %v1570 = vpop.f32.mrf.mxu0
      %v1571 = vadd.f32 0.0, %v1570
      %1572 = vmatmul.f32.gmra.mxu0 %v978
      %v1573 = vpop.f32.mrf.mxu0
      %v1574 = vadd.f32 0.0, %v1573
      %1575 = vmatmul.f32.gmra.mxu0 %v980
      %v1576 = vpop.f32.mrf.mxu0
      %v1577 = vadd.f32 0.0, %v1576
      %1578 = vmatmul.f32.gmra.mxu0 %v982
      %v1579 = vpop.f32.mrf.mxu0
      %v1580 = vadd.f32 0.0, %v1579
      %1581 = vmatmul.f32.gmra.mxu0 %v984
      %v1582 = vpop.f32.mrf.mxu0
      %v1583 = vadd.f32 0.0, %v1582
      %1584 = vmatmul.f32.gmra.mxu0 %v986
      %v1585 = vpop.f32.mrf.mxu0
      %v1586 = vadd.f32 0.0, %v1585
      %1587 = vmatmul.f32.gmra.mxu0 %v988
      %v1588 = vpop.f32.mrf.mxu0
      %v1589 = vadd.f32 0.0, %v1588
      %1590 = vmatmul.f32.gmra.mxu0 %v990
      %v1591 = vpop.f32.mrf.mxu0
      %v1592 = vadd.f32 0.0, %v1591
      %1593 = vmatmul.f32.gmra.mxu0 %v992
      %v1594 = vpop.f32.mrf.mxu0
      %v1595 = vadd.f32 0.0, %v1594
      %1596 = vmatmul.f32.gmra.mxu0 %v1531
      %v1597 = vpop.f32.mrf.mxu0
      %v1598 = vadd.f32 0.0, %v1597
      %1599 = vmatmul.f32.gmra.mxu0 %v1533
      %v1600 = vpop.f32.mrf.mxu0
      %v1601 = vadd.f32 0.0, %v1600
      %1602 = vdwg.mxu0
      %v1603 = vadd.f32 %v1507, %v1556
      %v1604 = vadd.f32 %v1508, %v1559
      %v1605 = vadd.f32 %v1509, %v1562
      %v1606 = vadd.f32 %v1510, %v1565
      %v1607 = vadd.f32 %v1511, %v1568
      %v1608 = vadd.f32 %v1512, %v1571
      %v1609 = vadd.f32 %v1513, %v1574
      %v1610 = vadd.f32 %v1514, %v1577
      %v1611 = vadd.f32 %v1515, %v1580
      %v1612 = vadd.f32 %v1516, %v1583
      %v1613 = vadd.f32 %v1517, %v1586
      %v1614 = vadd.f32 %v1518, %v1589
      %v1615 = vadd.f32 %v1519, %v1592
      %v1616 = vadd.f32 %v1520, %v1595
      %v1617 = vadd.f32 %v1521, %v1598
      %v1618 = vadd.f32 %v1522, %v1601
      %v1619 = vrot.slane %v481, 4
      %v1620 = vrot.slane %v482, 4
      %v1621 = vsel %vm589, %v1619, %v1620
      %v1622 = vrot.slane %v483, 4
      %v1623 = vsel %vm589, %v1620, %v1622
      %s1624 = scalar_lea.vmem %s1, 144
      %v1625 = vld [vmem:[%s1624] sm:$0xff]
      %v1626 = vld [vmem:[%s1624 + $0x8] sm:$0xf]
      %v1627 = vsel %vm431, %v1621, 0
      %v1629 = vsel %vm431, %v1623, 0
      %v1632 = vsel %vm589, %v1626, 0
      %1634 = vmatpush.msra.mxu0 0.0
      %1635 = vmatpush.msra.mxu0 0.0
      %1636 = vmatpush.msra.mxu0 0.0
      %1637 = vmatpush.msra.mxu0 0.0
      %1638 = vmatpush.msra.mxu0 0.0
      %1639 = vmatpush.msra.mxu0 0.0
      %1640 = vmatpush.msra.mxu0 0.0
      %1641 = vmatpush.msra.mxu0 0.0
      %1642 = vmatpush.msra.mxu0 0.0
      %1643 = vmatpush.msra.mxu0 0.0
      %1644 = vmatpush.msra.mxu0 0.0
      %1645 = vmatpush.msra.mxu0 0.0
      %1646 = vmatpush.msra.mxu0 0.0
      %1647 = vmatpush.msra.mxu0 0.0
      %1648 = vmatpush.msra.mxu0 %v1632
      %1649 = vmatpush.msra.mxu0 %v1625
      %1650 = vmatmul.f32.gmra.mxu0 %v1125
      %v1651 = vpop.f32.mrf.mxu0
      %v1652 = vadd.f32 0.0, %v1651
      %1653 = vmatmul.f32.gmra.mxu0 %v1127
      %v1654 = vpop.f32.mrf.mxu0
      %v1655 = vadd.f32 0.0, %v1654
      %1656 = vmatmul.f32.gmra.mxu0 %v1129
      %v1657 = vpop.f32.mrf.mxu0
      %v1658 = vadd.f32 0.0, %v1657
      %1659 = vmatmul.f32.gmra.mxu0 %v1131
      %v1660 = vpop.f32.mrf.mxu0
      %v1661 = vadd.f32 0.0, %v1660
      %1662 = vmatmul.f32.gmra.mxu0 %v1133
      %v1663 = vpop.f32.mrf.mxu0
      %v1664 = vadd.f32 0.0, %v1663
      %1665 = vmatmul.f32.gmra.mxu0 %v1135
      %v1666 = vpop.f32.mrf.mxu0
      %v1667 = vadd.f32 0.0, %v1666
      %1668 = vmatmul.f32.gmra.mxu0 %v1137
      %v1669 = vpop.f32.mrf.mxu0
      %v1670 = vadd.f32 0.0, %v1669
      %1671 = vmatmul.f32.gmra.mxu0 %v1139
      %v1672 = vpop.f32.mrf.mxu0
      %v1673 = vadd.f32 0.0, %v1672
      %1674 = vmatmul.f32.gmra.mxu0 %v1141
      %v1675 = vpop.f32.mrf.mxu0
      %v1676 = vadd.f32 0.0, %v1675
      %1677 = vmatmul.f32.gmra.mxu0 %v1143
      %v1678 = vpop.f32.mrf.mxu0
      %v1679 = vadd.f32 0.0, %v1678
      %1680 = vmatmul.f32.gmra.mxu0 %v1145
      %v1681 = vpop.f32.mrf.mxu0
      %v1682 = vadd.f32 0.0, %v1681
      %1683 = vmatmul.f32.gmra.mxu0 %v1147
      %v1684 = vpop.f32.mrf.mxu0
      %v1685 = vadd.f32 0.0, %v1684
      %1686 = vmatmul.f32.gmra.mxu0 %v1149
      %v1687 = vpop.f32.mrf.mxu0
      %v1688 = vadd.f32 0.0, %v1687
      %1689 = vmatmul.f32.gmra.mxu0 %v1151
      %v1690 = vpop.f32.mrf.mxu0
      %v1691 = vadd.f32 0.0, %v1690
      %1692 = vmatmul.f32.gmra.mxu0 %v1627
      %v1693 = vpop.f32.mrf.mxu0
      %v1694 = vadd.f32 0.0, %v1693
      %1695 = vmatmul.f32.gmra.mxu0 %v1629
      %v1696 = vpop.f32.mrf.mxu0
      %v1697 = vadd.f32 0.0, %v1696
      %1698 = vdwg.mxu0
      %v1699 = vadd.f32 %v1603, %v1652
      %v1700 = vadd.f32 %v1604, %v1655
      %v1701 = vadd.f32 %v1605, %v1658
      %v1702 = vadd.f32 %v1606, %v1661
      %v1703 = vadd.f32 %v1607, %v1664
      %v1704 = vadd.f32 %v1608, %v1667
      %v1705 = vadd.f32 %v1609, %v1670
      %v1706 = vadd.f32 %v1610, %v1673
      %v1707 = vadd.f32 %v1611, %v1676
      %v1708 = vadd.f32 %v1612, %v1679
      %v1709 = vadd.f32 %v1613, %v1682
      %v1710 = vadd.f32 %v1614, %v1685
      %v1711 = vadd.f32 %v1615, %v1688
      %v1712 = vadd.f32 %v1616, %v1691
      %v1713 = vadd.f32 %v1617, %v1694
      %v1714 = vadd.f32 %v1618, %v1697
      %s1715 = scalar_lea.vmem %s1, 160
      %v1716 = vld [vmem:[%s1715] sm:$0xff]
      %v1717 = vld [vmem:[%s1715 + $0x8] sm:$0xf]
      %v1719 = vsel %vm431, %v484, 0
      %v1722 = vsel %vm431, %v485, 0
      %v1725 = vsel %vm589, %v1717, 0
      %1727 = vmatpush.msra.mxu0 0.0
      %1728 = vmatpush.msra.mxu0 0.0
      %1729 = vmatpush.msra.mxu0 0.0
      %1730 = vmatpush.msra.mxu0 0.0
      %1731 = vmatpush.msra.mxu0 0.0
      %1732 = vmatpush.msra.mxu0 0.0
      %1733 = vmatpush.msra.mxu0 0.0
      %1734 = vmatpush.msra.mxu0 0.0
      %1735 = vmatpush.msra.mxu0 0.0
      %1736 = vmatpush.msra.mxu0 0.0
      %1737 = vmatpush.msra.mxu0 0.0
      %1738 = vmatpush.msra.mxu0 0.0
      %1739 = vmatpush.msra.mxu0 0.0
      %1740 = vmatpush.msra.mxu0 0.0
      %1741 = vmatpush.msra.mxu0 %v1725
      %1742 = vmatpush.msra.mxu0 %v1716
      %1743 = vmatmul.f32.gmra.mxu0 %v666
      %v1744 = vpop.f32.mrf.mxu0
      %v1745 = vadd.f32 0.0, %v1744
      %1746 = vmatmul.f32.gmra.mxu0 %v668
      %v1747 = vpop.f32.mrf.mxu0
      %v1748 = vadd.f32 0.0, %v1747
      %1749 = vmatmul.f32.gmra.mxu0 %v670
      %v1750 = vpop.f32.mrf.mxu0
      %v1751 = vadd.f32 0.0, %v1750
      %1752 = vmatmul.f32.gmra.mxu0 %v672
      %v1753 = vpop.f32.mrf.mxu0
      %v1754 = vadd.f32 0.0, %v1753
      %1755 = vmatmul.f32.gmra.mxu0 %v674
      %v1756 = vpop.f32.mrf.mxu0
      %v1757 = vadd.f32 0.0, %v1756
      %1758 = vmatmul.f32.gmra.mxu0 %v676
      %v1759 = vpop.f32.mrf.mxu0
      %v1760 = vadd.f32 0.0, %v1759
      %1761 = vmatmul.f32.gmra.mxu0 %v678
      %v1762 = vpop.f32.mrf.mxu0
      %v1763 = vadd.f32 0.0, %v1762
      %1764 = vmatmul.f32.gmra.mxu0 %v680
      %v1765 = vpop.f32.mrf.mxu0
      %v1766 = vadd.f32 0.0, %v1765
      %1767 = vmatmul.f32.gmra.mxu0 %v682
      %v1768 = vpop.f32.mrf.mxu0
      %v1769 = vadd.f32 0.0, %v1768
      %1770 = vmatmul.f32.gmra.mxu0 %v684
      %v1771 = vpop.f32.mrf.mxu0
      %v1772 = vadd.f32 0.0, %v1771
      %1773 = vmatmul.f32.gmra.mxu0 %v686
      %v1774 = vpop.f32.mrf.mxu0
      %v1775 = vadd.f32 0.0, %v1774
      %1776 = vmatmul.f32.gmra.mxu0 %v688
      %v1777 = vpop.f32.mrf.mxu0
      %v1778 = vadd.f32 0.0, %v1777
      %1779 = vmatmul.f32.gmra.mxu0 %v1241
      %v1780 = vpop.f32.mrf.mxu0
      %v1781 = vadd.f32 0.0, %v1780
      %1782 = vmatmul.f32.gmra.mxu0 %v1244
      %v1783 = vpop.f32.mrf.mxu0
      %v1784 = vadd.f32 0.0, %v1783
      %1785 = vmatmul.f32.gmra.mxu0 %v1719
      %v1786 = vpop.f32.mrf.mxu0
      %v1787 = vadd.f32 0.0, %v1786
      %1788 = vmatmul.f32.gmra.mxu0 %v1722
      %v1789 = vpop.f32.mrf.mxu0
      %v1790 = vadd.f32 0.0, %v1789
      %1791 = vdwg.mxu0
      %v1792 = vadd.f32 %v1699, %v1745
      %v1793 = vadd.f32 %v1700, %v1748
      %v1794 = vadd.f32 %v1701, %v1751
      %v1795 = vadd.f32 %v1702, %v1754
      %v1796 = vadd.f32 %v1703, %v1757
      %v1797 = vadd.f32 %v1704, %v1760
      %v1798 = vadd.f32 %v1705, %v1763
      %v1799 = vadd.f32 %v1706, %v1766
      %v1800 = vadd.f32 %v1707, %v1769
      %v1801 = vadd.f32 %v1708, %v1772
      %v1802 = vadd.f32 %v1709, %v1775
      %v1803 = vadd.f32 %v1710, %v1778
      %v1804 = vadd.f32 %v1711, %v1781
      %v1805 = vadd.f32 %v1712, %v1784
      %v1806 = vadd.f32 %v1713, %v1787
      %v1807 = vadd.f32 %v1714, %v1790
      %v1809 = vrot.slane %v484, 1
      %v1810 = vrot.slane %v485, 1
      %v1811 = vsel %vm513, %v1809, %v1810
      %v1812 = vrot.slane %v486, 1
      %v1813 = vsel %vm513, %v1810, %v1812
      %s1814 = scalar_lea.vmem %s1, 176
      %v1815 = vld [vmem:[%s1814] sm:$0xff]
      %v1816 = vld [vmem:[%s1814 + $0x8] sm:$0xf]
      %v1817 = vsel %vm431, %v1811, 0
      %v1819 = vsel %vm431, %v1813, 0
      %v1822 = vsel %vm589, %v1816, 0
      %1824 = vmatpush.msra.mxu0 0.0
      %1825 = vmatpush.msra.mxu0 0.0
      %1826 = vmatpush.msra.mxu0 0.0
      %1827 = vmatpush.msra.mxu0 0.0
      %1828 = vmatpush.msra.mxu0 0.0
      %1829 = vmatpush.msra.mxu0 0.0
      %1830 = vmatpush.msra.mxu0 0.0
      %1831 = vmatpush.msra.mxu0 0.0
      %1832 = vmatpush.msra.mxu0 0.0
      %1833 = vmatpush.msra.mxu0 0.0
      %1834 = vmatpush.msra.mxu0 0.0
      %1835 = vmatpush.msra.mxu0 0.0
      %1836 = vmatpush.msra.mxu0 0.0
      %1837 = vmatpush.msra.mxu0 0.0
      %1838 = vmatpush.msra.mxu0 %v1822
      %1839 = vmatpush.msra.mxu0 %v1815
      %1840 = vmatmul.f32.gmra.mxu0 %v565
      %v1841 = vpop.f32.mrf.mxu0
      %v1842 = vadd.f32 0.0, %v1841
      %1843 = vmatmul.f32.gmra.mxu0 %v567
      %v1844 = vpop.f32.mrf.mxu0
      %v1845 = vadd.f32 0.0, %v1844
      %1846 = vmatmul.f32.gmra.mxu0 %v569
      %v1847 = vpop.f32.mrf.mxu0
      %v1848 = vadd.f32 0.0, %v1847
      %1849 = vmatmul.f32.gmra.mxu0 %v571
      %v1850 = vpop.f32.mrf.mxu0
      %v1851 = vadd.f32 0.0, %v1850
      %1852 = vmatmul.f32.gmra.mxu0 %v573
      %v1853 = vpop.f32.mrf.mxu0
      %v1854 = vadd.f32 0.0, %v1853
      %1855 = vmatmul.f32.gmra.mxu0 %v575
      %v1856 = vpop.f32.mrf.mxu0
      %v1857 = vadd.f32 0.0, %v1856
      %1858 = vmatmul.f32.gmra.mxu0 %v577
      %v1859 = vpop.f32.mrf.mxu0
      %v1860 = vadd.f32 0.0, %v1859
      %1861 = vmatmul.f32.gmra.mxu0 %v579
      %v1862 = vpop.f32.mrf.mxu0
      %v1863 = vadd.f32 0.0, %v1862
      %1864 = vmatmul.f32.gmra.mxu0 %v581
      %v1865 = vpop.f32.mrf.mxu0
      %v1866 = vadd.f32 0.0, %v1865
      %1867 = vmatmul.f32.gmra.mxu0 %v583
      %v1868 = vpop.f32.mrf.mxu0
      %v1869 = vadd.f32 0.0, %v1868
      %1870 = vmatmul.f32.gmra.mxu0 %v585
      %v1871 = vpop.f32.mrf.mxu0
      %v1872 = vadd.f32 0.0, %v1871
      %1873 = vmatmul.f32.gmra.mxu0 %v587
      %v1874 = vpop.f32.mrf.mxu0
      %v1875 = vadd.f32 0.0, %v1874
      %1876 = vmatmul.f32.gmra.mxu0 %v1339
      %v1877 = vpop.f32.mrf.mxu0
      %v1878 = vadd.f32 0.0, %v1877
      %1879 = vmatmul.f32.gmra.mxu0 %v1341
      %v1880 = vpop.f32.mrf.mxu0
      %v1881 = vadd.f32 0.0, %v1880
      %1882 = vmatmul.f32.gmra.mxu0 %v1817
      %v1883 = vpop.f32.mrf.mxu0
      %v1884 = vadd.f32 0.0, %v1883
      %1885 = vmatmul.f32.gmra.mxu0 %v1819
      %v1886 = vpop.f32.mrf.mxu0
      %v1887 = vadd.f32 0.0, %v1886
      %1888 = vdwg.mxu0
      %v1889 = vadd.f32 %v1792, %v1842
      %v1890 = vadd.f32 %v1793, %v1845
      %v1891 = vadd.f32 %v1794, %v1848
      %v1892 = vadd.f32 %v1795, %v1851
      %v1893 = vadd.f32 %v1796, %v1854
      %v1894 = vadd.f32 %v1797, %v1857
      %v1895 = vadd.f32 %v1798, %v1860
      %v1896 = vadd.f32 %v1799, %v1863
      %v1897 = vadd.f32 %v1800, %v1866
      %v1898 = vadd.f32 %v1801, %v1869
      %v1899 = vadd.f32 %v1802, %v1872
      %v1900 = vadd.f32 %v1803, %v1875
      %v1901 = vadd.f32 %v1804, %v1878
      %v1902 = vadd.f32 %v1805, %v1881
      %v1903 = vadd.f32 %v1806, %v1884
      %v1904 = vadd.f32 %v1807, %v1887
      %v1905 = vld [vmem:[%s2] sm:$0x1]
      %v1907 = vperm.slane %v1905, 0
      %v1909 = vadd.f32 %v1889, %v1907
      %v1910 = vadd.f32 %v1890, %v1907
      %v1911 = vadd.f32 %v1891, %v1907
      %v1912 = vadd.f32 %v1892, %v1907
      %v1913 = vadd.f32 %v1893, %v1907
      %v1914 = vadd.f32 %v1894, %v1907
      %v1915 = vadd.f32 %v1895, %v1907
      %v1916 = vadd.f32 %v1896, %v1907
      %v1917 = vadd.f32 %v1897, %v1907
      %v1918 = vadd.f32 %v1898, %v1907
      %v1919 = vadd.f32 %v1899, %v1907
      %v1920 = vadd.f32 %v1900, %v1907
      %v1921 = vadd.f32 %v1901, %v1907
      %v1922 = vadd.f32 %v1902, %v1907
      %v1923 = vadd.f32 %v1903, %v1907
      %v1924 = vadd.f32 %v1904, %v1907
      %v1925 = vld [vmem:[%s3] sm:$0xff]
      %v1926 = vld [vmem:[%s3 + $0x8] sm:$0xff]
      %v1927 = vld [vmem:[%s3 + $0x10] sm:$0xff]
      %v1928 = vld [vmem:[%s4] sm:$0x1]
      %v1930 = vperm.slane %v1928, 0
      %vm1932 = vcmask 195584
      %v1934 = vsel %vm1932, %v1909, 0
      %v1937 = vsel %vm1932, %v1910, 0
      %v1940 = vsel %vm1932, %v1911, 0
      %v1943 = vsel %vm1932, %v1912, 0
      %v1946 = vsel %vm1932, %v1913, 0
      %v1949 = vsel %vm1932, %v1914, 0
      %v1952 = vsel %vm1932, %v1915, 0
      %v1955 = vsel %vm1932, %v1916, 0
      %v1958 = vsel %vm1932, %v1917, 0
      %v1961 = vsel %vm1932, %v1918, 0
      %v1964 = vsel %vm1932, %v1919, 0
      %v1967 = vsel %vm1932, %v1920, 0
      %v1970 = vsel %vm1932, %v1921, 0
      %v1973 = vsel %vm1932, %v1922, 0
      %v1976 = vsel %vm1932, %v1923, 0
      %v1979 = vsel %vm1932, %v1924, 0
      %1981 = vmatpush.msra.mxu0 0.0
      %1982 = vmatpush.msra.mxu0 0.0
      %1983 = vmatpush.msra.mxu0 0.0
      %1984 = vmatpush.msra.mxu0 0.0
      %1985 = vmatpush.msra.mxu0 0.0
      %1986 = vmatpush.msra.mxu0 0.0
      %1987 = vmatpush.msra.mxu0 0.0
      %1988 = vmatpush.msra.mxu0 0.0
      %1989 = vmatpush.msra.mxu0 0.0
      %1990 = vmatpush.msra.mxu0 0.0
      %1991 = vmatpush.msra.mxu0 0.0
      %1992 = vmatpush.msra.mxu0 0.0
      %1993 = vmatpush.msra.mxu0 0.0
      %1994 = vmatpush.msra.mxu0 %v1927
      %1995 = vmatpush.msra.mxu0 %v1926
      %1996 = vmatpush.msra.mxu0 %v1925
      %1997 = vmatmul.f32.gmra.mxu0 %v1934
      %v1998 = vpop.f32.mrf.mxu0
      %v1999 = vadd.f32 %v1930, %v1998
      %2000 = vmatmul.f32.gmra.mxu0 %v1937
      %v2001 = vpop.f32.mrf.mxu0
      %v2002 = vadd.f32 %v1930, %v2001
      %2003 = vmatmul.f32.gmra.mxu0 %v1940
      %v2004 = vpop.f32.mrf.mxu0
      %v2005 = vadd.f32 %v1930, %v2004
      %2006 = vmatmul.f32.gmra.mxu0 %v1943
      %v2007 = vpop.f32.mrf.mxu0
      %v2008 = vadd.f32 %v1930, %v2007
      %2009 = vmatmul.f32.gmra.mxu0 %v1946
      %v2010 = vpop.f32.mrf.mxu0
      %v2011 = vadd.f32 %v1930, %v2010
      %2012 = vmatmul.f32.gmra.mxu0 %v1949
      %v2013 = vpop.f32.mrf.mxu0
      %v2014 = vadd.f32 %v1930, %v2013
      %2015 = vmatmul.f32.gmra.mxu0 %v1952
      %v2016 = vpop.f32.mrf.mxu0
      %v2017 = vadd.f32 %v1930, %v2016
      %2018 = vmatmul.f32.gmra.mxu0 %v1955
      %v2019 = vpop.f32.mrf.mxu0
      %v2020 = vadd.f32 %v1930, %v2019
      %2021 = vmatmul.f32.gmra.mxu0 %v1958
      %v2022 = vpop.f32.mrf.mxu0
      %v2023 = vadd.f32 %v1930, %v2022
      %2024 = vmatmul.f32.gmra.mxu0 %v1961
      %v2025 = vpop.f32.mrf.mxu0
      %v2026 = vadd.f32 %v1930, %v2025
      %2027 = vmatmul.f32.gmra.mxu0 %v1964
      %v2028 = vpop.f32.mrf.mxu0
      %v2029 = vadd.f32 %v1930, %v2028
      %2030 = vmatmul.f32.gmra.mxu0 %v1967
      %v2031 = vpop.f32.mrf.mxu0
      %v2032 = vadd.f32 %v1930, %v2031
      %2033 = vmatmul.f32.gmra.mxu0 %v1970
      %v2034 = vpop.f32.mrf.mxu0
      %v2035 = vadd.f32 %v1930, %v2034
      %2036 = vmatmul.f32.gmra.mxu0 %v1973
      %v2037 = vpop.f32.mrf.mxu0
      %v2038 = vadd.f32 %v1930, %v2037
      %2039 = vmatmul.f32.gmra.mxu0 %v1976
      %v2040 = vpop.f32.mrf.mxu0
      %v2041 = vadd.f32 %v1930, %v2040
      %2042 = vmatmul.f32.gmra.mxu0 %v1979
      %v2043 = vpop.f32.mrf.mxu0
      %v2044 = vadd.f32 %v1930, %v2043
      %2045 = vdwg.mxu0
      %vm2046 = vcmp.ge.f32.partialorder %v1999, 0.0
      %vm2047 = vcmp.ge.f32.partialorder %v2002, 0.0
      %vm2048 = vcmp.ge.f32.partialorder %v2005, 0.0
      %vm2049 = vcmp.ge.f32.partialorder %v2008, 0.0
      %vm2050 = vcmp.ge.f32.partialorder %v2011, 0.0
      %vm2051 = vcmp.ge.f32.partialorder %v2014, 0.0
      %vm2052 = vcmp.ge.f32.partialorder %v2017, 0.0
      %vm2053 = vcmp.ge.f32.partialorder %v2020, 0.0
      %vm2054 = vcmp.ge.f32.partialorder %v2023, 0.0
      %vm2055 = vcmp.ge.f32.partialorder %v2026, 0.0
      %vm2056 = vcmp.ge.f32.partialorder %v2029, 0.0
      %vm2057 = vcmp.ge.f32.partialorder %v2032, 0.0
      %vm2058 = vcmp.ge.f32.partialorder %v2035, 0.0
      %vm2059 = vcmp.ge.f32.partialorder %v2038, 0.0
      %vm2060 = vcmp.ge.f32.partialorder %v2041, 0.0
      %vm2061 = vcmp.ge.f32.partialorder %v2044, 0.0
      %v2062 = vmul.f32 %v1999, 0.01
      %v2063 = vmul.f32 %v2002, 0.01
      %v2064 = vmul.f32 %v2005, 0.01
      %v2065 = vmul.f32 %v2008, 0.01
      %v2066 = vmul.f32 %v2011, 0.01
      %v2067 = vmul.f32 %v2014, 0.01
      %v2068 = vmul.f32 %v2017, 0.01
      %v2069 = vmul.f32 %v2020, 0.01
      %v2070 = vmul.f32 %v2023, 0.01
      %v2071 = vmul.f32 %v2026, 0.01
      %v2072 = vmul.f32 %v2029, 0.01
      %v2073 = vmul.f32 %v2032, 0.01
      %v2074 = vmul.f32 %v2035, 0.01
      %v2075 = vmul.f32 %v2038, 0.01
      %v2076 = vmul.f32 %v2041, 0.01
      %v2077 = vmul.f32 %v2044, 0.01
      %v2078 = vsel %vm2046, %v1999, %v2062
      %v2079 = vsel %vm2047, %v2002, %v2063
      %v2080 = vsel %vm2048, %v2005, %v2064
      %v2081 = vsel %vm2049, %v2008, %v2065
      %v2082 = vsel %vm2050, %v2011, %v2066
      %v2083 = vsel %vm2051, %v2014, %v2067
      %v2084 = vsel %vm2052, %v2017, %v2068
      %v2085 = vsel %vm2053, %v2020, %v2069
      %v2086 = vsel %vm2054, %v2023, %v2070
      %v2087 = vsel %vm2055, %v2026, %v2071
      %v2088 = vsel %vm2056, %v2029, %v2072
      %v2089 = vsel %vm2057, %v2032, %v2073
      %v2090 = vsel %vm2058, %v2035, %v2074
      %v2091 = vsel %vm2059, %v2038, %v2075
      %v2092 = vsel %vm2060, %v2041, %v2076
      %v2093 = vsel %vm2061, %v2044, %v2077
      %v2094 = vld [vmem:[%s5] sm:$0xff]
      %v2095 = vld [vmem:[%s5 + $0x8] sm:$0xff]
      %v2096 = vld [vmem:[%s5 + $0x10] sm:$0xff]
      %v2097 = vld [vmem:[%s5 + $0x18] sm:$0xff]
      %v2098 = vld [vmem:[%s5 + $0x20] sm:$0xff]
      %v2099 = vld [vmem:[%s6] sm:$0x1]
      %v2101 = vperm.slane %v2099, 0
      %vm2103 = vcmask 326656
      %v2105 = vsel %vm2103, %v2078, 0
      %v2108 = vsel %vm2103, %v2079, 0
      %v2111 = vsel %vm2103, %v2080, 0
      %v2114 = vsel %vm2103, %v2081, 0
      %v2117 = vsel %vm2103, %v2082, 0
      %v2120 = vsel %vm2103, %v2083, 0
      %v2123 = vsel %vm2103, %v2084, 0
      %v2126 = vsel %vm2103, %v2085, 0
      %v2129 = vsel %vm2103, %v2086, 0
      %v2132 = vsel %vm2103, %v2087, 0
      %v2135 = vsel %vm2103, %v2088, 0
      %v2138 = vsel %vm2103, %v2089, 0
      %v2141 = vsel %vm2103, %v2090, 0
      %v2144 = vsel %vm2103, %v2091, 0
      %v2147 = vsel %vm2103, %v2092, 0
      %v2150 = vsel %vm2103, %v2093, 0
      %2152 = vmatpush.msra.mxu0 0.0
      %2153 = vmatpush.msra.mxu0 0.0
      %2154 = vmatpush.msra.mxu0 0.0
      %2155 = vmatpush.msra.mxu0 0.0
      %2156 = vmatpush.msra.mxu0 0.0
      %2157 = vmatpush.msra.mxu0 0.0
      %2158 = vmatpush.msra.mxu0 0.0
      %2159 = vmatpush.msra.mxu0 0.0
      %2160 = vmatpush.msra.mxu0 0.0
      %2161 = vmatpush.msra.mxu0 0.0
      %2162 = vmatpush.msra.mxu0 0.0
      %2163 = vmatpush.msra.mxu0 %v2098
      %2164 = vmatpush.msra.mxu0 %v2097
      %2165 = vmatpush.msra.mxu0 %v2096
      %2166 = vmatpush.msra.mxu0 %v2095
      %2167 = vmatpush.msra.mxu0 %v2094
      %2168 = vmatmul.f32.gmra.mxu0 %v2105
      %v2169 = vpop.f32.mrf.mxu0
      %v2170 = vadd.f32 %v2101, %v2169
      %2171 = vmatmul.f32.gmra.mxu0 %v2108
      %v2172 = vpop.f32.mrf.mxu0
      %v2173 = vadd.f32 %v2101, %v2172
      %2174 = vmatmul.f32.gmra.mxu0 %v2111
      %v2175 = vpop.f32.mrf.mxu0
      %v2176 = vadd.f32 %v2101, %v2175
      %2177 = vmatmul.f32.gmra.mxu0 %v2114
      %v2178 = vpop.f32.mrf.mxu0
      %v2179 = vadd.f32 %v2101, %v2178
      %2180 = vmatmul.f32.gmra.mxu0 %v2117
      %v2181 = vpop.f32.mrf.mxu0
      %v2182 = vadd.f32 %v2101, %v2181
      %2183 = vmatmul.f32.gmra.mxu0 %v2120
      %v2184 = vpop.f32.mrf.mxu0
      %v2185 = vadd.f32 %v2101, %v2184
      %2186 = vmatmul.f32.gmra.mxu0 %v2123
      %v2187 = vpop.f32.mrf.mxu0
      %v2188 = vadd.f32 %v2101, %v2187
      %2189 = vmatmul.f32.gmra.mxu0 %v2126
      %v2190 = vpop.f32.mrf.mxu0
      %v2191 = vadd.f32 %v2101, %v2190
      %2192 = vmatmul.f32.gmra.mxu0 %v2129
      %v2193 = vpop.f32.mrf.mxu0
      %v2194 = vadd.f32 %v2101, %v2193
      %2195 = vmatmul.f32.gmra.mxu0 %v2132
      %v2196 = vpop.f32.mrf.mxu0
      %v2197 = vadd.f32 %v2101, %v2196
      %2198 = vmatmul.f32.gmra.mxu0 %v2135
      %v2199 = vpop.f32.mrf.mxu0
      %v2200 = vadd.f32 %v2101, %v2199
      %2201 = vmatmul.f32.gmra.mxu0 %v2138
      %v2202 = vpop.f32.mrf.mxu0
      %v2203 = vadd.f32 %v2101, %v2202
      %2204 = vmatmul.f32.gmra.mxu0 %v2141
      %v2205 = vpop.f32.mrf.mxu0
      %v2206 = vadd.f32 %v2101, %v2205
      %2207 = vmatmul.f32.gmra.mxu0 %v2144
      %v2208 = vpop.f32.mrf.mxu0
      %v2209 = vadd.f32 %v2101, %v2208
      %2210 = vmatmul.f32.gmra.mxu0 %v2147
      %v2211 = vpop.f32.mrf.mxu0
      %v2212 = vadd.f32 %v2101, %v2211
      %2213 = vmatmul.f32.gmra.mxu0 %v2150
      %v2214 = vpop.f32.mrf.mxu0
      %v2215 = vadd.f32 %v2101, %v2214
      %2216 = vdwg.mxu0
      %vm2217 = vcmp.ge.f32.partialorder %v2170, 0.0
      %vm2218 = vcmp.ge.f32.partialorder %v2173, 0.0
      %vm2219 = vcmp.ge.f32.partialorder %v2176, 0.0
      %vm2220 = vcmp.ge.f32.partialorder %v2179, 0.0
      %vm2221 = vcmp.ge.f32.partialorder %v2182, 0.0
      %vm2222 = vcmp.ge.f32.partialorder %v2185, 0.0
      %vm2223 = vcmp.ge.f32.partialorder %v2188, 0.0
      %vm2224 = vcmp.ge.f32.partialorder %v2191, 0.0
      %vm2225 = vcmp.ge.f32.partialorder %v2194, 0.0
      %vm2226 = vcmp.ge.f32.partialorder %v2197, 0.0
      %vm2227 = vcmp.ge.f32.partialorder %v2200, 0.0
      %vm2228 = vcmp.ge.f32.partialorder %v2203, 0.0
      %vm2229 = vcmp.ge.f32.partialorder %v2206, 0.0
      %vm2230 = vcmp.ge.f32.partialorder %v2209, 0.0
      %vm2231 = vcmp.ge.f32.partialorder %v2212, 0.0
      %vm2232 = vcmp.ge.f32.partialorder %v2215, 0.0
      %v2233 = vmul.f32 %v2170, 0.01
      %v2234 = vmul.f32 %v2173, 0.01
      %v2235 = vmul.f32 %v2176, 0.01
      %v2236 = vmul.f32 %v2179, 0.01
      %v2237 = vmul.f32 %v2182, 0.01
      %v2238 = vmul.f32 %v2185, 0.01
      %v2239 = vmul.f32 %v2188, 0.01
      %v2240 = vmul.f32 %v2191, 0.01
      %v2241 = vmul.f32 %v2194, 0.01
      %v2242 = vmul.f32 %v2197, 0.01
      %v2243 = vmul.f32 %v2200, 0.01
      %v2244 = vmul.f32 %v2203, 0.01
      %v2245 = vmul.f32 %v2206, 0.01
      %v2246 = vmul.f32 %v2209, 0.01
      %v2247 = vmul.f32 %v2212, 0.01
      %v2248 = vmul.f32 %v2215, 0.01
      %v2249 = vsel %vm2217, %v2170, %v2233
      %v2250 = vsel %vm2218, %v2173, %v2234
      %v2251 = vsel %vm2219, %v2176, %v2235
      %v2252 = vsel %vm2220, %v2179, %v2236
      %v2253 = vsel %vm2221, %v2182, %v2237
      %v2254 = vsel %vm2222, %v2185, %v2238
      %v2255 = vsel %vm2223, %v2188, %v2239
      %v2256 = vsel %vm2224, %v2191, %v2240
      %v2257 = vsel %vm2225, %v2194, %v2241
      %v2258 = vsel %vm2226, %v2197, %v2242
      %v2259 = vsel %vm2227, %v2200, %v2243
      %v2260 = vsel %vm2228, %v2203, %v2244
      %v2261 = vsel %vm2229, %v2206, %v2245
      %v2262 = vsel %vm2230, %v2209, %v2246
      %v2263 = vsel %vm2231, %v2212, %v2247
      %v2264 = vsel %vm2232, %v2215, %v2248
      %v2265 = vld [vmem:[%s7] sm:$0xff]
      %v2266 = vld [vmem:[%s7 + $0x8] sm:$0xff]
      %v2267 = vld [vmem:[%s7 + $0x10] sm:$0xff]
      %v2268 = vld [vmem:[%s7 + $0x18] sm:$0xff]
      %v2269 = vld [vmem:[%s8] sm:$0x1]
      %v2271 = vperm.slane %v2269, 0
      %vm2273 = vcmask 261120
      %v2275 = vsel %vm2273, %v2249, 0
      %v2278 = vsel %vm2273, %v2250, 0
      %v2281 = vsel %vm2273, %v2251, 0
      %v2284 = vsel %vm2273, %v2252, 0
      %v2287 = vsel %vm2273, %v2253, 0
      %v2290 = vsel %vm2273, %v2254, 0
      %v2293 = vsel %vm2273, %v2255, 0
      %v2296 = vsel %vm2273, %v2256, 0
      %v2299 = vsel %vm2273, %v2257, 0
      %v2302 = vsel %vm2273, %v2258, 0
      %v2305 = vsel %vm2273, %v2259, 0
      %v2308 = vsel %vm2273, %v2260, 0
      %v2311 = vsel %vm2273, %v2261, 0
      %v2314 = vsel %vm2273, %v2262, 0
      %v2317 = vsel %vm2273, %v2263, 0
      %v2320 = vsel %vm2273, %v2264, 0
      %2322 = vmatpush.msra.mxu0 0.0
      %2323 = vmatpush.msra.mxu0 0.0
      %2324 = vmatpush.msra.mxu0 0.0
      %2325 = vmatpush.msra.mxu0 0.0
      %2326 = vmatpush.msra.mxu0 0.0
      %2327 = vmatpush.msra.mxu0 0.0
      %2328 = vmatpush.msra.mxu0 0.0
      %2329 = vmatpush.msra.mxu0 0.0
      %2330 = vmatpush.msra.mxu0 0.0
      %2331 = vmatpush.msra.mxu0 0.0
      %2332 = vmatpush.msra.mxu0 0.0
      %2333 = vmatpush.msra.mxu0 0.0
      %2334 = vmatpush.msra.mxu0 %v2268
      %2335 = vmatpush.msra.mxu0 %v2267
      %2336 = vmatpush.msra.mxu0 %v2266
      %2337 = vmatpush.msra.mxu0 %v2265
      %2338 = vmatmul.f32.gmra.mxu0 %v2275
      %v2339 = vpop.f32.mrf.mxu0
      %v2340 = vadd.f32 %v2271, %v2339
      %2341 = vmatmul.f32.gmra.mxu0 %v2278
      %v2342 = vpop.f32.mrf.mxu0
      %v2343 = vadd.f32 %v2271, %v2342
      %2344 = vmatmul.f32.gmra.mxu0 %v2281
      %v2345 = vpop.f32.mrf.mxu0
      %v2346 = vadd.f32 %v2271, %v2345
      %2347 = vmatmul.f32.gmra.mxu0 %v2284
      %v2348 = vpop.f32.mrf.mxu0
      %v2349 = vadd.f32 %v2271, %v2348
      %2350 = vmatmul.f32.gmra.mxu0 %v2287
      %v2351 = vpop.f32.mrf.mxu0
      %v2352 = vadd.f32 %v2271, %v2351
      %2353 = vmatmul.f32.gmra.mxu0 %v2290
      %v2354 = vpop.f32.mrf.mxu0
      %v2355 = vadd.f32 %v2271, %v2354
      %2356 = vmatmul.f32.gmra.mxu0 %v2293
      %v2357 = vpop.f32.mrf.mxu0
      %v2358 = vadd.f32 %v2271, %v2357
      %2359 = vmatmul.f32.gmra.mxu0 %v2296
      %v2360 = vpop.f32.mrf.mxu0
      %v2361 = vadd.f32 %v2271, %v2360
      %2362 = vmatmul.f32.gmra.mxu0 %v2299
      %v2363 = vpop.f32.mrf.mxu0
      %v2364 = vadd.f32 %v2271, %v2363
      %2365 = vmatmul.f32.gmra.mxu0 %v2302
      %v2366 = vpop.f32.mrf.mxu0
      %v2367 = vadd.f32 %v2271, %v2366
      %2368 = vmatmul.f32.gmra.mxu0 %v2305
      %v2369 = vpop.f32.mrf.mxu0
      %v2370 = vadd.f32 %v2271, %v2369
      %2371 = vmatmul.f32.gmra.mxu0 %v2308
      %v2372 = vpop.f32.mrf.mxu0
      %v2373 = vadd.f32 %v2271, %v2372
      %2374 = vmatmul.f32.gmra.mxu0 %v2311
      %v2375 = vpop.f32.mrf.mxu0
      %v2376 = vadd.f32 %v2271, %v2375
      %2377 = vmatmul.f32.gmra.mxu0 %v2314
      %v2378 = vpop.f32.mrf.mxu0
      %v2379 = vadd.f32 %v2271, %v2378
      %2380 = vmatmul.f32.gmra.mxu0 %v2317
      %v2381 = vpop.f32.mrf.mxu0
      %v2382 = vadd.f32 %v2271, %v2381
      %2383 = vmatmul.f32.gmra.mxu0 %v2320
      %v2384 = vpop.f32.mrf.mxu0
      %v2385 = vadd.f32 %v2271, %v2384
      %2386 = vdwg.mxu0
      %v2387 = vrot.slane %v484, 2
      %v2388 = vrot.slane %v485, 2
      %v2389 = vsel %vm758, %v2387, %v2388
      %v2390 = vrot.slane %v486, 2
      %v2391 = vsel %vm758, %v2388, %v2390
      %2424 = vrot.lane.b32.xlu0 %v2340, 116
      %v2425 = vpop.permute.xlu0 %2424
      %2426 = vrot.lane.b32.xlu0 %v2343, 116
      %v2427 = vpop.permute.xlu0 %2426
      %2428 = vrot.lane.b32.xlu0 %v2346, 116
      %v2429 = vpop.permute.xlu0 %2428
      %2430 = vrot.lane.b32.xlu0 %v2349, 116
      %v2431 = vpop.permute.xlu0 %2430
      %2432 = vrot.lane.b32.xlu0 %v2352, 116
      %v2433 = vpop.permute.xlu0 %2432
      %2434 = vrot.lane.b32.xlu0 %v2355, 116
      %v2435 = vpop.permute.xlu0 %2434
      %2436 = vrot.lane.b32.xlu0 %v2358, 116
      %v2437 = vpop.permute.xlu0 %2436
      %2438 = vrot.lane.b32.xlu0 %v2361, 116
      %v2439 = vpop.permute.xlu0 %2438
      %2440 = vrot.lane.b32.xlu0 %v2364, 116
      %v2441 = vpop.permute.xlu0 %2440
      %2442 = vrot.lane.b32.xlu0 %v2367, 116
      %v2443 = vpop.permute.xlu0 %2442
      %2444 = vrot.lane.b32.xlu0 %v2370, 116
      %v2445 = vpop.permute.xlu0 %2444
      %2446 = vrot.lane.b32.xlu0 %v2373, 116
      %v2447 = vpop.permute.xlu0 %2446
      %2448 = vrot.lane.b32.xlu0 %v2376, 116
      %v2449 = vpop.permute.xlu0 %2448
      %2450 = vrot.lane.b32.xlu0 %v2379, 116
      %v2451 = vpop.permute.xlu0 %2450
      %2452 = vrot.lane.b32.xlu0 %v2382, 116
      %v2453 = vpop.permute.xlu0 %2452
      %2454 = vrot.lane.b32.xlu0 %v2385, 116
      %v2455 = vpop.permute.xlu0 %2454
      %v2472 = vsub.f32 %v771, %v2425
      %v2473 = vsub.f32 %v773, %v2427
      %v2474 = vsub.f32 %v776, %v2429
      %v2475 = vsub.f32 %v778, %v2431
      %v2476 = vsub.f32 %v781, %v2433
      %v2477 = vsub.f32 %v783, %v2435
      %v2478 = vsub.f32 %v786, %v2437
      %v2479 = vsub.f32 %v788, %v2439
      %v2480 = vsub.f32 %v791, %v2441
      %v2481 = vsub.f32 %v793, %v2443
      %v2482 = vsub.f32 %v796, %v2445
      %v2483 = vsub.f32 %v798, %v2447
      %v2484 = vsub.f32 %v1429, %v2449
      %v2485 = vsub.f32 %v1431, %v2451
      %v2486 = vsub.f32 %v2389, %v2453
      %v2487 = vsub.f32 %v2391, %v2455
      %v2488 = vround.ne.pseudo %v2472
      %v2489 = vround.ne.pseudo %v2473
      %v2490 = vround.ne.pseudo %v2474
      %v2491 = vround.ne.pseudo %v2475
      %v2492 = vround.ne.pseudo %v2476
      %v2493 = vround.ne.pseudo %v2477
      %v2494 = vround.ne.pseudo %v2478
      %v2495 = vround.ne.pseudo %v2479
      %v2496 = vround.ne.pseudo %v2480
      %v2497 = vround.ne.pseudo %v2481
      %v2498 = vround.ne.pseudo %v2482
      %v2499 = vround.ne.pseudo %v2483
      %v2500 = vround.ne.pseudo %v2484
      %v2501 = vround.ne.pseudo %v2485
      %v2502 = vround.ne.pseudo %v2486
      %v2503 = vround.ne.pseudo %v2487
      %v2504 = vand.u32 2147483647, %v2488
      %v2505 = vand.u32 2147483647, %v2489
      %v2506 = vand.u32 2147483647, %v2490
      %v2507 = vand.u32 2147483647, %v2491
      %v2508 = vand.u32 2147483647, %v2492
      %v2509 = vand.u32 2147483647, %v2493
      %v2510 = vand.u32 2147483647, %v2494
      %v2511 = vand.u32 2147483647, %v2495
      %v2512 = vand.u32 2147483647, %v2496
      %v2513 = vand.u32 2147483647, %v2497
      %v2514 = vand.u32 2147483647, %v2498
      %v2515 = vand.u32 2147483647, %v2499
      %v2516 = vand.u32 2147483647, %v2500
      %v2517 = vand.u32 2147483647, %v2501
      %v2518 = vand.u32 2147483647, %v2502
      %v2519 = vand.u32 2147483647, %v2503
      %v2520 = vmax.f32 %v2340, 0.11
      %v2521 = vmax.f32 %v2343, 0.11
      %v2522 = vmax.f32 %v2346, 0.11
      %v2523 = vmax.f32 %v2349, 0.11
      %v2524 = vmax.f32 %v2352, 0.11
      %v2525 = vmax.f32 %v2355, 0.11
      %v2526 = vmax.f32 %v2358, 0.11
      %v2527 = vmax.f32 %v2361, 0.11
      %v2528 = vmax.f32 %v2364, 0.11
      %v2529 = vmax.f32 %v2367, 0.11
      %v2530 = vmax.f32 %v2370, 0.11
      %v2531 = vmax.f32 %v2373, 0.11
      %v2532 = vmax.f32 %v2376, 0.11
      %v2533 = vmax.f32 %v2379, 0.11
      %v2534 = vmax.f32 %v2382, 0.11
      %v2535 = vmax.f32 %v2385, 0.11
      %v2536 = vrcp.pop %v2520
      %v2537 = vrcp.pop %v2521
      %v2538 = vrcp.pop %v2522
      %v2539 = vrcp.pop %v2523
      %v2540 = vrcp.pop %v2524
      %v2541 = vrcp.pop %v2525
      %v2542 = vrcp.pop %v2526
      %v2543 = vrcp.pop %v2527
      %v2544 = vrcp.pop %v2528
      %v2545 = vrcp.pop %v2529
      %v2546 = vrcp.pop %v2530
      %v2547 = vrcp.pop %v2531
      %v2548 = vrcp.pop %v2532
      %v2549 = vrcp.pop %v2533
      %v2550 = vrcp.pop %v2534
      %v2551 = vrcp.pop %v2535
      %v2552 = vsub.f32 0.5, %v2504
      %v2553 = vsub.f32 0.5, %v2505
      %v2554 = vsub.f32 0.5, %v2506
      %v2555 = vsub.f32 0.5, %v2507
      %v2556 = vsub.f32 0.5, %v2508
      %v2557 = vsub.f32 0.5, %v2509
      %v2558 = vsub.f32 0.5, %v2510
      %v2559 = vsub.f32 0.5, %v2511
      %v2560 = vsub.f32 0.5, %v2512
      %v2561 = vsub.f32 0.5, %v2513
      %v2562 = vsub.f32 0.5, %v2514
      %v2563 = vsub.f32 0.5, %v2515
      %v2564 = vsub.f32 0.5, %v2516
      %v2565 = vsub.f32 0.5, %v2517
      %v2566 = vsub.f32 0.5, %v2518
      %v2567 = vsub.f32 0.5, %v2519
      %v2568 = vmul.f32 %v2552, %v2536
      %v2569 = vmul.f32 %v2553, %v2537
      %v2570 = vmul.f32 %v2554, %v2538
      %v2571 = vmul.f32 %v2555, %v2539
      %v2572 = vmul.f32 %v2556, %v2540
      %v2573 = vmul.f32 %v2557, %v2541
      %v2574 = vmul.f32 %v2558, %v2542
      %v2575 = vmul.f32 %v2559, %v2543
      %v2576 = vmul.f32 %v2560, %v2544
      %v2577 = vmul.f32 %v2561, %v2545
      %v2578 = vmul.f32 %v2562, %v2546
      %v2579 = vmul.f32 %v2563, %v2547
      %v2580 = vmul.f32 %v2564, %v2548
      %v2581 = vmul.f32 %v2565, %v2549
      %v2582 = vmul.f32 %v2566, %v2550
      %v2583 = vmul.f32 %v2567, %v2551
      %v2584 = vmul.f32 %v2568, -0.70710677
      %v2585 = vmul.f32 %v2569, -0.70710677
      %v2586 = vmul.f32 %v2570, -0.70710677
      %v2587 = vmul.f32 %v2571, -0.70710677
      %v2588 = vmul.f32 %v2572, -0.70710677
      %v2589 = vmul.f32 %v2573, -0.70710677
      %v2590 = vmul.f32 %v2574, -0.70710677
      %v2591 = vmul.f32 %v2575, -0.70710677
      %v2592 = vmul.f32 %v2576, -0.70710677
      %v2593 = vmul.f32 %v2577, -0.70710677
      %v2594 = vmul.f32 %v2578, -0.70710677
      %v2595 = vmul.f32 %v2579, -0.70710677
      %v2596 = vmul.f32 %v2580, -0.70710677
      %v2597 = vmul.f32 %v2581, -0.70710677
      %v2598 = vmul.f32 %v2582, -0.70710677
      %v2599 = vmul.f32 %v2583, -0.70710677
      %v2600 = vand.u32 2147483647, %v2584
      %v2601 = vand.u32 2147483647, %v2585
      %v2602 = vand.u32 2147483647, %v2586
      %v2603 = vand.u32 2147483647, %v2587
      %v2604 = vand.u32 2147483647, %v2588
      %v2605 = vand.u32 2147483647, %v2589
      %v2606 = vand.u32 2147483647, %v2590
      %v2607 = vand.u32 2147483647, %v2591
      %v2608 = vand.u32 2147483647, %v2592
      %v2609 = vand.u32 2147483647, %v2593
      %v2610 = vand.u32 2147483647, %v2594
      %v2611 = vand.u32 2147483647, %v2595
      %v2612 = vand.u32 2147483647, %v2596
      %v2613 = vand.u32 2147483647, %v2597
      %v2614 = vand.u32 2147483647, %v2598
      %v2615 = vand.u32 2147483647, %v2599
      %v2616 = vmul.f32 %v2600, 0.5
      %v2617 = vmul.f32 %v2601, 0.5
      %v2618 = vmul.f32 %v2602, 0.5
      %v2619 = vmul.f32 %v2603, 0.5
      %v2620 = vmul.f32 %v2604, 0.5
      %v2621 = vmul.f32 %v2605, 0.5
      %v2622 = vmul.f32 %v2606, 0.5
      %v2623 = vmul.f32 %v2607, 0.5
      %v2624 = vmul.f32 %v2608, 0.5
      %v2625 = vmul.f32 %v2609, 0.5
      %v2626 = vmul.f32 %v2610, 0.5
      %v2627 = vmul.f32 %v2611, 0.5
      %v2628 = vmul.f32 %v2612, 0.5
      %v2629 = vmul.f32 %v2613, 0.5
      %v2630 = vmul.f32 %v2614, 0.5
      %v2631 = vmul.f32 %v2615, 0.5
      %v2632 = vadd.f32 %v2616, 1.0
      %v2633 = vadd.f32 %v2617, 1.0
      %v2634 = vadd.f32 %v2618, 1.0
      %v2635 = vadd.f32 %v2619, 1.0
      %v2636 = vadd.f32 %v2620, 1.0
      %v2637 = vadd.f32 %v2621, 1.0
      %v2638 = vadd.f32 %v2622, 1.0
      %v2639 = vadd.f32 %v2623, 1.0
      %v2640 = vadd.f32 %v2624, 1.0
      %v2641 = vadd.f32 %v2625, 1.0
      %v2642 = vadd.f32 %v2626, 1.0
      %v2643 = vadd.f32 %v2627, 1.0
      %v2644 = vadd.f32 %v2628, 1.0
      %v2645 = vadd.f32 %v2629, 1.0
      %v2646 = vadd.f32 %v2630, 1.0
      %v2647 = vadd.f32 %v2631, 1.0
      %v2648 = vrcp.pop %v2632
      %v2649 = vmul.f32 %v2632, %v2648
      %v2650 = vsub.f32 1.0, %v2649
      %v2651 = vmul.f32 %v2648, %v2650
      %v2652 = vadd.f32 %v2648, %v2651
      %vm2653 = vweird.f32 %v2632
      %vm2654 = vweird.f32 %v2648
      %vm2655 = vmor %vm2653, %vm2654
      %v2656 = vsel %vm2655, %v2648, %v2652
      %v2657 = vand.u32 2147483647, %v2632
      %vm2658 = vcmp.eq.f32.partialorder %v2657, 8.507059e+37
      %v2659 = vand.u32 %v2632, 2147483648
      %v2660 = vor.u32 1.1754944e-38, %v2659
      %v2661 = vsel %vm2658, %v2660, %v2656
      %v2662 = vrcp.pop %v2633
      %v2663 = vmul.f32 %v2633, %v2662
      %v2664 = vsub.f32 1.0, %v2663
      %v2665 = vmul.f32 %v2662, %v2664
      %v2666 = vadd.f32 %v2662, %v2665
      %vm2667 = vweird.f32 %v2633
      %vm2668 = vweird.f32 %v2662
      %vm2669 = vmor %vm2667, %vm2668
      %v2670 = vsel %vm2669, %v2662, %v2666
      %v2671 = vand.u32 2147483647, %v2633
      %vm2672 = vcmp.eq.f32.partialorder %v2671, 8.507059e+37
      %v2673 = vand.u32 %v2633, 2147483648
      %v2674 = vor.u32 1.1754944e-38, %v2673
      %v2675 = vsel %vm2672, %v2674, %v2670
      %v2676 = vrcp.pop %v2634
      %v2677 = vmul.f32 %v2634, %v2676
      %v2678 = vsub.f32 1.0, %v2677
      %v2679 = vmul.f32 %v2676, %v2678
      %v2680 = vadd.f32 %v2676, %v2679
      %vm2681 = vweird.f32 %v2634
      %vm2682 = vweird.f32 %v2676
      %vm2683 = vmor %vm2681, %vm2682
      %v2684 = vsel %vm2683, %v2676, %v2680
      %v2685 = vand.u32 2147483647, %v2634
      %vm2686 = vcmp.eq.f32.partialorder %v2685, 8.507059e+37
      %v2687 = vand.u32 %v2634, 2147483648
      %v2688 = vor.u32 1.1754944e-38, %v2687
      %v2689 = vsel %vm2686, %v2688, %v2684
      %v2690 = vrcp.pop %v2635
      %v2691 = vmul.f32 %v2635, %v2690
      %v2692 = vsub.f32 1.0, %v2691
      %v2693 = vmul.f32 %v2690, %v2692
      %v2694 = vadd.f32 %v2690, %v2693
      %vm2695 = vweird.f32 %v2635
      %vm2696 = vweird.f32 %v2690
      %vm2697 = vmor %vm2695, %vm2696
      %v2698 = vsel %vm2697, %v2690, %v2694
      %v2699 = vand.u32 2147483647, %v2635
      %vm2700 = vcmp.eq.f32.partialorder %v2699, 8.507059e+37
      %v2701 = vand.u32 %v2635, 2147483648
      %v2702 = vor.u32 1.1754944e-38, %v2701
      %v2703 = vsel %vm2700, %v2702, %v2698
      %v2704 = vrcp.pop %v2636
      %v2705 = vmul.f32 %v2636, %v2704
      %v2706 = vsub.f32 1.0, %v2705
      %v2707 = vmul.f32 %v2704, %v2706
      %v2708 = vadd.f32 %v2704, %v2707
      %vm2709 = vweird.f32 %v2636
      %vm2710 = vweird.f32 %v2704
      %vm2711 = vmor %vm2709, %vm2710
      %v2712 = vsel %vm2711, %v2704, %v2708
      %v2713 = vand.u32 2147483647, %v2636
      %vm2714 = vcmp.eq.f32.partialorder %v2713, 8.507059e+37
      %v2715 = vand.u32 %v2636, 2147483648
      %v2716 = vor.u32 1.1754944e-38, %v2715
      %v2717 = vsel %vm2714, %v2716, %v2712
      %v2718 = vrcp.pop %v2637
      %v2719 = vmul.f32 %v2637, %v2718
      %v2720 = vsub.f32 1.0, %v2719
      %v2721 = vmul.f32 %v2718, %v2720
      %v2722 = vadd.f32 %v2718, %v2721
      %vm2723 = vweird.f32 %v2637
      %vm2724 = vweird.f32 %v2718
      %vm2725 = vmor %vm2723, %vm2724
      %v2726 = vsel %vm2725, %v2718, %v2722
      %v2727 = vand.u32 2147483647, %v2637
      %vm2728 = vcmp.eq.f32.partialorder %v2727, 8.507059e+37
      %v2729 = vand.u32 %v2637, 2147483648
      %v2730 = vor.u32 1.1754944e-38, %v2729
      %v2731 = vsel %vm2728, %v2730, %v2726
      %v2732 = vrcp.pop %v2638
      %v2733 = vmul.f32 %v2638, %v2732
      %v2734 = vsub.f32 1.0, %v2733
      %v2735 = vmul.f32 %v2732, %v2734
      %v2736 = vadd.f32 %v2732, %v2735
      %vm2737 = vweird.f32 %v2638
      %vm2738 = vweird.f32 %v2732
      %vm2739 = vmor %vm2737, %vm2738
      %v2740 = vsel %vm2739, %v2732, %v2736
      %v2741 = vand.u32 2147483647, %v2638
      %vm2742 = vcmp.eq.f32.partialorder %v2741, 8.507059e+37
      %v2743 = vand.u32 %v2638, 2147483648
      %v2744 = vor.u32 1.1754944e-38, %v2743
      %v2745 = vsel %vm2742, %v2744, %v2740
      %v2746 = vrcp.pop %v2639
      %v2747 = vmul.f32 %v2639, %v2746
      %v2748 = vsub.f32 1.0, %v2747
      %v2749 = vmul.f32 %v2746, %v2748
      %v2750 = vadd.f32 %v2746, %v2749
      %vm2751 = vweird.f32 %v2639
      %vm2752 = vweird.f32 %v2746
      %vm2753 = vmor %vm2751, %vm2752
      %v2754 = vsel %vm2753, %v2746, %v2750
      %v2755 = vand.u32 2147483647, %v2639
      %vm2756 = vcmp.eq.f32.partialorder %v2755, 8.507059e+37
      %v2757 = vand.u32 %v2639, 2147483648
      %v2758 = vor.u32 1.1754944e-38, %v2757
      %v2759 = vsel %vm2756, %v2758, %v2754
      %v2760 = vrcp.pop %v2640
      %v2761 = vmul.f32 %v2640, %v2760
      %v2762 = vsub.f32 1.0, %v2761
      %v2763 = vmul.f32 %v2760, %v2762
      %v2764 = vadd.f32 %v2760, %v2763
      %vm2765 = vweird.f32 %v2640
      %vm2766 = vweird.f32 %v2760
      %vm2767 = vmor %vm2765, %vm2766
      %v2768 = vsel %vm2767, %v2760, %v2764
      %v2769 = vand.u32 2147483647, %v2640
      %vm2770 = vcmp.eq.f32.partialorder %v2769, 8.507059e+37
      %v2771 = vand.u32 %v2640, 2147483648
      %v2772 = vor.u32 1.1754944e-38, %v2771
      %v2773 = vsel %vm2770, %v2772, %v2768
      %v2774 = vrcp.pop %v2641
      %v2775 = vmul.f32 %v2641, %v2774
      %v2776 = vsub.f32 1.0, %v2775
      %v2777 = vmul.f32 %v2774, %v2776
      %v2778 = vadd.f32 %v2774, %v2777
      %vm2779 = vweird.f32 %v2641
      %vm2780 = vweird.f32 %v2774
      %vm2781 = vmor %vm2779, %vm2780
      %v2782 = vsel %vm2781, %v2774, %v2778
      %v2783 = vand.u32 2147483647, %v2641
      %vm2784 = vcmp.eq.f32.partialorder %v2783, 8.507059e+37
      %v2785 = vand.u32 %v2641, 2147483648
      %v2786 = vor.u32 1.1754944e-38, %v2785
      %v2787 = vsel %vm2784, %v2786, %v2782
      %v2788 = vrcp.pop %v2642
      %v2789 = vmul.f32 %v2642, %v2788
      %v2790 = vsub.f32 1.0, %v2789
      %v2791 = vmul.f32 %v2788, %v2790
      %v2792 = vadd.f32 %v2788, %v2791
      %vm2793 = vweird.f32 %v2642
      %vm2794 = vweird.f32 %v2788
      %vm2795 = vmor %vm2793, %vm2794
      %v2796 = vsel %vm2795, %v2788, %v2792
      %v2797 = vand.u32 2147483647, %v2642
      %vm2798 = vcmp.eq.f32.partialorder %v2797, 8.507059e+37
      %v2799 = vand.u32 %v2642, 2147483648
      %v2800 = vor.u32 1.1754944e-38, %v2799
      %v2801 = vsel %vm2798, %v2800, %v2796
      %v2802 = vrcp.pop %v2643
      %v2803 = vmul.f32 %v2643, %v2802
      %v2804 = vsub.f32 1.0, %v2803
      %v2805 = vmul.f32 %v2802, %v2804
      %v2806 = vadd.f32 %v2802, %v2805
      %vm2807 = vweird.f32 %v2643
      %vm2808 = vweird.f32 %v2802
      %vm2809 = vmor %vm2807, %vm2808
      %v2810 = vsel %vm2809, %v2802, %v2806
      %v2811 = vand.u32 2147483647, %v2643
      %vm2812 = vcmp.eq.f32.partialorder %v2811, 8.507059e+37
      %v2813 = vand.u32 %v2643, 2147483648
      %v2814 = vor.u32 1.1754944e-38, %v2813
      %v2815 = vsel %vm2812, %v2814, %v2810
      %v2816 = vrcp.pop %v2644
      %v2817 = vmul.f32 %v2644, %v2816
      %v2818 = vsub.f32 1.0, %v2817
      %v2819 = vmul.f32 %v2816, %v2818
      %v2820 = vadd.f32 %v2816, %v2819
      %vm2821 = vweird.f32 %v2644
      %vm2822 = vweird.f32 %v2816
      %vm2823 = vmor %vm2821, %vm2822
      %v2824 = vsel %vm2823, %v2816, %v2820
      %v2825 = vand.u32 2147483647, %v2644
      %vm2826 = vcmp.eq.f32.partialorder %v2825, 8.507059e+37
      %v2827 = vand.u32 %v2644, 2147483648
      %v2828 = vor.u32 1.1754944e-38, %v2827
      %v2829 = vsel %vm2826, %v2828, %v2824
      %v2830 = vrcp.pop %v2645
      %v2831 = vmul.f32 %v2645, %v2830
      %v2832 = vsub.f32 1.0, %v2831
      %v2833 = vmul.f32 %v2830, %v2832
      %v2834 = vadd.f32 %v2830, %v2833
      %vm2835 = vweird.f32 %v2645
      %vm2836 = vweird.f32 %v2830
      %vm2837 = vmor %vm2835, %vm2836
      %v2838 = vsel %vm2837, %v2830, %v2834
      %v2839 = vand.u32 2147483647, %v2645
      %vm2840 = vcmp.eq.f32.partialorder %v2839, 8.507059e+37
      %v2841 = vand.u32 %v2645, 2147483648
      %v2842 = vor.u32 1.1754944e-38, %v2841
      %v2843 = vsel %vm2840, %v2842, %v2838
      %v2844 = vrcp.pop %v2646
      %v2845 = vmul.f32 %v2646, %v2844
      %v2846 = vsub.f32 1.0, %v2845
      %v2847 = vmul.f32 %v2844, %v2846
      %v2848 = vadd.f32 %v2844, %v2847
      %vm2849 = vweird.f32 %v2646
      %vm2850 = vweird.f32 %v2844
      %vm2851 = vmor %vm2849, %vm2850
      %v2852 = vsel %vm2851, %v2844, %v2848
      %v2853 = vand.u32 2147483647, %v2646
      %vm2854 = vcmp.eq.f32.partialorder %v2853, 8.507059e+37
      %v2855 = vand.u32 %v2646, 2147483648
      %v2856 = vor.u32 1.1754944e-38, %v2855
      %v2857 = vsel %vm2854, %v2856, %v2852
      %v2858 = vrcp.pop %v2647
      %v2859 = vmul.f32 %v2647, %v2858
      %v2860 = vsub.f32 1.0, %v2859
      %v2861 = vmul.f32 %v2858, %v2860
      %v2862 = vadd.f32 %v2858, %v2861
      %vm2863 = vweird.f32 %v2647
      %vm2864 = vweird.f32 %v2858
      %vm2865 = vmor %vm2863, %vm2864
      %v2866 = vsel %vm2865, %v2858, %v2862
      %v2867 = vand.u32 2147483647, %v2647
      %vm2868 = vcmp.eq.f32.partialorder %v2867, 8.507059e+37
      %v2869 = vand.u32 %v2647, 2147483648
      %v2870 = vor.u32 1.1754944e-38, %v2869
      %v2871 = vsel %vm2868, %v2870, %v2866
      %v2872 = vsub.f32 0.0, %v2600
      %v2873 = vsub.f32 0.0, %v2601
      %v2874 = vsub.f32 0.0, %v2602
      %v2875 = vsub.f32 0.0, %v2603
      %v2876 = vsub.f32 0.0, %v2604
      %v2877 = vsub.f32 0.0, %v2605
      %v2878 = vsub.f32 0.0, %v2606
      %v2879 = vsub.f32 0.0, %v2607
      %v2880 = vsub.f32 0.0, %v2608
      %v2881 = vsub.f32 0.0, %v2609
      %v2882 = vsub.f32 0.0, %v2610
      %v2883 = vsub.f32 0.0, %v2611
      %v2884 = vsub.f32 0.0, %v2612
      %v2885 = vsub.f32 0.0, %v2613
      %v2886 = vsub.f32 0.0, %v2614
      %v2887 = vsub.f32 0.0, %v2615
      %v2888 = vmul.f32 %v2872, %v2600
      %v2889 = vmul.f32 %v2873, %v2601
      %v2890 = vmul.f32 %v2874, %v2602
      %v2891 = vmul.f32 %v2875, %v2603
      %v2892 = vmul.f32 %v2876, %v2604
      %v2893 = vmul.f32 %v2877, %v2605
      %v2894 = vmul.f32 %v2878, %v2606
      %v2895 = vmul.f32 %v2879, %v2607
      %v2896 = vmul.f32 %v2880, %v2608
      %v2897 = vmul.f32 %v2881, %v2609
      %v2898 = vmul.f32 %v2882, %v2610
      %v2899 = vmul.f32 %v2883, %v2611
      %v2900 = vmul.f32 %v2884, %v2612
      %v2901 = vmul.f32 %v2885, %v2613
      %v2902 = vmul.f32 %v2886, %v2614
      %v2903 = vmul.f32 %v2887, %v2615
      %v2904 = vsub.f32 %v2888, 1.2655122
      %v2905 = vsub.f32 %v2889, 1.2655122
      %v2906 = vsub.f32 %v2890, 1.2655122
      %v2907 = vsub.f32 %v2891, 1.2655122
      %v2908 = vsub.f32 %v2892, 1.2655122
      %v2909 = vsub.f32 %v2893, 1.2655122
      %v2910 = vsub.f32 %v2894, 1.2655122
      %v2911 = vsub.f32 %v2895, 1.2655122
      %v2912 = vsub.f32 %v2896, 1.2655122
      %v2913 = vsub.f32 %v2897, 1.2655122
      %v2914 = vsub.f32 %v2898, 1.2655122
      %v2915 = vsub.f32 %v2899, 1.2655122
      %v2916 = vsub.f32 %v2900, 1.2655122
      %v2917 = vsub.f32 %v2901, 1.2655122
      %v2918 = vsub.f32 %v2902, 1.2655122
      %v2919 = vsub.f32 %v2903, 1.2655122
      %v2920 = vmul.f32 %v2661, 0.17087276
      %v2921 = vmul.f32 %v2675, 0.17087276
      %v2922 = vmul.f32 %v2689, 0.17087276
      %v2923 = vmul.f32 %v2703, 0.17087276
      %v2924 = vmul.f32 %v2717, 0.17087276
      %v2925 = vmul.f32 %v2731, 0.17087276
      %v2926 = vmul.f32 %v2745, 0.17087276
      %v2927 = vmul.f32 %v2759, 0.17087276
      %v2928 = vmul.f32 %v2773, 0.17087276
      %v2929 = vmul.f32 %v2787, 0.17087276
      %v2930 = vmul.f32 %v2801, 0.17087276
      %v2931 = vmul.f32 %v2815, 0.17087276
      %v2932 = vmul.f32 %v2829, 0.17087276
      %v2933 = vmul.f32 %v2843, 0.17087276
      %v2934 = vmul.f32 %v2857, 0.17087276
      %v2935 = vmul.f32 %v2871, 0.17087276
      %v2936 = vadd.f32 %v2920, -0.82215226
      %v2937 = vadd.f32 %v2921, -0.82215226
      %v2938 = vadd.f32 %v2922, -0.82215226
      %v2939 = vadd.f32 %v2923, -0.82215226
      %v2940 = vadd.f32 %v2924, -0.82215226
      %v2941 = vadd.f32 %v2925, -0.82215226
      %v2942 = vadd.f32 %v2926, -0.82215226
      %v2943 = vadd.f32 %v2927, -0.82215226
      %v2944 = vadd.f32 %v2928, -0.82215226
      %v2945 = vadd.f32 %v2929, -0.82215226
      %v2946 = vadd.f32 %v2930, -0.82215226
      %v2947 = vadd.f32 %v2931, -0.82215226
      %v2948 = vadd.f32 %v2932, -0.82215226
      %v2949 = vadd.f32 %v2933, -0.82215226
      %v2950 = vadd.f32 %v2934, -0.82215226
      %v2951 = vadd.f32 %v2935, -0.82215226
      %v2952 = vmul.f32 %v2661, %v2936
      %v2953 = vmul.f32 %v2675, %v2937
      %v2954 = vmul.f32 %v2689, %v2938
      %v2955 = vmul.f32 %v2703, %v2939
      %v2956 = vmul.f32 %v2717, %v2940
      %v2957 = vmul.f32 %v2731, %v2941
      %v2958 = vmul.f32 %v2745, %v2942
      %v2959 = vmul.f32 %v2759, %v2943
      %v2960 = vmul.f32 %v2773, %v2944
      %v2961 = vmul.f32 %v2787, %v2945
      %v2962 = vmul.f32 %v2801, %v2946
      %v2963 = vmul.f32 %v2815, %v2947
      %v2964 = vmul.f32 %v2829, %v2948
      %v2965 = vmul.f32 %v2843, %v2949
      %v2966 = vmul.f32 %v2857, %v2950
      %v2967 = vmul.f32 %v2871, %v2951
      %v2968 = vadd.f32 %v2952, 1.4885159
      %v2969 = vadd.f32 %v2953, 1.4885159
      %v2970 = vadd.f32 %v2954, 1.4885159
      %v2971 = vadd.f32 %v2955, 1.4885159
      %v2972 = vadd.f32 %v2956, 1.4885159
      %v2973 = vadd.f32 %v2957, 1.4885159
      %v2974 = vadd.f32 %v2958, 1.4885159
      %v2975 = vadd.f32 %v2959, 1.4885159
      %v2976 = vadd.f32 %v2960, 1.4885159
      %v2977 = vadd.f32 %v2961, 1.4885159
      %v2978 = vadd.f32 %v2962, 1.4885159
      %v2979 = vadd.f32 %v2963, 1.4885159
      %v2980 = vadd.f32 %v2964, 1.4885159
      %v2981 = vadd.f32 %v2965, 1.4885159
      %v2982 = vadd.f32 %v2966, 1.4885159
      %v2983 = vadd.f32 %v2967, 1.4885159
      %v2984 = vmul.f32 %v2661, %v2968
      %v2985 = vmul.f32 %v2675, %v2969
      %v2986 = vmul.f32 %v2689, %v2970
      %v2987 = vmul.f32 %v2703, %v2971
      %v2988 = vmul.f32 %v2717, %v2972
      %v2989 = vmul.f32 %v2731, %v2973
      %v2990 = vmul.f32 %v2745, %v2974
      %v2991 = vmul.f32 %v2759, %v2975
      %v2992 = vmul.f32 %v2773, %v2976
      %v2993 = vmul.f32 %v2787, %v2977
      %v2994 = vmul.f32 %v2801, %v2978
      %v2995 = vmul.f32 %v2815, %v2979
      %v2996 = vmul.f32 %v2829, %v2980
      %v2997 = vmul.f32 %v2843, %v2981
      %v2998 = vmul.f32 %v2857, %v2982
      %v2999 = vmul.f32 %v2871, %v2983
      %v3000 = vadd.f32 %v2984, -1.135204
      %v3001 = vadd.f32 %v2985, -1.135204
      %v3002 = vadd.f32 %v2986, -1.135204
      %v3003 = vadd.f32 %v2987, -1.135204
      %v3004 = vadd.f32 %v2988, -1.135204
      %v3005 = vadd.f32 %v2989, -1.135204
      %v3006 = vadd.f32 %v2990, -1.135204
      %v3007 = vadd.f32 %v2991, -1.135204
      %v3008 = vadd.f32 %v2992, -1.135204
      %v3009 = vadd.f32 %v2993, -1.135204
      %v3010 = vadd.f32 %v2994, -1.135204
      %v3011 = vadd.f32 %v2995, -1.135204
      %v3012 = vadd.f32 %v2996, -1.135204
      %v3013 = vadd.f32 %v2997, -1.135204
      %v3014 = vadd.f32 %v2998, -1.135204
      %v3015 = vadd.f32 %v2999, -1.135204
      %v3016 = vmul.f32 %v2661, %v3000
      %v3017 = vmul.f32 %v2675, %v3001
      %v3018 = vmul.f32 %v2689, %v3002
      %v3019 = vmul.f32 %v2703, %v3003
      %v3020 = vmul.f32 %v2717, %v3004
      %v3021 = vmul.f32 %v2731, %v3005
      %v3022 = vmul.f32 %v2745, %v3006
      %v3023 = vmul.f32 %v2759, %v3007
      %v3024 = vmul.f32 %v2773, %v3008
      %v3025 = vmul.f32 %v2787, %v3009
      %v3026 = vmul.f32 %v2801, %v3010
      %v3027 = vmul.f32 %v2815, %v3011
      %v3028 = vmul.f32 %v2829, %v3012
      %v3029 = vmul.f32 %v2843, %v3013
      %v3030 = vmul.f32 %v2857, %v3014
      %v3031 = vmul.f32 %v2871, %v3015
      %v3032 = vadd.f32 %v3016, 0.27886808
      %v3033 = vadd.f32 %v3017, 0.27886808
      %v3034 = vadd.f32 %v3018, 0.27886808
      %v3035 = vadd.f32 %v3019, 0.27886808
      %v3036 = vadd.f32 %v3020, 0.27886808
      %v3037 = vadd.f32 %v3021, 0.27886808
      %v3038 = vadd.f32 %v3022, 0.27886808
      %v3039 = vadd.f32 %v3023, 0.27886808
      %v3040 = vadd.f32 %v3024, 0.27886808
      %v3041 = vadd.f32 %v3025, 0.27886808
      %v3042 = vadd.f32 %v3026, 0.27886808
      %v3043 = vadd.f32 %v3027, 0.27886808
      %v3044 = vadd.f32 %v3028, 0.27886808
      %v3045 = vadd.f32 %v3029, 0.27886808
      %v3046 = vadd.f32 %v3030, 0.27886808
      %v3047 = vadd.f32 %v3031, 0.27886808
      %v3048 = vmul.f32 %v2661, %v3032
      %v3049 = vmul.f32 %v2675, %v3033
      %v3050 = vmul.f32 %v2689, %v3034
      %v3051 = vmul.f32 %v2703, %v3035
      %v3052 = vmul.f32 %v2717, %v3036
      %v3053 = vmul.f32 %v2731, %v3037
      %v3054 = vmul.f32 %v2745, %v3038
      %v3055 = vmul.f32 %v2759, %v3039
      %v3056 = vmul.f32 %v2773, %v3040
      %v3057 = vmul.f32 %v2787, %v3041
      %v3058 = vmul.f32 %v2801, %v3042
      %v3059 = vmul.f32 %v2815, %v3043
      %v3060 = vmul.f32 %v2829, %v3044
      %v3061 = vmul.f32 %v2843, %v3045
      %v3062 = vmul.f32 %v2857, %v3046
      %v3063 = vmul.f32 %v2871, %v3047
      %v3064 = vadd.f32 %v3048, -0.18628806
      %v3065 = vadd.f32 %v3049, -0.18628806
      %v3066 = vadd.f32 %v3050, -0.18628806
      %v3067 = vadd.f32 %v3051, -0.18628806
      %v3068 = vadd.f32 %v3052, -0.18628806
      %v3069 = vadd.f32 %v3053, -0.18628806
      %v3070 = vadd.f32 %v3054, -0.18628806
      %v3071 = vadd.f32 %v3055, -0.18628806
      %v3072 = vadd.f32 %v3056, -0.18628806
      %v3073 = vadd.f32 %v3057, -0.18628806
      %v3074 = vadd.f32 %v3058, -0.18628806
      %v3075 = vadd.f32 %v3059, -0.18628806
      %v3076 = vadd.f32 %v3060, -0.18628806
      %v3077 = vadd.f32 %v3061, -0.18628806
      %v3078 = vadd.f32 %v3062, -0.18628806
      %v3079 = vadd.f32 %v3063, -0.18628806
      %v3080 = vmul.f32 %v2661, %v3064
      %v3081 = vmul.f32 %v2675, %v3065
      %v3082 = vmul.f32 %v2689, %v3066
      %v3083 = vmul.f32 %v2703, %v3067
      %v3084 = vmul.f32 %v2717, %v3068
      %v3085 = vmul.f32 %v2731, %v3069
      %v3086 = vmul.f32 %v2745, %v3070
      %v3087 = vmul.f32 %v2759, %v3071
      %v3088 = vmul.f32 %v2773, %v3072
      %v3089 = vmul.f32 %v2787, %v3073
      %v3090 = vmul.f32 %v2801, %v3074
      %v3091 = vmul.f32 %v2815, %v3075
      %v3092 = vmul.f32 %v2829, %v3076
      %v3093 = vmul.f32 %v2843, %v3077
      %v3094 = vmul.f32 %v2857, %v3078
      %v3095 = vmul.f32 %v2871, %v3079
      %v3096 = vadd.f32 %v3080, 0.09678418
      %v3097 = vadd.f32 %v3081, 0.09678418
      %v3098 = vadd.f32 %v3082, 0.09678418
      %v3099 = vadd.f32 %v3083, 0.09678418
      %v3100 = vadd.f32 %v3084, 0.09678418
      %v3101 = vadd.f32 %v3085, 0.09678418
      %v3102 = vadd.f32 %v3086, 0.09678418
      %v3103 = vadd.f32 %v3087, 0.09678418
      %v3104 = vadd.f32 %v3088, 0.09678418
      %v3105 = vadd.f32 %v3089, 0.09678418
      %v3106 = vadd.f32 %v3090, 0.09678418
      %v3107 = vadd.f32 %v3091, 0.09678418
      %v3108 = vadd.f32 %v3092, 0.09678418
      %v3109 = vadd.f32 %v3093, 0.09678418
      %v3110 = vadd.f32 %v3094, 0.09678418
      %v3111 = vadd.f32 %v3095, 0.09678418
      %v3112 = vmul.f32 %v2661, %v3096
      %v3113 = vmul.f32 %v2675, %v3097
      %v3114 = vmul.f32 %v2689, %v3098
      %v3115 = vmul.f32 %v2703, %v3099
      %v3116 = vmul.f32 %v2717, %v3100
      %v3117 = vmul.f32 %v2731, %v3101
      %v3118 = vmul.f32 %v2745, %v3102
      %v3119 = vmul.f32 %v2759, %v3103
      %v3120 = vmul.f32 %v2773, %v3104
      %v3121 = vmul.f32 %v2787, %v3105
      %v3122 = vmul.f32 %v2801, %v3106
      %v3123 = vmul.f32 %v2815, %v3107
      %v3124 = vmul.f32 %v2829, %v3108
      %v3125 = vmul.f32 %v2843, %v3109
      %v3126 = vmul.f32 %v2857, %v3110
      %v3127 = vmul.f32 %v2871, %v3111
      %v3128 = vadd.f32 %v3112, 0.37409195
      %v3129 = vadd.f32 %v3113, 0.37409195
      %v3130 = vadd.f32 %v3114, 0.37409195
      %v3131 = vadd.f32 %v3115, 0.37409195
      %v3132 = vadd.f32 %v3116, 0.37409195
      %v3133 = vadd.f32 %v3117, 0.37409195
      %v3134 = vadd.f32 %v3118, 0.37409195
      %v3135 = vadd.f32 %v3119, 0.37409195
      %v3136 = vadd.f32 %v3120, 0.37409195
      %v3137 = vadd.f32 %v3121, 0.37409195
      %v3138 = vadd.f32 %v3122, 0.37409195
      %v3139 = vadd.f32 %v3123, 0.37409195
      %v3140 = vadd.f32 %v3124, 0.37409195
      %v3141 = vadd.f32 %v3125, 0.37409195
      %v3142 = vadd.f32 %v3126, 0.37409195
      %v3143 = vadd.f32 %v3127, 0.37409195
      %v3144 = vmul.f32 %v2661, %v3128
      %v3145 = vmul.f32 %v2675, %v3129
      %v3146 = vmul.f32 %v2689, %v3130
      %v3147 = vmul.f32 %v2703, %v3131
      %v3148 = vmul.f32 %v2717, %v3132
      %v3149 = vmul.f32 %v2731, %v3133
      %v3150 = vmul.f32 %v2745, %v3134
      %v3151 = vmul.f32 %v2759, %v3135
      %v3152 = vmul.f32 %v2773, %v3136
      %v3153 = vmul.f32 %v2787, %v3137
      %v3154 = vmul.f32 %v2801, %v3138
      %v3155 = vmul.f32 %v2815, %v3139
      %v3156 = vmul.f32 %v2829, %v3140
      %v3157 = vmul.f32 %v2843, %v3141
      %v3158 = vmul.f32 %v2857, %v3142
      %v3159 = vmul.f32 %v2871, %v3143
      %v3160 = vadd.f32 %v3144, 1.0000237
      %v3161 = vadd.f32 %v3145, 1.0000237
      %v3162 = vadd.f32 %v3146, 1.0000237
      %v3163 = vadd.f32 %v3147, 1.0000237
      %v3164 = vadd.f32 %v3148, 1.0000237
      %v3165 = vadd.f32 %v3149, 1.0000237
      %v3166 = vadd.f32 %v3150, 1.0000237
      %v3167 = vadd.f32 %v3151, 1.0000237
      %v3168 = vadd.f32 %v3152, 1.0000237
      %v3169 = vadd.f32 %v3153, 1.0000237
      %v3170 = vadd.f32 %v3154, 1.0000237
      %v3171 = vadd.f32 %v3155, 1.0000237
      %v3172 = vadd.f32 %v3156, 1.0000237
      %v3173 = vadd.f32 %v3157, 1.0000237
      %v3174 = vadd.f32 %v3158, 1.0000237
      %v3175 = vadd.f32 %v3159, 1.0000237
      %v3176 = vmul.f32 %v2661, %v3160
      %v3177 = vmul.f32 %v2675, %v3161
      %v3178 = vmul.f32 %v2689, %v3162
      %v3179 = vmul.f32 %v2703, %v3163
      %v3180 = vmul.f32 %v2717, %v3164
      %v3181 = vmul.f32 %v2731, %v3165
      %v3182 = vmul.f32 %v2745, %v3166
      %v3183 = vmul.f32 %v2759, %v3167
      %v3184 = vmul.f32 %v2773, %v3168
      %v3185 = vmul.f32 %v2787, %v3169
      %v3186 = vmul.f32 %v2801, %v3170
      %v3187 = vmul.f32 %v2815, %v3171
      %v3188 = vmul.f32 %v2829, %v3172
      %v3189 = vmul.f32 %v2843, %v3173
      %v3190 = vmul.f32 %v2857, %v3174
      %v3191 = vmul.f32 %v2871, %v3175
      %v3192 = vadd.f32 %v2904, %v3176
      %v3193 = vadd.f32 %v2905, %v3177
      %v3194 = vadd.f32 %v2906, %v3178
      %v3195 = vadd.f32 %v2907, %v3179
      %v3196 = vadd.f32 %v2908, %v3180
      %v3197 = vadd.f32 %v2909, %v3181
      %v3198 = vadd.f32 %v2910, %v3182
      %v3199 = vadd.f32 %v2911, %v3183
      %v3200 = vadd.f32 %v2912, %v3184
      %v3201 = vadd.f32 %v2913, %v3185
      %v3202 = vadd.f32 %v2914, %v3186
      %v3203 = vadd.f32 %v2915, %v3187
      %v3204 = vadd.f32 %v2916, %v3188
      %v3205 = vadd.f32 %v2917, %v3189
      %v3206 = vadd.f32 %v2918, %v3190
      %v3207 = vadd.f32 %v2919, %v3191
      %v3208 = vmul.f32 %v3192, 1.442695
      %v3209 = vpow.pop %v3208
      %v3210 = vmul.f32 %v3193, 1.442695
      %v3211 = vpow.pop %v3210
      %v3212 = vmul.f32 %v3194, 1.442695
      %v3213 = vpow.pop %v3212
      %v3214 = vmul.f32 %v3195, 1.442695
      %v3215 = vpow.pop %v3214
      %v3216 = vmul.f32 %v3196, 1.442695
      %v3217 = vpow.pop %v3216
      %v3218 = vmul.f32 %v3197, 1.442695
      %v3219 = vpow.pop %v3218
      %v3220 = vmul.f32 %v3198, 1.442695
      %v3221 = vpow.pop %v3220
      %v3222 = vmul.f32 %v3199, 1.442695
      %v3223 = vpow.pop %v3222
      %v3224 = vmul.f32 %v3200, 1.442695
      %v3225 = vpow.pop %v3224
      %v3226 = vmul.f32 %v3201, 1.442695
      %v3227 = vpow.pop %v3226
      %v3228 = vmul.f32 %v3202, 1.442695
      %v3229 = vpow.pop %v3228
      %v3230 = vmul.f32 %v3203, 1.442695
      %v3231 = vpow.pop %v3230
      %v3232 = vmul.f32 %v3204, 1.442695
      %v3233 = vpow.pop %v3232
      %v3234 = vmul.f32 %v3205, 1.442695
      %v3235 = vpow.pop %v3234
      %v3236 = vmul.f32 %v3206, 1.442695
      %v3237 = vpow.pop %v3236
      %v3238 = vmul.f32 %v3207, 1.442695
      %v3239 = vpow.pop %v3238
      %v3240 = vmul.f32 %v2661, %v3209
      %v3241 = vmul.f32 %v2675, %v3211
      %v3242 = vmul.f32 %v2689, %v3213
      %v3243 = vmul.f32 %v2703, %v3215
      %v3244 = vmul.f32 %v2717, %v3217
      %v3245 = vmul.f32 %v2731, %v3219
      %v3246 = vmul.f32 %v2745, %v3221
      %v3247 = vmul.f32 %v2759, %v3223
      %v3248 = vmul.f32 %v2773, %v3225
      %v3249 = vmul.f32 %v2787, %v3227
      %v3250 = vmul.f32 %v2801, %v3229
      %v3251 = vmul.f32 %v2815, %v3231
      %v3252 = vmul.f32 %v2829, %v3233
      %v3253 = vmul.f32 %v2843, %v3235
      %v3254 = vmul.f32 %v2857, %v3237
      %v3255 = vmul.f32 %v2871, %v3239
      %vm3256 = vcmp.ge.f32.partialorder %v2584, 0.0
      %vm3257 = vcmp.ge.f32.partialorder %v2585, 0.0
      %vm3258 = vcmp.ge.f32.partialorder %v2586, 0.0
      %vm3259 = vcmp.ge.f32.partialorder %v2587, 0.0
      %vm3260 = vcmp.ge.f32.partialorder %v2588, 0.0
      %vm3261 = vcmp.ge.f32.partialorder %v2589, 0.0
      %vm3262 = vcmp.ge.f32.partialorder %v2590, 0.0
      %vm3263 = vcmp.ge.f32.partialorder %v2591, 0.0
      %vm3264 = vcmp.ge.f32.partialorder %v2592, 0.0
      %vm3265 = vcmp.ge.f32.partialorder %v2593, 0.0
      %vm3266 = vcmp.ge.f32.partialorder %v2594, 0.0
      %vm3267 = vcmp.ge.f32.partialorder %v2595, 0.0
      %vm3268 = vcmp.ge.f32.partialorder %v2596, 0.0
      %vm3269 = vcmp.ge.f32.partialorder %v2597, 0.0
      %vm3270 = vcmp.ge.f32.partialorder %v2598, 0.0
      %vm3271 = vcmp.ge.f32.partialorder %v2599, 0.0
      %v3272 = vsub.f32 2.0, %v3240
      %v3273 = vsub.f32 2.0, %v3241
      %v3274 = vsub.f32 2.0, %v3242
      %v3275 = vsub.f32 2.0, %v3243
      %v3276 = vsub.f32 2.0, %v3244
      %v3277 = vsub.f32 2.0, %v3245
      %v3278 = vsub.f32 2.0, %v3246
      %v3279 = vsub.f32 2.0, %v3247
      %v3280 = vsub.f32 2.0, %v3248
      %v3281 = vsub.f32 2.0, %v3249
      %v3282 = vsub.f32 2.0, %v3250
      %v3283 = vsub.f32 2.0, %v3251
      %v3284 = vsub.f32 2.0, %v3252
      %v3285 = vsub.f32 2.0, %v3253
      %v3286 = vsub.f32 2.0, %v3254
      %v3287 = vsub.f32 2.0, %v3255
      %v3288 = vsel %vm3256, %v3240, %v3272
      %v3289 = vsel %vm3257, %v3241, %v3273
      %v3290 = vsel %vm3258, %v3242, %v3274
      %v3291 = vsel %vm3259, %v3243, %v3275
      %v3292 = vsel %vm3260, %v3244, %v3276
      %v3293 = vsel %vm3261, %v3245, %v3277
      %v3294 = vsel %vm3262, %v3246, %v3278
      %v3295 = vsel %vm3263, %v3247, %v3279
      %v3296 = vsel %vm3264, %v3248, %v3280
      %v3297 = vsel %vm3265, %v3249, %v3281
      %v3298 = vsel %vm3266, %v3250, %v3282
      %v3299 = vsel %vm3267, %v3251, %v3283
      %v3300 = vsel %vm3268, %v3252, %v3284
      %v3301 = vsel %vm3269, %v3253, %v3285
      %v3302 = vsel %vm3270, %v3254, %v3286
      %v3303 = vsel %vm3271, %v3255, %v3287
      %v3304 = vmul.f32 %v3288, 0.5
      %v3305 = vmul.f32 %v3289, 0.5
      %v3306 = vmul.f32 %v3290, 0.5
      %v3307 = vmul.f32 %v3291, 0.5
      %v3308 = vmul.f32 %v3292, 0.5
      %v3309 = vmul.f32 %v3293, 0.5
      %v3310 = vmul.f32 %v3294, 0.5
      %v3311 = vmul.f32 %v3295, 0.5
      %v3312 = vmul.f32 %v3296, 0.5
      %v3313 = vmul.f32 %v3297, 0.5
      %v3314 = vmul.f32 %v3298, 0.5
      %v3315 = vmul.f32 %v3299, 0.5
      %v3316 = vmul.f32 %v3300, 0.5
      %v3317 = vmul.f32 %v3301, 0.5
      %v3318 = vmul.f32 %v3302, 0.5
      %v3319 = vmul.f32 %v3303, 0.5
      %v3320 = vsub.f32 -0.5, %v2504
      %v3321 = vsub.f32 -0.5, %v2505
      %v3322 = vsub.f32 -0.5, %v2506
      %v3323 = vsub.f32 -0.5, %v2507
      %v3324 = vsub.f32 -0.5, %v2508
      %v3325 = vsub.f32 -0.5, %v2509
      %v3326 = vsub.f32 -0.5, %v2510
      %v3327 = vsub.f32 -0.5, %v2511
      %v3328 = vsub.f32 -0.5, %v2512
      %v3329 = vsub.f32 -0.5, %v2513
      %v3330 = vsub.f32 -0.5, %v2514
      %v3331 = vsub.f32 -0.5, %v2515
      %v3332 = vsub.f32 -0.5, %v2516
      %v3333 = vsub.f32 -0.5, %v2517
      %v3334 = vsub.f32 -0.5, %v2518
      %v3335 = vsub.f32 -0.5, %v2519
      %v3336 = vmul.f32 %v3320, %v2536
      %v3337 = vmul.f32 %v3321, %v2537
      %v3338 = vmul.f32 %v3322, %v2538
      %v3339 = vmul.f32 %v3323, %v2539
      %v3340 = vmul.f32 %v3324, %v2540
      %v3341 = vmul.f32 %v3325, %v2541
      %v3342 = vmul.f32 %v3326, %v2542
      %v3343 = vmul.f32 %v3327, %v2543
      %v3344 = vmul.f32 %v3328, %v2544
      %v3345 = vmul.f32 %v3329, %v2545
      %v3346 = vmul.f32 %v3330, %v2546
      %v3347 = vmul.f32 %v3331, %v2547
      %v3348 = vmul.f32 %v3332, %v2548
      %v3349 = vmul.f32 %v3333, %v2549
      %v3350 = vmul.f32 %v3334, %v2550
      %v3351 = vmul.f32 %v3335, %v2551
      %v3352 = vmul.f32 %v3336, -0.70710677
      %v3353 = vmul.f32 %v3337, -0.70710677
      %v3354 = vmul.f32 %v3338, -0.70710677
      %v3355 = vmul.f32 %v3339, -0.70710677
      %v3356 = vmul.f32 %v3340, -0.70710677
      %v3357 = vmul.f32 %v3341, -0.70710677
      %v3358 = vmul.f32 %v3342, -0.70710677
      %v3359 = vmul.f32 %v3343, -0.70710677
      %v3360 = vmul.f32 %v3344, -0.70710677
      %v3361 = vmul.f32 %v3345, -0.70710677
      %v3362 = vmul.f32 %v3346, -0.70710677
      %v3363 = vmul.f32 %v3347, -0.70710677
      %v3364 = vmul.f32 %v3348, -0.70710677
      %v3365 = vmul.f32 %v3349, -0.70710677
      %v3366 = vmul.f32 %v3350, -0.70710677
      %v3367 = vmul.f32 %v3351, -0.70710677
      %v3368 = vand.u32 2147483647, %v3352
      %v3369 = vand.u32 2147483647, %v3353
      %v3370 = vand.u32 2147483647, %v3354
      %v3371 = vand.u32 2147483647, %v3355
      %v3372 = vand.u32 2147483647, %v3356
      %v3373 = vand.u32 2147483647, %v3357
      %v3374 = vand.u32 2147483647, %v3358
      %v3375 = vand.u32 2147483647, %v3359
      %v3376 = vand.u32 2147483647, %v3360
      %v3377 = vand.u32 2147483647, %v3361
      %v3378 = vand.u32 2147483647, %v3362
      %v3379 = vand.u32 2147483647, %v3363
      %v3380 = vand.u32 2147483647, %v3364
      %v3381 = vand.u32 2147483647, %v3365
      %v3382 = vand.u32 2147483647, %v3366
      %v3383 = vand.u32 2147483647, %v3367
      %v3384 = vmul.f32 %v3368, 0.5
      %v3385 = vmul.f32 %v3369, 0.5
      %v3386 = vmul.f32 %v3370, 0.5
      %v3387 = vmul.f32 %v3371, 0.5
      %v3388 = vmul.f32 %v3372, 0.5
      %v3389 = vmul.f32 %v3373, 0.5
      %v3390 = vmul.f32 %v3374, 0.5
      %v3391 = vmul.f32 %v3375, 0.5
      %v3392 = vmul.f32 %v3376, 0.5
      %v3393 = vmul.f32 %v3377, 0.5
      %v3394 = vmul.f32 %v3378, 0.5
      %v3395 = vmul.f32 %v3379, 0.5
      %v3396 = vmul.f32 %v3380, 0.5
      %v3397 = vmul.f32 %v3381, 0.5
      %v3398 = vmul.f32 %v3382, 0.5
      %v3399 = vmul.f32 %v3383, 0.5
      %v3400 = vadd.f32 %v3384, 1.0
      %v3401 = vadd.f32 %v3385, 1.0
      %v3402 = vadd.f32 %v3386, 1.0
      %v3403 = vadd.f32 %v3387, 1.0
      %v3404 = vadd.f32 %v3388, 1.0
      %v3405 = vadd.f32 %v3389, 1.0
      %v3406 = vadd.f32 %v3390, 1.0
      %v3407 = vadd.f32 %v3391, 1.0
      %v3408 = vadd.f32 %v3392, 1.0
      %v3409 = vadd.f32 %v3393, 1.0
      %v3410 = vadd.f32 %v3394, 1.0
      %v3411 = vadd.f32 %v3395, 1.0
      %v3412 = vadd.f32 %v3396, 1.0
      %v3413 = vadd.f32 %v3397, 1.0
      %v3414 = vadd.f32 %v3398, 1.0
      %v3415 = vadd.f32 %v3399, 1.0
      %v3416 = vrcp.pop %v3400
      %v3417 = vmul.f32 %v3400, %v3416
      %v3418 = vsub.f32 1.0, %v3417
      %v3419 = vmul.f32 %v3416, %v3418
      %v3420 = vadd.f32 %v3416, %v3419
      %vm3421 = vweird.f32 %v3400
      %vm3422 = vweird.f32 %v3416
      %vm3423 = vmor %vm3421, %vm3422
      %v3424 = vsel %vm3423, %v3416, %v3420
      %v3425 = vand.u32 2147483647, %v3400
      %vm3426 = vcmp.eq.f32.partialorder %v3425, 8.507059e+37
      %v3427 = vand.u32 %v3400, 2147483648
      %v3428 = vor.u32 1.1754944e-38, %v3427
      %v3429 = vsel %vm3426, %v3428, %v3424
      %v3430 = vrcp.pop %v3401
      %v3431 = vmul.f32 %v3401, %v3430
      %v3432 = vsub.f32 1.0, %v3431
      %v3433 = vmul.f32 %v3430, %v3432
      %v3434 = vadd.f32 %v3430, %v3433
      %vm3435 = vweird.f32 %v3401
      %vm3436 = vweird.f32 %v3430
      %vm3437 = vmor %vm3435, %vm3436
      %v3438 = vsel %vm3437, %v3430, %v3434
      %v3439 = vand.u32 2147483647, %v3401
      %vm3440 = vcmp.eq.f32.partialorder %v3439, 8.507059e+37
      %v3441 = vand.u32 %v3401, 2147483648
      %v3442 = vor.u32 1.1754944e-38, %v3441
      %v3443 = vsel %vm3440, %v3442, %v3438
      %v3444 = vrcp.pop %v3402
      %v3445 = vmul.f32 %v3402, %v3444
      %v3446 = vsub.f32 1.0, %v3445
      %v3447 = vmul.f32 %v3444, %v3446
      %v3448 = vadd.f32 %v3444, %v3447
      %vm3449 = vweird.f32 %v3402
      %vm3450 = vweird.f32 %v3444
      %vm3451 = vmor %vm3449, %vm3450
      %v3452 = vsel %vm3451, %v3444, %v3448
      %v3453 = vand.u32 2147483647, %v3402
      %vm3454 = vcmp.eq.f32.partialorder %v3453, 8.507059e+37
      %v3455 = vand.u32 %v3402, 2147483648
      %v3456 = vor.u32 1.1754944e-38, %v3455
      %v3457 = vsel %vm3454, %v3456, %v3452
      %v3458 = vrcp.pop %v3403
      %v3459 = vmul.f32 %v3403, %v3458
      %v3460 = vsub.f32 1.0, %v3459
      %v3461 = vmul.f32 %v3458, %v3460
      %v3462 = vadd.f32 %v3458, %v3461
      %vm3463 = vweird.f32 %v3403
      %vm3464 = vweird.f32 %v3458
      %vm3465 = vmor %vm3463, %vm3464
      %v3466 = vsel %vm3465, %v3458, %v3462
      %v3467 = vand.u32 2147483647, %v3403
      %vm3468 = vcmp.eq.f32.partialorder %v3467, 8.507059e+37
      %v3469 = vand.u32 %v3403, 2147483648
      %v3470 = vor.u32 1.1754944e-38, %v3469
      %v3471 = vsel %vm3468, %v3470, %v3466
      %v3472 = vrcp.pop %v3404
      %v3473 = vmul.f32 %v3404, %v3472
      %v3474 = vsub.f32 1.0, %v3473
      %v3475 = vmul.f32 %v3472, %v3474
      %v3476 = vadd.f32 %v3472, %v3475
      %vm3477 = vweird.f32 %v3404
      %vm3478 = vweird.f32 %v3472
      %vm3479 = vmor %vm3477, %vm3478
      %v3480 = vsel %vm3479, %v3472, %v3476
      %v3481 = vand.u32 2147483647, %v3404
      %vm3482 = vcmp.eq.f32.partialorder %v3481, 8.507059e+37
      %v3483 = vand.u32 %v3404, 2147483648
      %v3484 = vor.u32 1.1754944e-38, %v3483
      %v3485 = vsel %vm3482, %v3484, %v3480
      %v3486 = vrcp.pop %v3405
      %v3487 = vmul.f32 %v3405, %v3486
      %v3488 = vsub.f32 1.0, %v3487
      %v3489 = vmul.f32 %v3486, %v3488
      %v3490 = vadd.f32 %v3486, %v3489
      %vm3491 = vweird.f32 %v3405
      %vm3492 = vweird.f32 %v3486
      %vm3493 = vmor %vm3491, %vm3492
      %v3494 = vsel %vm3493, %v3486, %v3490
      %v3495 = vand.u32 2147483647, %v3405
      %vm3496 = vcmp.eq.f32.partialorder %v3495, 8.507059e+37
      %v3497 = vand.u32 %v3405, 2147483648
      %v3498 = vor.u32 1.1754944e-38, %v3497
      %v3499 = vsel %vm3496, %v3498, %v3494
      %v3500 = vrcp.pop %v3406
      %v3501 = vmul.f32 %v3406, %v3500
      %v3502 = vsub.f32 1.0, %v3501
      %v3503 = vmul.f32 %v3500, %v3502
      %v3504 = vadd.f32 %v3500, %v3503
      %vm3505 = vweird.f32 %v3406
      %vm3506 = vweird.f32 %v3500
      %vm3507 = vmor %vm3505, %vm3506
      %v3508 = vsel %vm3507, %v3500, %v3504
      %v3509 = vand.u32 2147483647, %v3406
      %vm3510 = vcmp.eq.f32.partialorder %v3509, 8.507059e+37
      %v3511 = vand.u32 %v3406, 2147483648
      %v3512 = vor.u32 1.1754944e-38, %v3511
      %v3513 = vsel %vm3510, %v3512, %v3508
      %v3514 = vrcp.pop %v3407
      %v3515 = vmul.f32 %v3407, %v3514
      %v3516 = vsub.f32 1.0, %v3515
      %v3517 = vmul.f32 %v3514, %v3516
      %v3518 = vadd.f32 %v3514, %v3517
      %vm3519 = vweird.f32 %v3407
      %vm3520 = vweird.f32 %v3514
      %vm3521 = vmor %vm3519, %vm3520
      %v3522 = vsel %vm3521, %v3514, %v3518
      %v3523 = vand.u32 2147483647, %v3407
      %vm3524 = vcmp.eq.f32.partialorder %v3523, 8.507059e+37
      %v3525 = vand.u32 %v3407, 2147483648
      %v3526 = vor.u32 1.1754944e-38, %v3525
      %v3527 = vsel %vm3524, %v3526, %v3522
      %v3528 = vrcp.pop %v3408
      %v3529 = vmul.f32 %v3408, %v3528
      %v3530 = vsub.f32 1.0, %v3529
      %v3531 = vmul.f32 %v3528, %v3530
      %v3532 = vadd.f32 %v3528, %v3531
      %vm3533 = vweird.f32 %v3408
      %vm3534 = vweird.f32 %v3528
      %vm3535 = vmor %vm3533, %vm3534
      %v3536 = vsel %vm3535, %v3528, %v3532
      %v3537 = vand.u32 2147483647, %v3408
      %vm3538 = vcmp.eq.f32.partialorder %v3537, 8.507059e+37
      %v3539 = vand.u32 %v3408, 2147483648
      %v3540 = vor.u32 1.1754944e-38, %v3539
      %v3541 = vsel %vm3538, %v3540, %v3536
      %v3542 = vrcp.pop %v3409
      %v3543 = vmul.f32 %v3409, %v3542
      %v3544 = vsub.f32 1.0, %v3543
      %v3545 = vmul.f32 %v3542, %v3544
      %v3546 = vadd.f32 %v3542, %v3545
      %vm3547 = vweird.f32 %v3409
      %vm3548 = vweird.f32 %v3542
      %vm3549 = vmor %vm3547, %vm3548
      %v3550 = vsel %vm3549, %v3542, %v3546
      %v3551 = vand.u32 2147483647, %v3409
      %vm3552 = vcmp.eq.f32.partialorder %v3551, 8.507059e+37
      %v3553 = vand.u32 %v3409, 2147483648
      %v3554 = vor.u32 1.1754944e-38, %v3553
      %v3555 = vsel %vm3552, %v3554, %v3550
      %v3556 = vrcp.pop %v3410
      %v3557 = vmul.f32 %v3410, %v3556
      %v3558 = vsub.f32 1.0, %v3557
      %v3559 = vmul.f32 %v3556, %v3558
      %v3560 = vadd.f32 %v3556, %v3559
      %vm3561 = vweird.f32 %v3410
      %vm3562 = vweird.f32 %v3556
      %vm3563 = vmor %vm3561, %vm3562
      %v3564 = vsel %vm3563, %v3556, %v3560
      %v3565 = vand.u32 2147483647, %v3410
      %vm3566 = vcmp.eq.f32.partialorder %v3565, 8.507059e+37
      %v3567 = vand.u32 %v3410, 2147483648
      %v3568 = vor.u32 1.1754944e-38, %v3567
      %v3569 = vsel %vm3566, %v3568, %v3564
      %v3570 = vrcp.pop %v3411
      %v3571 = vmul.f32 %v3411, %v3570
      %v3572 = vsub.f32 1.0, %v3571
      %v3573 = vmul.f32 %v3570, %v3572
      %v3574 = vadd.f32 %v3570, %v3573
      %vm3575 = vweird.f32 %v3411
      %vm3576 = vweird.f32 %v3570
      %vm3577 = vmor %vm3575, %vm3576
      %v3578 = vsel %vm3577, %v3570, %v3574
      %v3579 = vand.u32 2147483647, %v3411
      %vm3580 = vcmp.eq.f32.partialorder %v3579, 8.507059e+37
      %v3581 = vand.u32 %v3411, 2147483648
      %v3582 = vor.u32 1.1754944e-38, %v3581
      %v3583 = vsel %vm3580, %v3582, %v3578
      %v3584 = vrcp.pop %v3412
      %v3585 = vmul.f32 %v3412, %v3584
      %v3586 = vsub.f32 1.0, %v3585
      %v3587 = vmul.f32 %v3584, %v3586
      %v3588 = vadd.f32 %v3584, %v3587
      %vm3589 = vweird.f32 %v3412
      %vm3590 = vweird.f32 %v3584
      %vm3591 = vmor %vm3589, %vm3590
      %v3592 = vsel %vm3591, %v3584, %v3588
      %v3593 = vand.u32 2147483647, %v3412
      %vm3594 = vcmp.eq.f32.partialorder %v3593, 8.507059e+37
      %v3595 = vand.u32 %v3412, 2147483648
      %v3596 = vor.u32 1.1754944e-38, %v3595
      %v3597 = vsel %vm3594, %v3596, %v3592
      %v3598 = vrcp.pop %v3413
      %v3599 = vmul.f32 %v3413, %v3598
      %v3600 = vsub.f32 1.0, %v3599
      %v3601 = vmul.f32 %v3598, %v3600
      %v3602 = vadd.f32 %v3598, %v3601
      %vm3603 = vweird.f32 %v3413
      %vm3604 = vweird.f32 %v3598
      %vm3605 = vmor %vm3603, %vm3604
      %v3606 = vsel %vm3605, %v3598, %v3602
      %v3607 = vand.u32 2147483647, %v3413
      %vm3608 = vcmp.eq.f32.partialorder %v3607, 8.507059e+37
      %v3609 = vand.u32 %v3413, 2147483648
      %v3610 = vor.u32 1.1754944e-38, %v3609
      %v3611 = vsel %vm3608, %v3610, %v3606
      %v3612 = vrcp.pop %v3414
      %v3613 = vmul.f32 %v3414, %v3612
      %v3614 = vsub.f32 1.0, %v3613
      %v3615 = vmul.f32 %v3612, %v3614
      %v3616 = vadd.f32 %v3612, %v3615
      %vm3617 = vweird.f32 %v3414
      %vm3618 = vweird.f32 %v3612
      %vm3619 = vmor %vm3617, %vm3618
      %v3620 = vsel %vm3619, %v3612, %v3616
      %v3621 = vand.u32 2147483647, %v3414
      %vm3622 = vcmp.eq.f32.partialorder %v3621, 8.507059e+37
      %v3623 = vand.u32 %v3414, 2147483648
      %v3624 = vor.u32 1.1754944e-38, %v3623
      %v3625 = vsel %vm3622, %v3624, %v3620
      %v3626 = vrcp.pop %v3415
      %v3627 = vmul.f32 %v3415, %v3626
      %v3628 = vsub.f32 1.0, %v3627
      %v3629 = vmul.f32 %v3626, %v3628
      %v3630 = vadd.f32 %v3626, %v3629
      %vm3631 = vweird.f32 %v3415
      %vm3632 = vweird.f32 %v3626
      %vm3633 = vmor %vm3631, %vm3632
      %v3634 = vsel %vm3633, %v3626, %v3630
      %v3635 = vand.u32 2147483647, %v3415
      %vm3636 = vcmp.eq.f32.partialorder %v3635, 8.507059e+37
      %v3637 = vand.u32 %v3415, 2147483648
      %v3638 = vor.u32 1.1754944e-38, %v3637
      %v3639 = vsel %vm3636, %v3638, %v3634
      %v3640 = vsub.f32 0.0, %v3368
      %v3641 = vsub.f32 0.0, %v3369
      %v3642 = vsub.f32 0.0, %v3370
      %v3643 = vsub.f32 0.0, %v3371
      %v3644 = vsub.f32 0.0, %v3372
      %v3645 = vsub.f32 0.0, %v3373
      %v3646 = vsub.f32 0.0, %v3374
      %v3647 = vsub.f32 0.0, %v3375
      %v3648 = vsub.f32 0.0, %v3376
      %v3649 = vsub.f32 0.0, %v3377
      %v3650 = vsub.f32 0.0, %v3378
      %v3651 = vsub.f32 0.0, %v3379
      %v3652 = vsub.f32 0.0, %v3380
      %v3653 = vsub.f32 0.0, %v3381
      %v3654 = vsub.f32 0.0, %v3382
      %v3655 = vsub.f32 0.0, %v3383
      %v3656 = vmul.f32 %v3640, %v3368
      %v3657 = vmul.f32 %v3641, %v3369
      %v3658 = vmul.f32 %v3642, %v3370
      %v3659 = vmul.f32 %v3643, %v3371
      %v3660 = vmul.f32 %v3644, %v3372
      %v3661 = vmul.f32 %v3645, %v3373
      %v3662 = vmul.f32 %v3646, %v3374
      %v3663 = vmul.f32 %v3647, %v3375
      %v3664 = vmul.f32 %v3648, %v3376
      %v3665 = vmul.f32 %v3649, %v3377
      %v3666 = vmul.f32 %v3650, %v3378
      %v3667 = vmul.f32 %v3651, %v3379
      %v3668 = vmul.f32 %v3652, %v3380
      %v3669 = vmul.f32 %v3653, %v3381
      %v3670 = vmul.f32 %v3654, %v3382
      %v3671 = vmul.f32 %v3655, %v3383
      %v3672 = vsub.f32 %v3656, 1.2655122
      %v3673 = vsub.f32 %v3657, 1.2655122
      %v3674 = vsub.f32 %v3658, 1.2655122
      %v3675 = vsub.f32 %v3659, 1.2655122
      %v3676 = vsub.f32 %v3660, 1.2655122
      %v3677 = vsub.f32 %v3661, 1.2655122
      %v3678 = vsub.f32 %v3662, 1.2655122
      %v3679 = vsub.f32 %v3663, 1.2655122
      %v3680 = vsub.f32 %v3664, 1.2655122
      %v3681 = vsub.f32 %v3665, 1.2655122
      %v3682 = vsub.f32 %v3666, 1.2655122
      %v3683 = vsub.f32 %v3667, 1.2655122
      %v3684 = vsub.f32 %v3668, 1.2655122
      %v3685 = vsub.f32 %v3669, 1.2655122
      %v3686 = vsub.f32 %v3670, 1.2655122
      %v3687 = vsub.f32 %v3671, 1.2655122
      %v3688 = vmul.f32 %v3429, 0.17087276
      %v3689 = vmul.f32 %v3443, 0.17087276
      %v3690 = vmul.f32 %v3457, 0.17087276
      %v3691 = vmul.f32 %v3471, 0.17087276
      %v3692 = vmul.f32 %v3485, 0.17087276
      %v3693 = vmul.f32 %v3499, 0.17087276
      %v3694 = vmul.f32 %v3513, 0.17087276
      %v3695 = vmul.f32 %v3527, 0.17087276
      %v3696 = vmul.f32 %v3541, 0.17087276
      %v3697 = vmul.f32 %v3555, 0.17087276
      %v3698 = vmul.f32 %v3569, 0.17087276
      %v3699 = vmul.f32 %v3583, 0.17087276
      %v3700 = vmul.f32 %v3597, 0.17087276
      %v3701 = vmul.f32 %v3611, 0.17087276
      %v3702 = vmul.f32 %v3625, 0.17087276
      %v3703 = vmul.f32 %v3639, 0.17087276
      %v3704 = vadd.f32 %v3688, -0.82215226
      %v3705 = vadd.f32 %v3689, -0.82215226
      %v3706 = vadd.f32 %v3690, -0.82215226
      %v3707 = vadd.f32 %v3691, -0.82215226
      %v3708 = vadd.f32 %v3692, -0.82215226
      %v3709 = vadd.f32 %v3693, -0.82215226
      %v3710 = vadd.f32 %v3694, -0.82215226
      %v3711 = vadd.f32 %v3695, -0.82215226
      %v3712 = vadd.f32 %v3696, -0.82215226
      %v3713 = vadd.f32 %v3697, -0.82215226
      %v3714 = vadd.f32 %v3698, -0.82215226
      %v3715 = vadd.f32 %v3699, -0.82215226
      %v3716 = vadd.f32 %v3700, -0.82215226
      %v3717 = vadd.f32 %v3701, -0.82215226
      %v3718 = vadd.f32 %v3702, -0.82215226
      %v3719 = vadd.f32 %v3703, -0.82215226
      %v3720 = vmul.f32 %v3429, %v3704
      %v3721 = vmul.f32 %v3443, %v3705
      %v3722 = vmul.f32 %v3457, %v3706
      %v3723 = vmul.f32 %v3471, %v3707
      %v3724 = vmul.f32 %v3485, %v3708
      %v3725 = vmul.f32 %v3499, %v3709
      %v3726 = vmul.f32 %v3513, %v3710
      %v3727 = vmul.f32 %v3527, %v3711
      %v3728 = vmul.f32 %v3541, %v3712
      %v3729 = vmul.f32 %v3555, %v3713
      %v3730 = vmul.f32 %v3569, %v3714
      %v3731 = vmul.f32 %v3583, %v3715
      %v3732 = vmul.f32 %v3597, %v3716
      %v3733 = vmul.f32 %v3611, %v3717
      %v3734 = vmul.f32 %v3625, %v3718
      %v3735 = vmul.f32 %v3639, %v3719
      %v3736 = vadd.f32 %v3720, 1.4885159
      %v3737 = vadd.f32 %v3721, 1.4885159
      %v3738 = vadd.f32 %v3722, 1.4885159
      %v3739 = vadd.f32 %v3723, 1.4885159
      %v3740 = vadd.f32 %v3724, 1.4885159
      %v3741 = vadd.f32 %v3725, 1.4885159
      %v3742 = vadd.f32 %v3726, 1.4885159
      %v3743 = vadd.f32 %v3727, 1.4885159
      %v3744 = vadd.f32 %v3728, 1.4885159
      %v3745 = vadd.f32 %v3729, 1.4885159
      %v3746 = vadd.f32 %v3730, 1.4885159
      %v3747 = vadd.f32 %v3731, 1.4885159
      %v3748 = vadd.f32 %v3732, 1.4885159
      %v3749 = vadd.f32 %v3733, 1.4885159
      %v3750 = vadd.f32 %v3734, 1.4885159
      %v3751 = vadd.f32 %v3735, 1.4885159
      %v3752 = vmul.f32 %v3429, %v3736
      %v3753 = vmul.f32 %v3443, %v3737
      %v3754 = vmul.f32 %v3457, %v3738
      %v3755 = vmul.f32 %v3471, %v3739
      %v3756 = vmul.f32 %v3485, %v3740
      %v3757 = vmul.f32 %v3499, %v3741
      %v3758 = vmul.f32 %v3513, %v3742
      %v3759 = vmul.f32 %v3527, %v3743
      %v3760 = vmul.f32 %v3541, %v3744
      %v3761 = vmul.f32 %v3555, %v3745
      %v3762 = vmul.f32 %v3569, %v3746
      %v3763 = vmul.f32 %v3583, %v3747
      %v3764 = vmul.f32 %v3597, %v3748
      %v3765 = vmul.f32 %v3611, %v3749
      %v3766 = vmul.f32 %v3625, %v3750
      %v3767 = vmul.f32 %v3639, %v3751
      %v3768 = vadd.f32 %v3752, -1.135204
      %v3769 = vadd.f32 %v3753, -1.135204
      %v3770 = vadd.f32 %v3754, -1.135204
      %v3771 = vadd.f32 %v3755, -1.135204
      %v3772 = vadd.f32 %v3756, -1.135204
      %v3773 = vadd.f32 %v3757, -1.135204
      %v3774 = vadd.f32 %v3758, -1.135204
      %v3775 = vadd.f32 %v3759, -1.135204
      %v3776 = vadd.f32 %v3760, -1.135204
      %v3777 = vadd.f32 %v3761, -1.135204
      %v3778 = vadd.f32 %v3762, -1.135204
      %v3779 = vadd.f32 %v3763, -1.135204
      %v3780 = vadd.f32 %v3764, -1.135204
      %v3781 = vadd.f32 %v3765, -1.135204
      %v3782 = vadd.f32 %v3766, -1.135204
      %v3783 = vadd.f32 %v3767, -1.135204
      %v3784 = vmul.f32 %v3429, %v3768
      %v3785 = vmul.f32 %v3443, %v3769
      %v3786 = vmul.f32 %v3457, %v3770
      %v3787 = vmul.f32 %v3471, %v3771
      %v3788 = vmul.f32 %v3485, %v3772
      %v3789 = vmul.f32 %v3499, %v3773
      %v3790 = vmul.f32 %v3513, %v3774
      %v3791 = vmul.f32 %v3527, %v3775
      %v3792 = vmul.f32 %v3541, %v3776
      %v3793 = vmul.f32 %v3555, %v3777
      %v3794 = vmul.f32 %v3569, %v3778
      %v3795 = vmul.f32 %v3583, %v3779
      %v3796 = vmul.f32 %v3597, %v3780
      %v3797 = vmul.f32 %v3611, %v3781
      %v3798 = vmul.f32 %v3625, %v3782
      %v3799 = vmul.f32 %v3639, %v3783
      %v3800 = vadd.f32 %v3784, 0.27886808
      %v3801 = vadd.f32 %v3785, 0.27886808
      %v3802 = vadd.f32 %v3786, 0.27886808
      %v3803 = vadd.f32 %v3787, 0.27886808
      %v3804 = vadd.f32 %v3788, 0.27886808
      %v3805 = vadd.f32 %v3789, 0.27886808
      %v3806 = vadd.f32 %v3790, 0.27886808
      %v3807 = vadd.f32 %v3791, 0.27886808
      %v3808 = vadd.f32 %v3792, 0.27886808
      %v3809 = vadd.f32 %v3793, 0.27886808
      %v3810 = vadd.f32 %v3794, 0.27886808
      %v3811 = vadd.f32 %v3795, 0.27886808
      %v3812 = vadd.f32 %v3796, 0.27886808
      %v3813 = vadd.f32 %v3797, 0.27886808
      %v3814 = vadd.f32 %v3798, 0.27886808
      %v3815 = vadd.f32 %v3799, 0.27886808
      %v3816 = vmul.f32 %v3429, %v3800
      %v3817 = vmul.f32 %v3443, %v3801
      %v3818 = vmul.f32 %v3457, %v3802
      %v3819 = vmul.f32 %v3471, %v3803
      %v3820 = vmul.f32 %v3485, %v3804
      %v3821 = vmul.f32 %v3499, %v3805
      %v3822 = vmul.f32 %v3513, %v3806
      %v3823 = vmul.f32 %v3527, %v3807
      %v3824 = vmul.f32 %v3541, %v3808
      %v3825 = vmul.f32 %v3555, %v3809
      %v3826 = vmul.f32 %v3569, %v3810
      %v3827 = vmul.f32 %v3583, %v3811
      %v3828 = vmul.f32 %v3597, %v3812
      %v3829 = vmul.f32 %v3611, %v3813
      %v3830 = vmul.f32 %v3625, %v3814
      %v3831 = vmul.f32 %v3639, %v3815
      %v3832 = vadd.f32 %v3816, -0.18628806
      %v3833 = vadd.f32 %v3817, -0.18628806
      %v3834 = vadd.f32 %v3818, -0.18628806
      %v3835 = vadd.f32 %v3819, -0.18628806
      %v3836 = vadd.f32 %v3820, -0.18628806
      %v3837 = vadd.f32 %v3821, -0.18628806
      %v3838 = vadd.f32 %v3822, -0.18628806
      %v3839 = vadd.f32 %v3823, -0.18628806
      %v3840 = vadd.f32 %v3824, -0.18628806
      %v3841 = vadd.f32 %v3825, -0.18628806
      %v3842 = vadd.f32 %v3826, -0.18628806
      %v3843 = vadd.f32 %v3827, -0.18628806
      %v3844 = vadd.f32 %v3828, -0.18628806
      %v3845 = vadd.f32 %v3829, -0.18628806
      %v3846 = vadd.f32 %v3830, -0.18628806
      %v3847 = vadd.f32 %v3831, -0.18628806
      %v3848 = vmul.f32 %v3429, %v3832
      %v3849 = vmul.f32 %v3443, %v3833
      %v3850 = vmul.f32 %v3457, %v3834
      %v3851 = vmul.f32 %v3471, %v3835
      %v3852 = vmul.f32 %v3485, %v3836
      %v3853 = vmul.f32 %v3499, %v3837
      %v3854 = vmul.f32 %v3513, %v3838
      %v3855 = vmul.f32 %v3527, %v3839
      %v3856 = vmul.f32 %v3541, %v3840
      %v3857 = vmul.f32 %v3555, %v3841
      %v3858 = vmul.f32 %v3569, %v3842
      %v3859 = vmul.f32 %v3583, %v3843
      %v3860 = vmul.f32 %v3597, %v3844
      %v3861 = vmul.f32 %v3611, %v3845
      %v3862 = vmul.f32 %v3625, %v3846
      %v3863 = vmul.f32 %v3639, %v3847
      %v3864 = vadd.f32 %v3848, 0.09678418
      %v3865 = vadd.f32 %v3849, 0.09678418
      %v3866 = vadd.f32 %v3850, 0.09678418
      %v3867 = vadd.f32 %v3851, 0.09678418
      %v3868 = vadd.f32 %v3852, 0.09678418
      %v3869 = vadd.f32 %v3853, 0.09678418
      %v3870 = vadd.f32 %v3854, 0.09678418
      %v3871 = vadd.f32 %v3855, 0.09678418
      %v3872 = vadd.f32 %v3856, 0.09678418
      %v3873 = vadd.f32 %v3857, 0.09678418
      %v3874 = vadd.f32 %v3858, 0.09678418
      %v3875 = vadd.f32 %v3859, 0.09678418
      %v3876 = vadd.f32 %v3860, 0.09678418
      %v3877 = vadd.f32 %v3861, 0.09678418
      %v3878 = vadd.f32 %v3862, 0.09678418
      %v3879 = vadd.f32 %v3863, 0.09678418
      %v3880 = vmul.f32 %v3429, %v3864
      %v3881 = vmul.f32 %v3443, %v3865
      %v3882 = vmul.f32 %v3457, %v3866
      %v3883 = vmul.f32 %v3471, %v3867
      %v3884 = vmul.f32 %v3485, %v3868
      %v3885 = vmul.f32 %v3499, %v3869
      %v3886 = vmul.f32 %v3513, %v3870
      %v3887 = vmul.f32 %v3527, %v3871
      %v3888 = vmul.f32 %v3541, %v3872
      %v3889 = vmul.f32 %v3555, %v3873
      %v3890 = vmul.f32 %v3569, %v3874
      %v3891 = vmul.f32 %v3583, %v3875
      %v3892 = vmul.f32 %v3597, %v3876
      %v3893 = vmul.f32 %v3611, %v3877
      %v3894 = vmul.f32 %v3625, %v3878
      %v3895 = vmul.f32 %v3639, %v3879
      %v3896 = vadd.f32 %v3880, 0.37409195
      %v3897 = vadd.f32 %v3881, 0.37409195
      %v3898 = vadd.f32 %v3882, 0.37409195
      %v3899 = vadd.f32 %v3883, 0.37409195
      %v3900 = vadd.f32 %v3884, 0.37409195
      %v3901 = vadd.f32 %v3885, 0.37409195
      %v3902 = vadd.f32 %v3886, 0.37409195
      %v3903 = vadd.f32 %v3887, 0.37409195
      %v3904 = vadd.f32 %v3888, 0.37409195
      %v3905 = vadd.f32 %v3889, 0.37409195
      %v3906 = vadd.f32 %v3890, 0.37409195
      %v3907 = vadd.f32 %v3891, 0.37409195
      %v3908 = vadd.f32 %v3892, 0.37409195
      %v3909 = vadd.f32 %v3893, 0.37409195
      %v3910 = vadd.f32 %v3894, 0.37409195
      %v3911 = vadd.f32 %v3895, 0.37409195
      %v3912 = vmul.f32 %v3429, %v3896
      %v3913 = vmul.f32 %v3443, %v3897
      %v3914 = vmul.f32 %v3457, %v3898
      %v3915 = vmul.f32 %v3471, %v3899
      %v3916 = vmul.f32 %v3485, %v3900
      %v3917 = vmul.f32 %v3499, %v3901
      %v3918 = vmul.f32 %v3513, %v3902
      %v3919 = vmul.f32 %v3527, %v3903
      %v3920 = vmul.f32 %v3541, %v3904
      %v3921 = vmul.f32 %v3555, %v3905
      %v3922 = vmul.f32 %v3569, %v3906
      %v3923 = vmul.f32 %v3583, %v3907
      %v3924 = vmul.f32 %v3597, %v3908
      %v3925 = vmul.f32 %v3611, %v3909
      %v3926 = vmul.f32 %v3625, %v3910
      %v3927 = vmul.f32 %v3639, %v3911
      %v3928 = vadd.f32 %v3912, 1.0000237
      %v3929 = vadd.f32 %v3913, 1.0000237
      %v3930 = vadd.f32 %v3914, 1.0000237
      %v3931 = vadd.f32 %v3915, 1.0000237
      %v3932 = vadd.f32 %v3916, 1.0000237
      %v3933 = vadd.f32 %v3917, 1.0000237
      %v3934 = vadd.f32 %v3918, 1.0000237
      %v3935 = vadd.f32 %v3919, 1.0000237
      %v3936 = vadd.f32 %v3920, 1.0000237
      %v3937 = vadd.f32 %v3921, 1.0000237
      %v3938 = vadd.f32 %v3922, 1.0000237
      %v3939 = vadd.f32 %v3923, 1.0000237
      %v3940 = vadd.f32 %v3924, 1.0000237
      %v3941 = vadd.f32 %v3925, 1.0000237
      %v3942 = vadd.f32 %v3926, 1.0000237
      %v3943 = vadd.f32 %v3927, 1.0000237
      %v3944 = vmul.f32 %v3429, %v3928
      %v3945 = vmul.f32 %v3443, %v3929
      %v3946 = vmul.f32 %v3457, %v3930
      %v3947 = vmul.f32 %v3471, %v3931
      %v3948 = vmul.f32 %v3485, %v3932
      %v3949 = vmul.f32 %v3499, %v3933
      %v3950 = vmul.f32 %v3513, %v3934
      %v3951 = vmul.f32 %v3527, %v3935
      %v3952 = vmul.f32 %v3541, %v3936
      %v3953 = vmul.f32 %v3555, %v3937
      %v3954 = vmul.f32 %v3569, %v3938
      %v3955 = vmul.f32 %v3583, %v3939
      %v3956 = vmul.f32 %v3597, %v3940
      %v3957 = vmul.f32 %v3611, %v3941
      %v3958 = vmul.f32 %v3625, %v3942
      %v3959 = vmul.f32 %v3639, %v3943
      %v3960 = vadd.f32 %v3672, %v3944
      %v3961 = vadd.f32 %v3673, %v3945
      %v3962 = vadd.f32 %v3674, %v3946
      %v3963 = vadd.f32 %v3675, %v3947
      %v3964 = vadd.f32 %v3676, %v3948
      %v3965 = vadd.f32 %v3677, %v3949
      %v3966 = vadd.f32 %v3678, %v3950
      %v3967 = vadd.f32 %v3679, %v3951
      %v3968 = vadd.f32 %v3680, %v3952
      %v3969 = vadd.f32 %v3681, %v3953
      %v3970 = vadd.f32 %v3682, %v3954
      %v3971 = vadd.f32 %v3683, %v3955
      %v3972 = vadd.f32 %v3684, %v3956
      %v3973 = vadd.f32 %v3685, %v3957
      %v3974 = vadd.f32 %v3686, %v3958
      %v3975 = vadd.f32 %v3687, %v3959
      %v3976 = vmul.f32 %v3960, 1.442695
      %v3977 = vpow.pop %v3976
      %v3978 = vmul.f32 %v3961, 1.442695
      %v3979 = vpow.pop %v3978
      %v3980 = vmul.f32 %v3962, 1.442695
      %v3981 = vpow.pop %v3980
      %v3982 = vmul.f32 %v3963, 1.442695
      %v3983 = vpow.pop %v3982
      %v3984 = vmul.f32 %v3964, 1.442695
      %v3985 = vpow.pop %v3984
      %v3986 = vmul.f32 %v3965, 1.442695
      %v3987 = vpow.pop %v3986
      %v3988 = vmul.f32 %v3966, 1.442695
      %v3989 = vpow.pop %v3988
      %v3990 = vmul.f32 %v3967, 1.442695
      %v3991 = vpow.pop %v3990
      %v3992 = vmul.f32 %v3968, 1.442695
      %v3993 = vpow.pop %v3992
      %v3994 = vmul.f32 %v3969, 1.442695
      %v3995 = vpow.pop %v3994
      %v3996 = vmul.f32 %v3970, 1.442695
      %v3997 = vpow.pop %v3996
      %v3998 = vmul.f32 %v3971, 1.442695
      %v3999 = vpow.pop %v3998
      %v4000 = vmul.f32 %v3972, 1.442695
      %v4001 = vpow.pop %v4000
      %v4002 = vmul.f32 %v3973, 1.442695
      %v4003 = vpow.pop %v4002
      %v4004 = vmul.f32 %v3974, 1.442695
      %v4005 = vpow.pop %v4004
      %v4006 = vmul.f32 %v3975, 1.442695
      %v4007 = vpow.pop %v4006
      %v4008 = vmul.f32 %v3429, %v3977
      %v4009 = vmul.f32 %v3443, %v3979
      %v4010 = vmul.f32 %v3457, %v3981
      %v4011 = vmul.f32 %v3471, %v3983
      %v4012 = vmul.f32 %v3485, %v3985
      %v4013 = vmul.f32 %v3499, %v3987
      %v4014 = vmul.f32 %v3513, %v3989
      %v4015 = vmul.f32 %v3527, %v3991
      %v4016 = vmul.f32 %v3541, %v3993
      %v4017 = vmul.f32 %v3555, %v3995
      %v4018 = vmul.f32 %v3569, %v3997
      %v4019 = vmul.f32 %v3583, %v3999
      %v4020 = vmul.f32 %v3597, %v4001
      %v4021 = vmul.f32 %v3611, %v4003
      %v4022 = vmul.f32 %v3625, %v4005
      %v4023 = vmul.f32 %v3639, %v4007
      %vm4024 = vcmp.ge.f32.partialorder %v3352, 0.0
      %vm4025 = vcmp.ge.f32.partialorder %v3353, 0.0
      %vm4026 = vcmp.ge.f32.partialorder %v3354, 0.0
      %vm4027 = vcmp.ge.f32.partialorder %v3355, 0.0
      %vm4028 = vcmp.ge.f32.partialorder %v3356, 0.0
      %vm4029 = vcmp.ge.f32.partialorder %v3357, 0.0
      %vm4030 = vcmp.ge.f32.partialorder %v3358, 0.0
      %vm4031 = vcmp.ge.f32.partialorder %v3359, 0.0
      %vm4032 = vcmp.ge.f32.partialorder %v3360, 0.0
      %vm4033 = vcmp.ge.f32.partialorder %v3361, 0.0
      %vm4034 = vcmp.ge.f32.partialorder %v3362, 0.0
      %vm4035 = vcmp.ge.f32.partialorder %v3363, 0.0
      %vm4036 = vcmp.ge.f32.partialorder %v3364, 0.0
      %vm4037 = vcmp.ge.f32.partialorder %v3365, 0.0
      %vm4038 = vcmp.ge.f32.partialorder %v3366, 0.0
      %vm4039 = vcmp.ge.f32.partialorder %v3367, 0.0
      %v4040 = vsub.f32 2.0, %v4008
      %v4041 = vsub.f32 2.0, %v4009
      %v4042 = vsub.f32 2.0, %v4010
      %v4043 = vsub.f32 2.0, %v4011
      %v4044 = vsub.f32 2.0, %v4012
      %v4045 = vsub.f32 2.0, %v4013
      %v4046 = vsub.f32 2.0, %v4014
      %v4047 = vsub.f32 2.0, %v4015
      %v4048 = vsub.f32 2.0, %v4016
      %v4049 = vsub.f32 2.0, %v4017
      %v4050 = vsub.f32 2.0, %v4018
      %v4051 = vsub.f32 2.0, %v4019
      %v4052 = vsub.f32 2.0, %v4020
      %v4053 = vsub.f32 2.0, %v4021
      %v4054 = vsub.f32 2.0, %v4022
      %v4055 = vsub.f32 2.0, %v4023
      %v4056 = vsel %vm4024, %v4008, %v4040
      %v4057 = vsel %vm4025, %v4009, %v4041
      %v4058 = vsel %vm4026, %v4010, %v4042
      %v4059 = vsel %vm4027, %v4011, %v4043
      %v4060 = vsel %vm4028, %v4012, %v4044
      %v4061 = vsel %vm4029, %v4013, %v4045
      %v4062 = vsel %vm4030, %v4014, %v4046
      %v4063 = vsel %vm4031, %v4015, %v4047
      %v4064 = vsel %vm4032, %v4016, %v4048
      %v4065 = vsel %vm4033, %v4017, %v4049
      %v4066 = vsel %vm4034, %v4018, %v4050
      %v4067 = vsel %vm4035, %v4019, %v4051
      %v4068 = vsel %vm4036, %v4020, %v4052
      %v4069 = vsel %vm4037, %v4021, %v4053
      %v4070 = vsel %vm4038, %v4022, %v4054
      %v4071 = vsel %vm4039, %v4023, %v4055
      %v4072 = vmul.f32 %v4056, 0.5
      %v4073 = vmul.f32 %v4057, 0.5
      %v4074 = vmul.f32 %v4058, 0.5
      %v4075 = vmul.f32 %v4059, 0.5
      %v4076 = vmul.f32 %v4060, 0.5
      %v4077 = vmul.f32 %v4061, 0.5
      %v4078 = vmul.f32 %v4062, 0.5
      %v4079 = vmul.f32 %v4063, 0.5
      %v4080 = vmul.f32 %v4064, 0.5
      %v4081 = vmul.f32 %v4065, 0.5
      %v4082 = vmul.f32 %v4066, 0.5
      %v4083 = vmul.f32 %v4067, 0.5
      %v4084 = vmul.f32 %v4068, 0.5
      %v4085 = vmul.f32 %v4069, 0.5
      %v4086 = vmul.f32 %v4070, 0.5
      %v4087 = vmul.f32 %v4071, 0.5
      %v4088 = vsub.f32 %v3304, %v4072
      %v4089 = vsub.f32 %v3305, %v4073
      %v4090 = vsub.f32 %v3306, %v4074
      %v4091 = vsub.f32 %v3307, %v4075
      %v4092 = vsub.f32 %v3308, %v4076
      %v4093 = vsub.f32 %v3309, %v4077
      %v4094 = vsub.f32 %v3310, %v4078
      %v4095 = vsub.f32 %v3311, %v4079
      %v4096 = vsub.f32 %v3312, %v4080
      %v4097 = vsub.f32 %v3313, %v4081
      %v4098 = vsub.f32 %v3314, %v4082
      %v4099 = vsub.f32 %v3315, %v4083
      %v4100 = vsub.f32 %v3316, %v4084
      %v4101 = vsub.f32 %v3317, %v4085
      %v4102 = vsub.f32 %v3318, %v4086
      %v4103 = vsub.f32 %v3319, %v4087
      %v4104 = vmax.f32 %v4088, 1e-09
      %v4105 = vmax.f32 %v4089, 1e-09
      %v4106 = vmax.f32 %v4090, 1e-09
      %v4107 = vmax.f32 %v4091, 1e-09
      %v4108 = vmax.f32 %v4092, 1e-09
      %v4109 = vmax.f32 %v4093, 1e-09
      %v4110 = vmax.f32 %v4094, 1e-09
      %v4111 = vmax.f32 %v4095, 1e-09
      %v4112 = vmax.f32 %v4096, 1e-09
      %v4113 = vmax.f32 %v4097, 1e-09
      %v4114 = vmax.f32 %v4098, 1e-09
      %v4115 = vmax.f32 %v4099, 1e-09
      %v4116 = vmax.f32 %v4100, 1e-09
      %v4117 = vmax.f32 %v4101, 1e-09
      %v4118 = vmax.f32 %v4102, 1e-09
      %v4119 = vmax.f32 %v4103, 1e-09
      %4120 = vst.msk [vmem:[%s373] sm:$0xff] %vm431, %v4104
      %4121 = vst.msk [vmem:[%s373 + $0x8] sm:$0xff] %vm431, %v4105
      %4122 = vst.msk [vmem:[%s373 + $0x10] sm:$0xff] %vm431, %v4106
      %4123 = vst.msk [vmem:[%s373 + $0x18] sm:$0xff] %vm431, %v4107
      %4124 = vst.msk [vmem:[%s373 + $0x20] sm:$0xff] %vm431, %v4108
      %4125 = vst.msk [vmem:[%s373 + $0x28] sm:$0xff] %vm431, %v4109
      %4126 = vst.msk [vmem:[%s373 + $0x30] sm:$0xff] %vm431, %v4110
      %4127 = vst.msk [vmem:[%s373 + $0x38] sm:$0xff] %vm431, %v4111
      %4128 = vst.msk [vmem:[%s373 + $0x40] sm:$0xff] %vm431, %v4112
      %4129 = vst.msk [vmem:[%s373 + $0x48] sm:$0xff] %vm431, %v4113
      %4130 = vst.msk [vmem:[%s373 + $0x50] sm:$0xff] %vm431, %v4114
      %4131 = vst.msk [vmem:[%s373 + $0x58] sm:$0xff] %vm431, %v4115
      %4132 = vst.msk [vmem:[%s373 + $0x60] sm:$0xff] %vm431, %v4116
      %4133 = vst.msk [vmem:[%s373 + $0x68] sm:$0xff] %vm431, %v4117
      %4134 = vst.msk [vmem:[%s373 + $0x70] sm:$0xff] %vm431, %v4118
      %4135 = vst.msk [vmem:[%s373 + $0x78] sm:$0xff] %vm431, %v4119
      %s4136 = smul.u32 16, %s25
      %p4137 = scmp.lt.s32.totalorder %s24, 1
      %s4138 = scalar_select %p4137, %s24, 1
      %p4139 = scmp.lt.s32.totalorder %s4136, 31
      %s4140 = scalar_select %p4139, %s4136, 31
      %s4141 = smul.addr %s4138, 32
      %s4142 = sadd.s32 %s4140, %s4141
      %s4143 = smul.addr %s4142, 8
      %s4144 = scalar_lea.vmem %s9, %s4143
      // Predicated region
      $region65: #{_lambda_.1} parent=55 // pred_check
        %p4145 = pneg %p248
      $region66: #{_lambda_.1} parent=55 // pred_check_branch
        %4147 = sbr.rel (%p4145) target = $region68
      $region67: #{_lambda_.1} parent=55 // pred_region
        %s4148 = smul.u32 16, %s25
      $region68: #{_lambda_.1} parent=55 // pred_fallthru
        _
    $region56: #{_lambda_.1} parent=5 // pred_fallthru
      _
    %p4149 = scmp.le.s32.totalorder 2, %s15
    // Predicated region
    $region69: #{_lambda_.1} parent=5 // pred_check
      %p4150 = pneg %p4149
    $region70: #{_lambda_.1} parent=5 // pred_check_branch
      %4152 = sbr.rel (%p4150) target = $region72
    $region71: #{_lambda_.1} parent=5 // pred_region
      %s4153 = ssub.s32 %s15, 2
      // Predicated region
      $region73: #{_lambda_.1} parent=71 // pred_check
        %p4154 = pneg %p254
      $region74: #{_lambda_.1} parent=71 // pred_check_branch
        %4156 = sbr.rel (%p4154) target = $region76
      $region75: #{_lambda_.1} parent=71 // pred_region
        %s4157 = smul.u32 16, %s27
        %p4158 = scmp.lt.s32.totalorder %s26, 1
        %s4159 = scalar_select %p4158, %s26, 1
        %p4160 = scmp.lt.s32.totalorder %s4157, 31
        %s4161 = scalar_select %p4160, %s4157, 31
        %s4162 = smul.addr %s4159, 32
        %s4163 = sadd.s32 %s4161, %s4162
        %s4164 = smul.addr %s4163, 8
        %s4165 = scalar_lea.vmem %s9, %s4164
      $region76: #{_lambda_.1} parent=71 // pred_fallthru
        _
    $region72: #{_lambda_.1} parent=5 // pred_fallthru
      _
  $region6: #{_lambda_.1} parent=0 // loop_footer
    %s19 = sadd.s32 1, %s15
  $region7: #{_lambda_.1} parent=0 // loop_footer_branch
    %14 = sbr.rel target = $region3
  $region8: #{_lambda_.1} parent=0 // loop_exit
    _

</llo_original>
